<compile_context>
chip_gen: v7x
topology: tpu7x:2x2x1
jax: 0.10.0
libtpu: 0.0.40
codegen_flags: <defaults>
</compile_context>

<pallas_src>
import jax
import jax.numpy as jnp
from jax import lax
from jax.experimental import pallas as pl
from jax.experimental.pallas import tpu as pltpu

# Hyper-params implied by the module (dense1 in_features == 576 => c3 = 64,
# kernel 3, maxpool 2, MNIST 28x28 single-channel input).
C1, C2, C3 = 8, 16, 64          # conv_channels1/2/3
K = 3                           # conv_kernel_size
F1 = 32                         # linear_features1
NCLASS = 10

H0 = 28                         # input spatial
H1 = H0 - (K - 1)               # 26 : conv1 out
P1 = H1 // 2                    # 13 : pool1 out
H2 = P1 - (K - 1)               # 11 : conv2 out
P2 = H2 // 2                    # 5  : pool2 out
H3 = P2 - (K - 1)               # 3  : conv3 out

L1 = P1 * C1                    # 104 lanes after conv1+pool : (w_pool, c)
L2 = P2 * C2                    # 80  lanes after conv2+pool : (w_pool, c)
L3 = H3 * C3                    # 192 lanes after conv3      : (w, c)
OUTP = 128                      # lane-padded class dim


# ------------------------------- fused kernel -------------------------------

def _fused_net_kernel(x_ref, a1e_ref, a1o_ref, b1_ref, w2e_ref, w2o_ref, b2_ref,
                      w3_ref, b3_ref, d1_ref, d1b_ref, d2w_ref, d2b_ref, out_ref):
    f32 = jnp.float32
    bsz = out_ref.shape[0]                              # batch tile (mult. of 8)

    def banded_conv(inp, rows_out, we_ref, wo_ref):
        """Conv over W via banded matmuls; H via K row-shifted slabs.

        inp: (rows_in, bsz, lanes_in).  we/wo: (K, lanes_in, lanes_out) banded
        weights that produce the EVEN / ODD output columns of the conv, so the
        subsequent 2x2 W-pool is a single jnp.maximum (lane-compact result).
        Returns pre-bias even/odd results, each (rows_out, bsz, lanes_out).
        """
        lanes_in = inp.shape[-1]
        lanes_out = we_ref.shape[-1]
        acc_e = acc_o = None
        for dy in range(K):                             # static unroll
            lhs = inp[dy:dy + rows_out].reshape(rows_out * bsz, lanes_in)
            te = jnp.dot(lhs, we_ref[dy], preferred_element_type=f32)
            to = jnp.dot(lhs, wo_ref[dy], preferred_element_type=f32)
            acc_e = te if acc_e is None else acc_e + te
            acc_o = to if acc_o is None else acc_o + to
        return (acc_e.reshape(rows_out, bsz, lanes_out),
                acc_o.reshape(rows_out, bsz, lanes_out))

    x = x_ref[...]                                      # (28, bsz, 28)

    # ---- conv1 + bias + ReLU + 2x2 maxpool (pool fused, all in vregs)
    ce, co = banded_conv(x, H1, a1e_ref, a1o_ref)       # (26, bsz, 104) x 2
    m = jnp.maximum(ce, co)                             # W-direction pool
    m = m.reshape(P1, 2, bsz, L1).max(axis=1)           # H-direction pool -> (13, bsz, 104)
    p1 = jnp.maximum(m + b1_ref[...], 0.0)              # max/bias/relu commute

    # ---- conv2 + bias + ReLU + 2x2 maxpool (floor drops row/col 10)
    ce, co = banded_conv(p1, H2, w2e_ref, w2o_ref)      # (11, bsz, 80) x 2
    m = jnp.maximum(ce, co)
    m = m[0:2 * P2].reshape(P2, 2, bsz, L2).max(axis=1) # (5, bsz, 80)
    p2 = jnp.maximum(m + b2_ref[...], 0.0)

    # ---- conv3 + bias + ReLU (no pool): single-parity banded matmuls
    acc = None
    for dy in range(K):
        lhs = p2[dy:dy + H3].reshape(H3 * bsz, L2)
        t = jnp.dot(lhs, w3_ref[dy], preferred_element_type=f32)
        acc = t if acc is None else acc + t
    a3 = jnp.maximum(acc.reshape(H3, bsz, L3) + b3_ref[...], 0.0)   # (3, bsz, 192)

    # ---- dense1 + ReLU (torch NCHW flatten order absorbed into d1 rows)
    h = None
    for i in range(H3):
        t = jnp.dot(a3[i], d1_ref[i], preferred_element_type=f32)   # (bsz, 32)
        h = t if h is None else h + t
    h1 = jnp.maximum(h + d1b_ref[...], 0.0)

    # ---- dense2 + softmax on a 128-lane padded slab (pad bias -1e30 => exp 0)
    logits = jnp.dot(h1, d2w_ref[...], preferred_element_type=f32) + d2b_ref[...]
    mx = jnp.max(logits, axis=-1, keepdims=True)
    e = jnp.exp(logits - mx)
    s = jnp.sum(e, axis=-1, keepdims=True)
    out_ref[...] = e / s                                # exact softmax normalization


# ------------------------------ wrapper / glue ------------------------------

def _rep(shape):
    zeros = (0,) * len(shape)
    return pl.BlockSpec(shape, lambda i, _z=zeros: _z)


def _round_up(x, m):
    return (x + m - 1) // m * m


def _band_selector(n_in, n_out, stride, offset):
    """0/1 tensor [w_in, w_out, dx] = (w_in == stride*w_out + offset + dx)."""
    w_in = jnp.arange(n_in)[:, None, None]
    w_out = jnp.arange(n_out)[None, :, None]
    dx = jnp.arange(K)[None, None, :]
    return (w_in == stride * w_out + offset + dx).astype(jnp.float32)


@jax.jit
def trainer_net_forward(params, x_nchw):
    """x_nchw: (N, 1, 28, 28) float32, like the PyTorch MNIST input."""
    f32 = jnp.float32
    n = x_nchw.shape[0]
    bt = 128 if n >= 128 else _round_up(n, 8)           # batch tile (sublane mult.)
    n_pad = _round_up(n, bt)

    x = x_nchw.astype(f32).reshape(n, H0, H0)
    if n_pad != n:
        x = jnp.pad(x, ((0, n_pad - n), (0, 0), (0, 0)))
    # Layout for the kernel: (H, batch, W) -> H-shifts/H-pool hit the outer dim,
    # batch fills sublanes, W (and later W*C) fills lanes.
    xk = jnp.transpose(x, (1, 0, 2))                    # (28, n_pad, 28)

    # ---- banded conv weights (one-time per call; tiny XLA work) ------------
    k1 = params['conv1_w'].astype(f32)[:, 0]            # (8, 3, 3)   [c, dy, dx]
    k2 = params['conv2_w'].astype(f32)                  # (16, 8, 3, 3)
    k3 = params['conv3_w'].astype(f32)                  # (64, 16, 3, 3)

    s1e, s1o = _band_selector(H0, P1, 2, 0), _band_selector(H0, P1, 2, 1)
    a1e = jnp.einsum('wpd,cyd->ywpc', s1e, k1).reshape(K, H0, L1)
    a1o = jnp.einsum('wpd,cyd->ywpc', s1o, k1).reshape(K, H0, L1)

    s2e, s2o = _band_selector(P1, P2, 2, 0), _band_selector(P1, P2, 2, 1)
    w2e = jnp.einsum('pqd,oiyd->ypiqo', s2e, k2).reshape(K, L1, L2)
    w2o = jnp.einsum('pqd,oiyd->ypiqo', s2o, k2).reshape(K, L1, L2)

    s3 = _band_selector(P2, H3, 1, 0)
    w3 = jnp.einsum('qjd,oiyd->yqijo', s3, k3).reshape(K, L2, L3)

    b1r = jnp.tile(params['conv1_b'].astype(f32), P1).reshape(1, L1)
    b2r = jnp.tile(params['conv2_b'].astype(f32), P2).reshape(1, L2)
    b3r = jnp.tile(params['conv3_b'].astype(f32), H3).reshape(1, L3)

    # dense1: rows permuted from torch NCHW flatten order (c*9 + h*3 + w) to the
    # kernel's per-h (w*64 + c) lane layout -> no per-forward activation shuffle.
    d1 = (params['dense1_w'].astype(f32)
          .reshape(F1, C3, H3, H3).transpose(2, 3, 1, 0).reshape(H3, L3, F1))
    d1b = params['dense1_b'].astype(f32).reshape(1, F1)

    # dense2: pad classes 10 -> 128 lanes. Zero weight cols + -1e30 bias on pads
    # => exp() of pads is 0, so the padded softmax equals the 10-way softmax.
    d2w = jnp.pad(params['dense2_w'].astype(f32).T, ((0, 0), (0, OUTP - NCLASS)))
    d2b = jnp.concatenate([params['dense2_b'].astype(f32),
                           jnp.full((OUTP - NCLASS,), -1e30, f32)]).reshape(1, OUTP)

    flops_per_img = 2 * (2 * K * H1 * H0 * L1 + 2 * K * H2 * L1 * L2
                         + K * H3 * L2 * L3 + H3 * L3 * F1 + F1 * OUTP)
    cost = pl.CostEstimate(
        flops=n_pad * flops_per_img,
        transcendentals=n_pad * (OUTP + 1),
        bytes_accessed=4 * (n_pad * (H0 * H0 + OUTP)
                            + K * (2 * H0 * L1 + 2 * L1 * L2 + L2 * L3)
                            + H3 * L3 * F1 + F1 * OUTP))

    out = pl.pallas_call(
        _fused_net_kernel,
        out_shape=jax.ShapeDtypeStruct((n_pad, OUTP), f32),
        grid_spec=pltpu.PrefetchScalarGridSpec(
            num_scalar_prefetch=0,
            grid=(n_pad // bt,),                         # one batch tile per step
            in_specs=[
                pl.BlockSpec((H0, bt, H0), lambda i: (0, i, 0)),
                _rep((K, H0, L1)), _rep((K, H0, L1)), _rep((1, L1)),
                _rep((K, L1, L2)), _rep((K, L1, L2)), _rep((1, L2)),
                _rep((K, L2, L3)), _rep((1, L3)),
                _rep((H3, L3, F1)), _rep((1, F1)),
                _rep((F1, OUTP)), _rep((1, OUTP)),
            ],
            out_specs=pl.BlockSpec((bt, OUTP), lambda i: (i, 0)),
        ),
        compiler_params=pltpu.CompilerParams(
            dimension_semantics=("parallel",)),          # v7x: shards tiles over 2 TCs
        cost_estimate=cost,
    )(xk, a1e, a1o, b1r, w2e, w2o, b2r, w3, b3r, d1, d1b, d2w, d2b)

    return out[:n, :NCLASS]


# --------------------------- pure-JAX reference -----------------------------

def reference_forward(params, x_nchw):
    dn = ('NCHW', 'OIHW', 'NCHW')

    def conv(y, w, b):
        y = lax.conv_general_dilated(y, w, (1, 1), 'VALID', dimension_numbers=dn)
        return jax.nn.relu(y + b[None, :, None, None])

    def pool(y):
        return lax.reduce_window(y, -jnp.inf, lax.max,
                                 (1, 1, 2, 2), (1, 1, 2, 2), 'VALID')

    y = pool(conv(x_nchw, params['conv1_w'], params['conv1_b']))
    y = pool(conv(y, params['conv2_w'], params['conv2_b']))
    y = conv(y, params['conv3_w'], params['conv3_b'])
    y = y.reshape(y.shape[0], -1)                      # torch.flatten(x, 1), NCHW order
    y = jax.nn.relu(y @ params['dense1_w'].T + params['dense1_b'])
    return jax.nn.softmax(y @ params['dense2_w'].T + params['dense2_b'], axis=-1)


# ----------------------------------- init -----------------------------------

def init_params(key):
    ks = jax.random.split(key, 10)

    def u(k, shape, fan_in):
        bound = 1.0 / jnp.sqrt(jnp.float32(fan_in))
        return jax.random.uniform(k, shape, jnp.float32, -bound, bound)

    return dict(
        conv1_w=u(ks[0], (C1, 1, K, K), K * K * 1),   conv1_b=u(ks[1], (C1,), K * K * 1),
        conv2_w=u(ks[2], (C2, C1, K, K), K * K * C1), conv2_b=u(ks[3], (C2,), K * K * C1),
        conv3_w=u(ks[4], (C3, C2, K, K), K * K * C2), conv3_b=u(ks[5], (C3,), K * K * C2),
        dense1_w=u(ks[6], (F1, H3 * H3 * C3), H3 * H3 * C3),
        dense1_b=u(ks[7], (F1,), H3 * H3 * C3),
        dense2_w=u(ks[8], (NCLASS, F1), F1),          dense2_b=u(ks[9], (NCLASS,), F1),
    )


if __name__ == "__main__":
    key = jax.random.PRNGKey(0)
    pkey, xkey = jax.random.split(key)
    params = init_params(pkey)
    x = jax.random.normal(xkey, (2, 1, H0, H0), jnp.float32)   # small MNIST batch

    out = jax.block_until_ready(trainer_net_forward(params, x))
    assert out.shape == (2, NCLASS), out.shape

    ref = jax.block_until_ready(reference_forward(params, x))
    assert jnp.allclose(jnp.sum(out, axis=1), 1.0, atol=1e-4), jnp.sum(out, axis=1)
    assert jnp.allclose(out, ref, atol=1e-4, rtol=1e-4), float(jnp.abs(out - ref).max())
    print("KERNEL_OK")
</pallas_src>

<mosaic_0001>
module attributes {stable_mosaic.version = 11 : i64} {
  func.func @_fused_net_kernel(%arg0: i32, %arg1: memref<28x8x28xf32, #tpu.memory_space<vmem>>, %arg2: memref<3x28x104xf32, #tpu.memory_space<vmem>>, %arg3: memref<3x28x104xf32, #tpu.memory_space<vmem>>, %arg4: memref<1x104xf32, #tpu.memory_space<vmem>>, %arg5: memref<3x104x80xf32, #tpu.memory_space<vmem>>, %arg6: memref<3x104x80xf32, #tpu.memory_space<vmem>>, %arg7: memref<1x80xf32, #tpu.memory_space<vmem>>, %arg8: memref<3x80x192xf32, #tpu.memory_space<vmem>>, %arg9: memref<1x192xf32, #tpu.memory_space<vmem>>, %arg10: memref<3x192x32xf32, #tpu.memory_space<vmem>>, %arg11: memref<1x32xf32, #tpu.memory_space<vmem>>, %arg12: memref<32x128xf32, #tpu.memory_space<vmem>>, %arg13: memref<1x128xf32, #tpu.memory_space<vmem>>, %arg14: memref<8x128xf32, #tpu.memory_space<vmem>>) attributes {dimension_semantics = [#tpu.dimension_semantics<parallel>], iteration_bounds = array<i64: 1>, scalar_prefetch = 0 : i64, scratch_operands = 0 : i64, tpu.core_type = #tpu.core_type<tc>, window_params = [{transform_indices = @transform_0, window_bounds = array<i64: 28, 8, 28>}, {pipeline_mode = #tpu.pipeline_mode<synchronous>, transform_indices = @transform_1, window_bounds = array<i64: 3, 28, 104>}, {pipeline_mode = #tpu.pipeline_mode<synchronous>, transform_indices = @transform_2, window_bounds = array<i64: 3, 28, 104>}, {pipeline_mode = #tpu.pipeline_mode<synchronous>, transform_indices = @transform_3, window_bounds = array<i64: 1, 104>}, {pipeline_mode = #tpu.pipeline_mode<synchronous>, transform_indices = @transform_4, window_bounds = array<i64: 3, 104, 80>}, {pipeline_mode = #tpu.pipeline_mode<synchronous>, transform_indices = @transform_5, window_bounds = array<i64: 3, 104, 80>}, {pipeline_mode = #tpu.pipeline_mode<synchronous>, transform_indices = @transform_6, window_bounds = array<i64: 1, 80>}, {pipeline_mode = #tpu.pipeline_mode<synchronous>, transform_indices = @transform_7, window_bounds = array<i64: 3, 80, 192>}, {pipeline_mode = #tpu.pipeline_mode<synchronous>, transform_indices = @transform_8, window_bounds = array<i64: 1, 192>}, {pipeline_mode = #tpu.pipeline_mode<synchronous>, transform_indices = @transform_9, window_bounds = array<i64: 3, 192, 32>}, {pipeline_mode = #tpu.pipeline_mode<synchronous>, transform_indices = @transform_10, window_bounds = array<i64: 1, 32>}, {pipeline_mode = #tpu.pipeline_mode<synchronous>, transform_indices = @transform_11, window_bounds = array<i64: 32, 128>}, {pipeline_mode = #tpu.pipeline_mode<synchronous>, transform_indices = @transform_12, window_bounds = array<i64: 1, 128>}, {transform_indices = @transform_13, window_bounds = array<i64: 8, 128>}]} {
    %c0 = arith.constant 0 : index
    %c0_0 = arith.constant 0 : index
    %c0_1 = arith.constant 0 : index
    %0 = vector.load %arg1[%c0, %c0_0, %c0_1] : memref<28x8x28xf32, #tpu.memory_space<vmem>>, vector<28x8x28xf32>
    %1 = vector.extract_strided_slice %0 {offsets = [0, 0, 0], sizes = [26, 8, 28], strides = [1, 1, 1]} : vector<28x8x28xf32> to vector<26x8x28xf32>
    %2 = vector.shape_cast %1 : vector<26x8x28xf32> to vector<208x28xf32>
    %c0_2 = arith.constant 0 : index
    %c0_3 = arith.constant 0 : index
    %c0_4 = arith.constant 0 : index
    %3 = vector.load %arg2[%c0_2, %c0_3, %c0_4] : memref<3x28x104xf32, #tpu.memory_space<vmem>>, vector<1x28x104xf32>
    %4 = vector.shape_cast %3 : vector<1x28x104xf32> to vector<28x104xf32>
    %cst = arith.constant dense<0.000000e+00> : vector<208x104xf32>
    %5 = tpu.matmul %2, %4, %cst {dimension_numbers = #tpu.dot_dimension_numbers<[1], [0], [0], [1], [0, 0, 1, 1], [], []>} : vector<208x28xf32>, vector<28x104xf32>, vector<208x104xf32> -> vector<208x104xf32>
    %c0_5 = arith.constant 0 : index
    %c0_6 = arith.constant 0 : index
    %c0_7 = arith.constant 0 : index
    %6 = vector.load %arg3[%c0_5, %c0_6, %c0_7] : memref<3x28x104xf32, #tpu.memory_space<vmem>>, vector<1x28x104xf32>
    %7 = vector.shape_cast %6 : vector<1x28x104xf32> to vector<28x104xf32>
    %cst_8 = arith.constant dense<0.000000e+00> : vector<208x104xf32>
    %8 = tpu.matmul %2, %7, %cst_8 {dimension_numbers = #tpu.dot_dimension_numbers<[1], [0], [0], [1], [0, 0, 1, 1], [], []>} : vector<208x28xf32>, vector<28x104xf32>, vector<208x104xf32> -> vector<208x104xf32>
    %9 = vector.extract_strided_slice %0 {offsets = [1, 0, 0], sizes = [26, 8, 28], strides = [1, 1, 1]} : vector<28x8x28xf32> to vector<26x8x28xf32>
    %10 = vector.shape_cast %9 : vector<26x8x28xf32> to vector<208x28xf32>
    %c1 = arith.constant 1 : index
    %c0_9 = arith.constant 0 : index
    %c0_10 = arith.constant 0 : index
    %11 = vector.load %arg2[%c1, %c0_9, %c0_10] : memref<3x28x104xf32, #tpu.memory_space<vmem>>, vector<1x28x104xf32>
    %12 = vector.shape_cast %11 : vector<1x28x104xf32> to vector<28x104xf32>
    %cst_11 = arith.constant dense<0.000000e+00> : vector<208x104xf32>
    %13 = tpu.matmul %10, %12, %cst_11 {dimension_numbers = #tpu.dot_dimension_numbers<[1], [0], [0], [1], [0, 0, 1, 1], [], []>} : vector<208x28xf32>, vector<28x104xf32>, vector<208x104xf32> -> vector<208x104xf32>
    %c1_12 = arith.constant 1 : index
    %c0_13 = arith.constant 0 : index
    %c0_14 = arith.constant 0 : index
    %14 = vector.load %arg3[%c1_12, %c0_13, %c0_14] : memref<3x28x104xf32, #tpu.memory_space<vmem>>, vector<1x28x104xf32>
    %15 = vector.shape_cast %14 : vector<1x28x104xf32> to vector<28x104xf32>
    %cst_15 = arith.constant dense<0.000000e+00> : vector<208x104xf32>
    %16 = tpu.matmul %10, %15, %cst_15 {dimension_numbers = #tpu.dot_dimension_numbers<[1], [0], [0], [1], [0, 0, 1, 1], [], []>} : vector<208x28xf32>, vector<28x104xf32>, vector<208x104xf32> -> vector<208x104xf32>
    %17 = arith.addf %5, %13 : vector<208x104xf32>
    %18 = arith.addf %8, %16 : vector<208x104xf32>
    %19 = vector.extract_strided_slice %0 {offsets = [2, 0, 0], sizes = [26, 8, 28], strides = [1, 1, 1]} : vector<28x8x28xf32> to vector<26x8x28xf32>
    %20 = vector.shape_cast %19 : vector<26x8x28xf32> to vector<208x28xf32>
    %c2 = arith.constant 2 : index
    %c0_16 = arith.constant 0 : index
    %c0_17 = arith.constant 0 : index
    %21 = vector.load %arg2[%c2, %c0_16, %c0_17] : memref<3x28x104xf32, #tpu.memory_space<vmem>>, vector<1x28x104xf32>
    %22 = vector.shape_cast %21 : vector<1x28x104xf32> to vector<28x104xf32>
    %cst_18 = arith.constant dense<0.000000e+00> : vector<208x104xf32>
    %23 = tpu.matmul %20, %22, %cst_18 {dimension_numbers = #tpu.dot_dimension_numbers<[1], [0], [0], [1], [0, 0, 1, 1], [], []>} : vector<208x28xf32>, vector<28x104xf32>, vector<208x104xf32> -> vector<208x104xf32>
    %c2_19 = arith.constant 2 : index
    %c0_20 = arith.constant 0 : index
    %c0_21 = arith.constant 0 : index
    %24 = vector.load %arg3[%c2_19, %c0_20, %c0_21] : memref<3x28x104xf32, #tpu.memory_space<vmem>>, vector<1x28x104xf32>
    %25 = vector.shape_cast %24 : vector<1x28x104xf32> to vector<28x104xf32>
    %cst_22 = arith.constant dense<0.000000e+00> : vector<208x104xf32>
    %26 = tpu.matmul %20, %25, %cst_22 {dimension_numbers = #tpu.dot_dimension_numbers<[1], [0], [0], [1], [0, 0, 1, 1], [], []>} : vector<208x28xf32>, vector<28x104xf32>, vector<208x104xf32> -> vector<208x104xf32>
    %27 = arith.addf %17, %23 : vector<208x104xf32>
    %28 = arith.addf %18, %26 : vector<208x104xf32>
    %29 = vector.shape_cast %27 : vector<208x104xf32> to vector<26x8x104xf32>
    %30 = vector.shape_cast %28 : vector<208x104xf32> to vector<26x8x104xf32>
    %31 = arith.maximumf %29, %30 : vector<26x8x104xf32>
    %32 = vector.shape_cast %31 : vector<26x8x104xf32> to vector<13x2x8x104xf32>
    %cst_23 = arith.constant dense<0xFF800000> : vector<13x8x104xf32>
    %33 = vector.multi_reduction <maximumf>, %32, %cst_23 [1] : vector<13x2x8x104xf32> to vector<13x8x104xf32>
    %c0_24 = arith.constant 0 : index
    %c0_25 = arith.constant 0 : index
    %34 = vector.load %arg4[%c0_24, %c0_25] : memref<1x104xf32, #tpu.memory_space<vmem>>, vector<1x104xf32>
    %35 = vector.shape_cast %34 : vector<1x104xf32> to vector<1x1x104xf32>
    %36 = vector.broadcast %35 : vector<1x1x104xf32> to vector<13x8x104xf32>
    %37 = arith.addf %33, %36 : vector<13x8x104xf32>
    %cst_26 = arith.constant 0.000000e+00 : f32
    %38 = vector.broadcast %cst_26 : f32 to vector<13x8x104xf32>
    %39 = arith.maximumf %37, %38 : vector<13x8x104xf32>
    %40 = vector.extract_strided_slice %39 {offsets = [0, 0, 0], sizes = [11, 8, 104], strides = [1, 1, 1]} : vector<13x8x104xf32> to vector<11x8x104xf32>
    %41 = vector.shape_cast %40 : vector<11x8x104xf32> to vector<88x104xf32>
    %c0_27 = arith.constant 0 : index
    %c0_28 = arith.constant 0 : index
    %c0_29 = arith.constant 0 : index
    %42 = vector.load %arg5[%c0_27, %c0_28, %c0_29] : memref<3x104x80xf32, #tpu.memory_space<vmem>>, vector<1x104x80xf32>
    %43 = vector.shape_cast %42 : vector<1x104x80xf32> to vector<104x80xf32>
    %cst_30 = arith.constant dense<0.000000e+00> : vector<88x80xf32>
    %44 = tpu.matmul %41, %43, %cst_30 {dimension_numbers = #tpu.dot_dimension_numbers<[1], [0], [0], [1], [0, 0, 1, 1], [], []>} : vector<88x104xf32>, vector<104x80xf32>, vector<88x80xf32> -> vector<88x80xf32>
    %c0_31 = arith.constant 0 : index
    %c0_32 = arith.constant 0 : index
    %c0_33 = arith.constant 0 : index
    %45 = vector.load %arg6[%c0_31, %c0_32, %c0_33] : memref<3x104x80xf32, #tpu.memory_space<vmem>>, vector<1x104x80xf32>
    %46 = vector.shape_cast %45 : vector<1x104x80xf32> to vector<104x80xf32>
    %cst_34 = arith.constant dense<0.000000e+00> : vector<88x80xf32>
    %47 = tpu.matmul %41, %46, %cst_34 {dimension_numbers = #tpu.dot_dimension_numbers<[1], [0], [0], [1], [0, 0, 1, 1], [], []>} : vector<88x104xf32>, vector<104x80xf32>, vector<88x80xf32> -> vector<88x80xf32>
    %48 = vector.extract_strided_slice %39 {offsets = [1, 0, 0], sizes = [11, 8, 104], strides = [1, 1, 1]} : vector<13x8x104xf32> to vector<11x8x104xf32>
    %49 = vector.shape_cast %48 : vector<11x8x104xf32> to vector<88x104xf32>
    %c1_35 = arith.constant 1 : index
    %c0_36 = arith.constant 0 : index
    %c0_37 = arith.constant 0 : index
    %50 = vector.load %arg5[%c1_35, %c0_36, %c0_37] : memref<3x104x80xf32, #tpu.memory_space<vmem>>, vector<1x104x80xf32>
    %51 = vector.shape_cast %50 : vector<1x104x80xf32> to vector<104x80xf32>
    %cst_38 = arith.constant dense<0.000000e+00> : vector<88x80xf32>
    %52 = tpu.matmul %49, %51, %cst_38 {dimension_numbers = #tpu.dot_dimension_numbers<[1], [0], [0], [1], [0, 0, 1, 1], [], []>} : vector<88x104xf32>, vector<104x80xf32>, vector<88x80xf32> -> vector<88x80xf32>
    %c1_39 = arith.constant 1 : index
    %c0_40 = arith.constant 0 : index
    %c0_41 = arith.constant 0 : index
    %53 = vector.load %arg6[%c1_39, %c0_40, %c0_41] : memref<3x104x80xf32, #tpu.memory_space<vmem>>, vector<1x104x80xf32>
    %54 = vector.shape_cast %53 : vector<1x104x80xf32> to vector<104x80xf32>
    %cst_42 = arith.constant dense<0.000000e+00> : vector<88x80xf32>
    %55 = tpu.matmul %49, %54, %cst_42 {dimension_numbers = #tpu.dot_dimension_numbers<[1], [0], [0], [1], [0, 0, 1, 1], [], []>} : vector<88x104xf32>, vector<104x80xf32>, vector<88x80xf32> -> vector<88x80xf32>
    %56 = arith.addf %44, %52 : vector<88x80xf32>
    %57 = arith.addf %47, %55 : vector<88x80xf32>
    %58 = vector.extract_strided_slice %39 {offsets = [2, 0, 0], sizes = [11, 8, 104], strides = [1, 1, 1]} : vector<13x8x104xf32> to vector<11x8x104xf32>
    %59 = vector.shape_cast %58 : vector<11x8x104xf32> to vector<88x104xf32>
    %c2_43 = arith.constant 2 : index
    %c0_44 = arith.constant 0 : index
    %c0_45 = arith.constant 0 : index
    %60 = vector.load %arg5[%c2_43, %c0_44, %c0_45] : memref<3x104x80xf32, #tpu.memory_space<vmem>>, vector<1x104x80xf32>
    %61 = vector.shape_cast %60 : vector<1x104x80xf32> to vector<104x80xf32>
    %cst_46 = arith.constant dense<0.000000e+00> : vector<88x80xf32>
    %62 = tpu.matmul %59, %61, %cst_46 {dimension_numbers = #tpu.dot_dimension_numbers<[1], [0], [0], [1], [0, 0, 1, 1], [], []>} : vector<88x104xf32>, vector<104x80xf32>, vector<88x80xf32> -> vector<88x80xf32>
    %c2_47 = arith.constant 2 : index
    %c0_48 = arith.constant 0 : index
    %c0_49 = arith.constant 0 : index
    %63 = vector.load %arg6[%c2_47, %c0_48, %c0_49] : memref<3x104x80xf32, #tpu.memory_space<vmem>>, vector<1x104x80xf32>
    %64 = vector.shape_cast %63 : vector<1x104x80xf32> to vector<104x80xf32>
    %cst_50 = arith.constant dense<0.000000e+00> : vector<88x80xf32>
    %65 = tpu.matmul %59, %64, %cst_50 {dimension_numbers = #tpu.dot_dimension_numbers<[1], [0], [0], [1], [0, 0, 1, 1], [], []>} : vector<88x104xf32>, vector<104x80xf32>, vector<88x80xf32> -> vector<88x80xf32>
    %66 = arith.addf %56, %62 : vector<88x80xf32>
    %67 = arith.addf %57, %65 : vector<88x80xf32>
    %68 = vector.shape_cast %66 : vector<88x80xf32> to vector<11x8x80xf32>
    %69 = vector.shape_cast %67 : vector<88x80xf32> to vector<11x8x80xf32>
    %70 = arith.maximumf %68, %69 : vector<11x8x80xf32>
    %71 = vector.extract_strided_slice %70 {offsets = [0, 0, 0], sizes = [10, 8, 80], strides = [1, 1, 1]} : vector<11x8x80xf32> to vector<10x8x80xf32>
    %72 = vector.shape_cast %71 : vector<10x8x80xf32> to vector<5x2x8x80xf32>
    %cst_51 = arith.constant dense<0xFF800000> : vector<5x8x80xf32>
    %73 = vector.multi_reduction <maximumf>, %72, %cst_51 [1] : vector<5x2x8x80xf32> to vector<5x8x80xf32>
    %c0_52 = arith.constant 0 : index
    %c0_53 = arith.constant 0 : index
    %74 = vector.load %arg7[%c0_52, %c0_53] : memref<1x80xf32, #tpu.memory_space<vmem>>, vector<1x80xf32>
    %75 = vector.shape_cast %74 : vector<1x80xf32> to vector<1x1x80xf32>
    %76 = vector.broadcast %75 : vector<1x1x80xf32> to vector<5x8x80xf32>
    %77 = arith.addf %73, %76 : vector<5x8x80xf32>
    %cst_54 = arith.constant 0.000000e+00 : f32
    %78 = vector.broadcast %cst_54 : f32 to vector<5x8x80xf32>
    %79 = arith.maximumf %77, %78 : vector<5x8x80xf32>
    %80 = vector.extract_strided_slice %79 {offsets = [0, 0, 0], sizes = [3, 8, 80], strides = [1, 1, 1]} : vector<5x8x80xf32> to vector<3x8x80xf32>
    %81 = vector.shape_cast %80 : vector<3x8x80xf32> to vector<24x80xf32>
    %c0_55 = arith.constant 0 : index
    %c0_56 = arith.constant 0 : index
    %c0_57 = arith.constant 0 : index
    %82 = vector.load %arg8[%c0_55, %c0_56, %c0_57] : memref<3x80x192xf32, #tpu.memory_space<vmem>>, vector<1x80x192xf32>
    %83 = vector.shape_cast %82 : vector<1x80x192xf32> to vector<80x192xf32>
    %cst_58 = arith.constant dense<0.000000e+00> : vector<24x192xf32>
    %84 = tpu.matmul %81, %83, %cst_58 {dimension_numbers = #tpu.dot_dimension_numbers<[1], [0], [0], [1], [0, 0, 1, 1], [], []>} : vector<24x80xf32>, vector<80x192xf32>, vector<24x192xf32> -> vector<24x192xf32>
    %85 = vector.extract_strided_slice %79 {offsets = [1, 0, 0], sizes = [3, 8, 80], strides = [1, 1, 1]} : vector<5x8x80xf32> to vector<3x8x80xf32>
    %86 = vector.shape_cast %85 : vector<3x8x80xf32> to vector<24x80xf32>
    %c1_59 = arith.constant 1 : index
    %c0_60 = arith.constant 0 : index
    %c0_61 = arith.constant 0 : index
    %87 = vector.load %arg8[%c1_59, %c0_60, %c0_61] : memref<3x80x192xf32, #tpu.memory_space<vmem>>, vector<1x80x192xf32>
    %88 = vector.shape_cast %87 : vector<1x80x192xf32> to vector<80x192xf32>
    %cst_62 = arith.constant dense<0.000000e+00> : vector<24x192xf32>
    %89 = tpu.matmul %86, %88, %cst_62 {dimension_numbers = #tpu.dot_dimension_numbers<[1], [0], [0], [1], [0, 0, 1, 1], [], []>} : vector<24x80xf32>, vector<80x192xf32>, vector<24x192xf32> -> vector<24x192xf32>
    %90 = arith.addf %84, %89 : vector<24x192xf32>
    %91 = vector.extract_strided_slice %79 {offsets = [2, 0, 0], sizes = [3, 8, 80], strides = [1, 1, 1]} : vector<5x8x80xf32> to vector<3x8x80xf32>
    %92 = vector.shape_cast %91 : vector<3x8x80xf32> to vector<24x80xf32>
    %c2_63 = arith.constant 2 : index
    %c0_64 = arith.constant 0 : index
    %c0_65 = arith.constant 0 : index
    %93 = vector.load %arg8[%c2_63, %c0_64, %c0_65] : memref<3x80x192xf32, #tpu.memory_space<vmem>>, vector<1x80x192xf32>
    %94 = vector.shape_cast %93 : vector<1x80x192xf32> to vector<80x192xf32>
    %cst_66 = arith.constant dense<0.000000e+00> : vector<24x192xf32>
    %95 = tpu.matmul %92, %94, %cst_66 {dimension_numbers = #tpu.dot_dimension_numbers<[1], [0], [0], [1], [0, 0, 1, 1], [], []>} : vector<24x80xf32>, vector<80x192xf32>, vector<24x192xf32> -> vector<24x192xf32>
    %96 = arith.addf %90, %95 : vector<24x192xf32>
    %97 = vector.shape_cast %96 : vector<24x192xf32> to vector<3x8x192xf32>
    %c0_67 = arith.constant 0 : index
    %c0_68 = arith.constant 0 : index
    %98 = vector.load %arg9[%c0_67, %c0_68] : memref<1x192xf32, #tpu.memory_space<vmem>>, vector<1x192xf32>
    %99 = vector.shape_cast %98 : vector<1x192xf32> to vector<1x1x192xf32>
    %100 = vector.broadcast %99 : vector<1x1x192xf32> to vector<3x8x192xf32>
    %101 = arith.addf %97, %100 : vector<3x8x192xf32>
    %cst_69 = arith.constant 0.000000e+00 : f32
    %102 = vector.broadcast %cst_69 : f32 to vector<3x8x192xf32>
    %103 = arith.maximumf %101, %102 : vector<3x8x192xf32>
    %104 = vector.extract_strided_slice %103 {offsets = [0, 0, 0], sizes = [1, 8, 192], strides = [1, 1, 1]} : vector<3x8x192xf32> to vector<1x8x192xf32>
    %105 = vector.shape_cast %104 : vector<1x8x192xf32> to vector<8x192xf32>
    %c0_70 = arith.constant 0 : index
    %c0_71 = arith.constant 0 : index
    %c0_72 = arith.constant 0 : index
    %106 = vector.load %arg10[%c0_70, %c0_71, %c0_72] : memref<3x192x32xf32, #tpu.memory_space<vmem>>, vector<1x192x32xf32>
    %107 = vector.shape_cast %106 : vector<1x192x32xf32> to vector<192x32xf32>
    %cst_73 = arith.constant dense<0.000000e+00> : vector<8x32xf32>
    %108 = tpu.matmul %105, %107, %cst_73 {dimension_numbers = #tpu.dot_dimension_numbers<[1], [0], [0], [1], [0, 0, 1, 1], [], []>} : vector<8x192xf32>, vector<192x32xf32>, vector<8x32xf32> -> vector<8x32xf32>
    %109 = vector.extract_strided_slice %103 {offsets = [1, 0, 0], sizes = [1, 8, 192], strides = [1, 1, 1]} : vector<3x8x192xf32> to vector<1x8x192xf32>
    %110 = vector.shape_cast %109 : vector<1x8x192xf32> to vector<8x192xf32>
    %c1_74 = arith.constant 1 : index
    %c0_75 = arith.constant 0 : index
    %c0_76 = arith.constant 0 : index
    %111 = vector.load %arg10[%c1_74, %c0_75, %c0_76] : memref<3x192x32xf32, #tpu.memory_space<vmem>>, vector<1x192x32xf32>
    %112 = vector.shape_cast %111 : vector<1x192x32xf32> to vector<192x32xf32>
    %cst_77 = arith.constant dense<0.000000e+00> : vector<8x32xf32>
    %113 = tpu.matmul %110, %112, %cst_77 {dimension_numbers = #tpu.dot_dimension_numbers<[1], [0], [0], [1], [0, 0, 1, 1], [], []>} : vector<8x192xf32>, vector<192x32xf32>, vector<8x32xf32> -> vector<8x32xf32>
    %114 = arith.addf %108, %113 : vector<8x32xf32>
    %115 = vector.extract_strided_slice %103 {offsets = [2, 0, 0], sizes = [1, 8, 192], strides = [1, 1, 1]} : vector<3x8x192xf32> to vector<1x8x192xf32>
    %116 = vector.shape_cast %115 : vector<1x8x192xf32> to vector<8x192xf32>
    %c2_78 = arith.constant 2 : index
    %c0_79 = arith.constant 0 : index
    %c0_80 = arith.constant 0 : index
    %117 = vector.load %arg10[%c2_78, %c0_79, %c0_80] : memref<3x192x32xf32, #tpu.memory_space<vmem>>, vector<1x192x32xf32>
    %118 = vector.shape_cast %117 : vector<1x192x32xf32> to vector<192x32xf32>
    %cst_81 = arith.constant dense<0.000000e+00> : vector<8x32xf32>
    %119 = tpu.matmul %116, %118, %cst_81 {dimension_numbers = #tpu.dot_dimension_numbers<[1], [0], [0], [1], [0, 0, 1, 1], [], []>} : vector<8x192xf32>, vector<192x32xf32>, vector<8x32xf32> -> vector<8x32xf32>
    %120 = arith.addf %114, %119 : vector<8x32xf32>
    %c0_82 = arith.constant 0 : index
    %c0_83 = arith.constant 0 : index
    %121 = vector.load %arg11[%c0_82, %c0_83] : memref<1x32xf32, #tpu.memory_space<vmem>>, vector<1x32xf32>
    %122 = vector.broadcast %121 : vector<1x32xf32> to vector<8x32xf32>
    %123 = arith.addf %120, %122 : vector<8x32xf32>
    %cst_84 = arith.constant 0.000000e+00 : f32
    %124 = vector.broadcast %cst_84 : f32 to vector<8x32xf32>
    %125 = arith.maximumf %123, %124 : vector<8x32xf32>
    %c0_85 = arith.constant 0 : index
    %c0_86 = arith.constant 0 : index
    %126 = vector.load %arg12[%c0_85, %c0_86] : memref<32x128xf32, #tpu.memory_space<vmem>>, vector<32x128xf32>
    %cst_87 = arith.constant dense<0.000000e+00> : vector<8x128xf32>
    %127 = tpu.matmul %125, %126, %cst_87 {dimension_numbers = #tpu.dot_dimension_numbers<[1], [0], [0], [1], [0, 0, 1, 1], [], []>} : vector<8x32xf32>, vector<32x128xf32>, vector<8x128xf32> -> vector<8x128xf32>
    %c0_88 = arith.constant 0 : index
    %c0_89 = arith.constant 0 : index
    %128 = vector.load %arg13[%c0_88, %c0_89] : memref<1x128xf32, #tpu.memory_space<vmem>>, vector<1x128xf32>
    %129 = vector.broadcast %128 : vector<1x128xf32> to vector<8x128xf32>
    %130 = arith.addf %127, %129 : vector<8x128xf32>
    %cst_90 = arith.constant dense<0xFF800000> : vector<8xf32>
    %131 = vector.multi_reduction <maximumf>, %130, %cst_90 [1] : vector<8x128xf32> to vector<8xf32>
    %132 = vector.shape_cast %131 : vector<8xf32> to vector<8x1xf32>
    %133 = vector.broadcast %132 : vector<8x1xf32> to vector<8x128xf32>
    %134 = arith.subf %130, %133 : vector<8x128xf32>
    %135 = math.exp %134 : vector<8x128xf32>
    %cst_91 = arith.constant dense<0.000000e+00> : vector<8xf32>
    %136 = vector.multi_reduction <add>, %135, %cst_91 [1] : vector<8x128xf32> to vector<8xf32>
    %137 = vector.shape_cast %136 : vector<8xf32> to vector<8x1xf32>
    %138 = vector.broadcast %137 : vector<8x1xf32> to vector<8x128xf32>
    %139 = arith.divf %135, %138 : vector<8x128xf32>
    %c0_92 = arith.constant 0 : index
    %c0_93 = arith.constant 0 : index
    %140 = vector.load %arg14[%c0_92, %c0_93] : memref<8x128xf32, #tpu.memory_space<vmem>>, vector<8x128xf32>
    tpu.vector_store %arg14[%c0_92, %c0_93], %139 {strides = array<i32>} : memref<8x128xf32, #tpu.memory_space<vmem>>, vector<8x128xf32>,
    return
  }
  func.func @transform_0(%arg0: i32) -> (i32, i32, i32) {
    %c0_i32 = arith.constant 0 : i32
    %c0_i32_0 = arith.constant 0 : i32
    %c0_i32_1 = arith.constant 0 : i32
    return %c0_i32, %arg0, %c0_i32_0 : i32, i32, i32
  }
  func.func @transform_1(%arg0: i32) -> (i32, i32, i32) {
    %c0_i32 = arith.constant 0 : i32
    %c0_i32_0 = arith.constant 0 : i32
    %c0_i32_1 = arith.constant 0 : i32
    %c0_i32_2 = arith.constant 0 : i32
    return %c0_i32, %c0_i32_0, %c0_i32_1 : i32, i32, i32
  }
  func.func @transform_2(%arg0: i32) -> (i32, i32, i32) {
    %c0_i32 = arith.constant 0 : i32
    %c0_i32_0 = arith.constant 0 : i32
    %c0_i32_1 = arith.constant 0 : i32
    %c0_i32_2 = arith.constant 0 : i32
    return %c0_i32, %c0_i32_0, %c0_i32_1 : i32, i32, i32
  }
  func.func @transform_3(%arg0: i32) -> (i32, i32) {
    %c0_i32 = arith.constant 0 : i32
    %c0_i32_0 = arith.constant 0 : i32
    %c0_i32_1 = arith.constant 0 : i32
    return %c0_i32, %c0_i32_0 : i32, i32
  }
  func.func @transform_4(%arg0: i32) -> (i32, i32, i32) {
    %c0_i32 = arith.constant 0 : i32
    %c0_i32_0 = arith.constant 0 : i32
    %c0_i32_1 = arith.constant 0 : i32
    %c0_i32_2 = arith.constant 0 : i32
    return %c0_i32, %c0_i32_0, %c0_i32_1 : i32, i32, i32
  }
  func.func @transform_5(%arg0: i32) -> (i32, i32, i32) {
    %c0_i32 = arith.constant 0 : i32
    %c0_i32_0 = arith.constant 0 : i32
    %c0_i32_1 = arith.constant 0 : i32
    %c0_i32_2 = arith.constant 0 : i32
    return %c0_i32, %c0_i32_0, %c0_i32_1 : i32, i32, i32
  }
  func.func @transform_6(%arg0: i32) -> (i32, i32) {
    %c0_i32 = arith.constant 0 : i32
    %c0_i32_0 = arith.constant 0 : i32
    %c0_i32_1 = arith.constant 0 : i32
    return %c0_i32, %c0_i32_0 : i32, i32
  }
  func.func @transform_7(%arg0: i32) -> (i32, i32, i32) {
    %c0_i32 = arith.constant 0 : i32
    %c0_i32_0 = arith.constant 0 : i32
    %c0_i32_1 = arith.constant 0 : i32
    %c0_i32_2 = arith.constant 0 : i32
    return %c0_i32, %c0_i32_0, %c0_i32_1 : i32, i32, i32
  }
  func.func @transform_8(%arg0: i32) -> (i32, i32) {
    %c0_i32 = arith.constant 0 : i32
    %c0_i32_0 = arith.constant 0 : i32
    %c0_i32_1 = arith.constant 0 : i32
    return %c0_i32, %c0_i32_0 : i32, i32
  }
  func.func @transform_9(%arg0: i32) -> (i32, i32, i32) {
    %c0_i32 = arith.constant 0 : i32
    %c0_i32_0 = arith.constant 0 : i32
    %c0_i32_1 = arith.constant 0 : i32
    %c0_i32_2 = arith.constant 0 : i32
    return %c0_i32, %c0_i32_0, %c0_i32_1 : i32, i32, i32
  }
  func.func @transform_10(%arg0: i32) -> (i32, i32) {
    %c0_i32 = arith.constant 0 : i32
    %c0_i32_0 = arith.constant 0 : i32
    %c0_i32_1 = arith.constant 0 : i32
    return %c0_i32, %c0_i32_0 : i32, i32
  }
  func.func @transform_11(%arg0: i32) -> (i32, i32) {
    %c0_i32 = arith.constant 0 : i32
    %c0_i32_0 = arith.constant 0 : i32
    %c0_i32_1 = arith.constant 0 : i32
    return %c0_i32, %c0_i32_0 : i32, i32
  }
  func.func @transform_12(%arg0: i32) -> (i32, i32) {
    %c0_i32 = arith.constant 0 : i32
    %c0_i32_0 = arith.constant 0 : i32
    %c0_i32_1 = arith.constant 0 : i32
    return %c0_i32, %c0_i32_0 : i32, i32
  }
  func.func @transform_13(%arg0: i32) -> (i32, i32) {
    %c0_i32 = arith.constant 0 : i32
    %c0_i32_0 = arith.constant 0 : i32
    return %arg0, %c0_i32 : i32, i32
  }
}

</mosaic_0001>

<llo_original>
// kernel: tile.18
$region0: #{tile.18}
  #allocation0 [shape = 's32[1]{0}', space=sflag, size = 0x4, scoped, tag = 'scoped memory for tile.18']
  %s0 = inlined_call_operand.vmem [shape: f32[8], index: 0, kind: input, shape index: {}]
  %s1 = inlined_call_operand.vmem [shape: f32[13,8], index: 1, kind: output, shape index: {}]
  // Predicated region
  $region2: #{tile.18} parent=0 // pred_check
    _
  $region3: #{tile.18} parent=0 // pred_check_branch
    %3 = sbr.rel (0) target = $region5
  $region4: #{tile.18} parent=0 // pred_region
    _
  $region5: #{tile.18} parent=0 // pred_fallthru
    _
  %v4 = vld [vmem:[%s0] ss:$0 sm:$0xff]
  %5 = vst [vmem:[%s1] sm:$0xff] %v4
  %s6 = scalar_lea.vmem %s1, 8
  %7 = vst [vmem:[%s6] sm:$0xff] %v4

// kernel: tile.19
$region0: #{tile.19}
  %s0 = inlined_call_operand.vmem [shape: f32[13,8], index: 0, kind: input, shape index: {}]
  %s1 = inlined_call_operand.vmem [shape: f32[1,104], index: 1, kind: output, shape index: {}]
  $region1: #{tile.19} parent=0
    #allocation0 [shape = 'u8[4096]{0}', space=vmem, size = 0x1000, scoped, tag = 'scoped mem for output reshape']
    %v2 = vld [vmem:[%s0] sm:$0x1]
    %vm3 = vcmask 64512
    %4 = vst.msk [vmem:[#allocation0] sm:$0x1] %vm3, %v2
    %s5 = scalar_lea.vmem %s0, 12
    %v6 = vld [vmem:[%s5] sm:$0x1]
    %7 = vrot.lane.b32.xlu0 %v6, 96
    %v8 = vpop.permute.xlu0 %7
    %vm9 = vcmask 851712
    %10 = vst.msk [vmem:[#allocation0] sm:$0x1] %vm9, %v8
    %s11 = scalar_lea.vmem %s0, 11
    %v12 = vld [vmem:[%s11] sm:$0x1]
    %13 = vrot.lane.b32.xlu0 %v12, 88
    %v14 = vpop.permute.xlu0 %13
    %vm15 = vcmask 786112
    %16 = vst.msk [vmem:[#allocation0] sm:$0x1] %vm15, %v14
    %s17 = scalar_lea.vmem %s0, 10
    %v18 = vld [vmem:[%s17] sm:$0x1]
    %19 = vrot.lane.b32.xlu0 %v18, 80
    %v20 = vpop.permute.xlu0 %19
    %vm21 = vcmask 720512
    %22 = vst.msk [vmem:[#allocation0] sm:$0x1] %vm21, %v20
    %s23 = scalar_lea.vmem %s0, 9
    %v24 = vld [vmem:[%s23] sm:$0x1]
    %25 = vrot.lane.b32.xlu0 %v24, 72
    %v26 = vpop.permute.xlu0 %25
    %vm27 = vcmask 654912
    %28 = vst.msk [vmem:[#allocation0] sm:$0x1] %vm27, %v26
    %s29 = scalar_lea.vmem %s0, 8
    %v30 = vld [vmem:[%s29] sm:$0x1]
    %31 = vrot.lane.b32.xlu0 %v30, 64
    %v32 = vpop.permute.xlu0 %31
    %vm33 = vcmask 589312
    %34 = vst.msk [vmem:[#allocation0] sm:$0x1] %vm33, %v32
    %s35 = scalar_lea.vmem %s0, 7
    %v36 = vld [vmem:[%s35] sm:$0x1]
    %37 = vrot.lane.b32.xlu0 %v36, 56
    %v38 = vpop.permute.xlu0 %37
    %vm39 = vcmask 523712
    %40 = vst.msk [vmem:[#allocation0] sm:$0x1] %vm39, %v38
    %s41 = scalar_lea.vmem %s0, 6
    %v42 = vld [vmem:[%s41] sm:$0x1]
    %43 = vrot.lane.b32.xlu0 %v42, 48
    %v44 = vpop.permute.xlu0 %43
    %vm45 = vcmask 458112
    %46 = vst.msk [vmem:[#allocation0] sm:$0x1] %vm45, %v44
    %s47 = scalar_lea.vmem %s0, 5
    %v48 = vld [vmem:[%s47] sm:$0x1]
    %49 = vrot.lane.b32.xlu0 %v48, 40
    %v50 = vpop.permute.xlu0 %49
    %vm51 = vcmask 392512
    %52 = vst.msk [vmem:[#allocation0] sm:$0x1] %vm51, %v50
    %s53 = scalar_lea.vmem %s0, 4
    %v54 = vld [vmem:[%s53] sm:$0x1]
    %55 = vrot.lane.b32.xlu0 %v54, 32
    %v56 = vpop.permute.xlu0 %55
    %vm57 = vcmask 326912
    %58 = vst.msk [vmem:[#allocation0] sm:$0x1] %vm57, %v56
    %s59 = scalar_lea.vmem %s0, 3
    %v60 = vld [vmem:[%s59] sm:$0x1]
    %61 = vrot.lane.b32.xlu0 %v60, 24
    %v62 = vpop.permute.xlu0 %61
    %vm63 = vcmask 261312
    %64 = vst.msk [vmem:[#allocation0] sm:$0x1] %vm63, %v62
    %s65 = scalar_lea.vmem %s0, 2
    %v66 = vld [vmem:[%s65] sm:$0x1]
    %67 = vrot.lane.b32.xlu0 %v66, 16
    %v68 = vpop.permute.xlu0 %67
    %vm69 = vcmask 195712
    %70 = vst.msk [vmem:[#allocation0] sm:$0x1] %vm69, %v68
    %s71 = scalar_lea.vmem %s0, 1
    %v72 = vld [vmem:[%s71] sm:$0x1]
    %73 = vrot.lane.b32.xlu0 %v72, 8
    %v74 = vpop.permute.xlu0 %73
    %vm75 = vcmask 130112
    %76 = vst.msk [vmem:[#allocation0] sm:$0x1] %vm75, %v74
    %s78 = sshllo.u32 0, 1
    %v80 = vld [vmem:[#allocation0] sm:%s78]
    %s81 = sshllo.u32 0, 1
    %82 = vst [vmem:[%s1] sm:%s81] %v80

// kernel: tile.23
$region0: #{tile.23}
  #allocation0 [shape = 's32[1]{0}', space=sflag, size = 0x4, scoped, tag = 'scoped memory for tile.23']
  %s0 = inlined_call_operand.vmem [shape: f32[16], index: 0, kind: input, shape index: {}]
  %s1 = inlined_call_operand.vmem [shape: f32[5,16], index: 1, kind: output, shape index: {}]
  // Predicated region
  $region2: #{tile.23} parent=0 // pred_check
    _
  $region3: #{tile.23} parent=0 // pred_check_branch
    %3 = sbr.rel (0) target = $region5
  $region4: #{tile.23} parent=0 // pred_region
    _
  $region5: #{tile.23} parent=0 // pred_fallthru
    _
  %v4 = vld [vmem:[%s0] ss:$0 sm:$0xff]
  %5 = vst [vmem:[%s1] sm:$0xff] %v4

// kernel: tile.28
$region0: #{tile.28}
  #allocation0 [shape = 's32[1]{0}', space=sflag, size = 0x4, scoped, tag = 'scoped memory for tile.28']
  %s0 = inlined_call_operand.vmem [shape: f32[64], index: 0, kind: input, shape index: {}]
  %s1 = inlined_call_operand.vmem [shape: f32[3,64], index: 1, kind: output, shape index: {}]
  // Predicated region
  $region2: #{tile.28} parent=0 // pred_check
    _
  $region3: #{tile.28} parent=0 // pred_check_branch
    %3 = sbr.rel (0) target = $region5
  $region4: #{tile.28} parent=0 // pred_region
    _
  $region5: #{tile.28} parent=0 // pred_fallthru
    _
  %v4 = vld [vmem:[%s0] ss:$0 sm:$0xff]
  %5 = vst [vmem:[%s1] sm:$0xf] %v4

// kernel: tile.24
$region0: #{tile.24}
  %s0 = inlined_call_operand.vmem [shape: f32[5,16], index: 0, kind: input, shape index: {}]
  %s1 = inlined_call_operand.vmem [shape: f32[1,80], index: 1, kind: output, shape index: {}]
  $region1: #{tile.24} parent=0
    #allocation0 [shape = 'u8[4096]{0}', space=vmem, size = 0x1000, scoped, tag = 'scoped mem for output reshape']
    %v2 = vld [vmem:[%s0] sm:$0x1]
    %vm3 = vcmask 130048
    %4 = vst.msk [vmem:[#allocation0] sm:$0x1] %vm3, %v2
    %s5 = scalar_lea.vmem %s0, 4
    %v6 = vld [vmem:[%s5] sm:$0x1]
    %7 = vrot.lane.b32.xlu0 %v6, 64
    %v8 = vpop.permute.xlu0 %7
    %vm9 = vcmask 654848
    %10 = vst.msk [vmem:[#allocation0] sm:$0x1] %vm9, %v8
    %s11 = scalar_lea.vmem %s0, 3
    %v12 = vld [vmem:[%s11] sm:$0x1]
    %13 = vrot.lane.b32.xlu0 %v12, 48
    %v14 = vpop.permute.xlu0 %13
    %vm15 = vcmask 523648
    %16 = vst.msk [vmem:[#allocation0] sm:$0x1] %vm15, %v14
    %s17 = scalar_lea.vmem %s0, 2
    %v18 = vld [vmem:[%s17] sm:$0x1]
    %19 = vrot.lane.b32.xlu0 %v18, 32
    %v20 = vpop.permute.xlu0 %19
    %vm21 = vcmask 392448
    %22 = vst.msk [vmem:[#allocation0] sm:$0x1] %vm21, %v20
    %s23 = scalar_lea.vmem %s0, 1
    %v24 = vld [vmem:[%s23] sm:$0x1]
    %25 = vrot.lane.b32.xlu0 %v24, 16
    %v26 = vpop.permute.xlu0 %25
    %vm27 = vcmask 261248
    %28 = vst.msk [vmem:[#allocation0] sm:$0x1] %vm27, %v26
    %s30 = sshllo.u32 0, 1
    %v32 = vld [vmem:[#allocation0] sm:%s30]
    %s33 = sshllo.u32 0, 1
    %34 = vst [vmem:[%s1] sm:%s33] %v32

// kernel: tile.29
$region0: #{tile.29}
  %s0 = inlined_call_operand.vmem [shape: f32[3,64], index: 0, kind: input, shape index: {}]
  %s1 = inlined_call_operand.vmem [shape: f32[1,192], index: 1, kind: output, shape index: {}]
  $region1: #{tile.29} parent=0
    #allocation0 [shape = 'u8[8192]{0}', space=vmem, size = 0x2000, scoped, tag = 'scoped mem for output reshape']
    #allocation1 [shape = 'u8[4096]{0}', space=vmem, size = 0x1000, scoped, tag = 'scoped mem for input reshape']
    %s3 = sshllo.u32 0, 4
    %v4 = vld [vmem:[%s0] sm:%s3]
    %5 = vst [vmem:[#allocation1] sm:%s3] %v4
    %s6 = smov 3
    %v7 = vld [vmem:[#allocation1] ss:$2 sm:%s6]
    %vm8 = vcmask 523264
    %9 = vst.msk [vmem:[#allocation0] ss:$8 sm:$0x3] %vm8, %v7
    %s10 = scalar_lea.vmem [#allocation1], 1
    %v11 = vld [vmem:[%s10] sm:$0x1]
    %12 = vrot.lane.b32.xlu0 %v11, 64
    %v13 = vpop.permute.xlu0 %12
    %vm14 = vcmask 1048064
    %15 = vst.msk [vmem:[#allocation0] sm:$0x1] %vm14, %v13
    %s17 = sshllo.u32 0, 1
    %v19 = vld [vmem:[#allocation0] sm:%s17]
    %s20 = sshllo.u32 0, 1
    %21 = vst [vmem:[%s1] sm:%s20] %v19
    %s22 = scalar_lea.vmem [#allocation0], 8
    %v23 = vld [vmem:[%s22] sm:%s17]
    %s24 = sshllo.u32 0, 1
    %s25 = scalar_lea.vmem %s1, 1
    %26 = vst [vmem:[%s25] sm:%s24] %v23

// kernel: trainer_net_forward.1
$region0: #{trainer_net_forward.1}
  #allocation0 [shape = 'u32[]', space=smem, size = 0x4, offset = 0x4, fixed_abs, tag = 'smem constant byte address 0x4 - core index']
  #allocation1 [shape = 'u32[144,128]{1,0:T(1,128)}', space=vmem, size = 0x12000, scoped, tag = 'internal scratch']
  %s0 = inlined_call_operand.vmem [shape: f32[28,8,28], index: 0, kind: input, shape index: {}]
  %s1 = inlined_call_operand.vmem [shape: f32[3,28,104], index: 1, kind: input, shape index: {}]
  %s2 = inlined_call_operand.vmem [shape: f32[3,28,104], index: 2, kind: input, shape index: {}]
  %s3 = inlined_call_operand.vmem [shape: f32[1,104], index: 3, kind: input, shape index: {}]
  %s4 = inlined_call_operand.vmem [shape: f32[3,104,80], index: 4, kind: input, shape index: {}]
  %s5 = inlined_call_operand.vmem [shape: f32[3,104,80], index: 5, kind: input, shape index: {}]
  %s6 = inlined_call_operand.vmem [shape: f32[1,80], index: 6, kind: input, shape index: {}]
  %s7 = inlined_call_operand.vmem [shape: f32[3,80,192], index: 7, kind: input, shape index: {}]
  %s8 = inlined_call_operand.vmem [shape: f32[1,192], index: 8, kind: input, shape index: {}]
  %s9 = inlined_call_operand.vmem [shape: f32[3,192,32], index: 9, kind: input, shape index: {}]
  %s10 = inlined_call_operand.vmem [shape: f32[1,32], index: 10, kind: input, shape index: {}]
  %s11 = inlined_call_operand.vmem [shape: f32[32,128], index: 11, kind: input, shape index: {}]
  %s12 = inlined_call_operand.vmem [shape: f32[1,128], index: 12, kind: input, shape index: {}]
  %s13 = inlined_call_operand.vmem [shape: f32[8,128], index: 13, kind: output, shape index: {}]
  %s14 = sld [smem:[#allocation0]]
  $region62: #{trainer_net_forward.1} parent=0
    _
  %s16 = ssub.s32 1, %s14
  %s17 = scalar_select 0, %s16, %s14
  // Predicated region
  $region2: #{trainer_net_forward.1} parent=0 // pred_check
    _
  $region3: #{trainer_net_forward.1} parent=0 // pred_check_branch
    %19 = sbr.rel (0) target = $region5
  $region4: #{trainer_net_forward.1} parent=0 // pred_region
    _
  $region5: #{trainer_net_forward.1} parent=0 // pred_fallthru
    _
  // Predicated region
  $region6: #{trainer_net_forward.1} parent=0 // pred_check
    _
  $region7: #{trainer_net_forward.1} parent=0 // pred_check_branch
    %21 = sbr.rel (0) target = $region9
  $region8: #{trainer_net_forward.1} parent=0 // pred_region
    _
  $region9: #{trainer_net_forward.1} parent=0 // pred_fallthru
    _
  // Predicated region
  $region10: #{trainer_net_forward.1} parent=0 // pred_check
    _
  $region11: #{trainer_net_forward.1} parent=0 // pred_check_branch
    %23 = sbr.rel (0) target = $region13
  $region12: #{trainer_net_forward.1} parent=0 // pred_region
    _
  $region13: #{trainer_net_forward.1} parent=0 // pred_fallthru
    _
  // Predicated region
  $region14: #{trainer_net_forward.1} parent=0 // pred_check
    _
  $region15: #{trainer_net_forward.1} parent=0 // pred_check_branch
    %25 = sbr.rel (0) target = $region17
  $region16: #{trainer_net_forward.1} parent=0 // pred_region
    _
  $region17: #{trainer_net_forward.1} parent=0 // pred_fallthru
    _
  // Predicated region
  $region18: #{trainer_net_forward.1} parent=0 // pred_check
    _
  $region19: #{trainer_net_forward.1} parent=0 // pred_check_branch
    %27 = sbr.rel (0) target = $region21
  $region20: #{trainer_net_forward.1} parent=0 // pred_region
    _
  $region21: #{trainer_net_forward.1} parent=0 // pred_fallthru
    _
  // Predicated region
  $region22: #{trainer_net_forward.1} parent=0 // pred_check
    _
  $region23: #{trainer_net_forward.1} parent=0 // pred_check_branch
    %29 = sbr.rel (0) target = $region25
  $region24: #{trainer_net_forward.1} parent=0 // pred_region
    _
  $region25: #{trainer_net_forward.1} parent=0 // pred_fallthru
    _
  // Predicated region
  $region26: #{trainer_net_forward.1} parent=0 // pred_check
    _
  $region27: #{trainer_net_forward.1} parent=0 // pred_check_branch
    %31 = sbr.rel (0) target = $region29
  $region28: #{trainer_net_forward.1} parent=0 // pred_region
    _
  $region29: #{trainer_net_forward.1} parent=0 // pred_fallthru
    _
  // Predicated region
  $region30: #{trainer_net_forward.1} parent=0 // pred_check
    _
  $region31: #{trainer_net_forward.1} parent=0 // pred_check_branch
    %33 = sbr.rel (0) target = $region33
  $region32: #{trainer_net_forward.1} parent=0 // pred_region
    _
  $region33: #{trainer_net_forward.1} parent=0 // pred_fallthru
    _
  // Predicated region
  $region34: #{trainer_net_forward.1} parent=0 // pred_check
    _
  $region35: #{trainer_net_forward.1} parent=0 // pred_check_branch
    %35 = sbr.rel (0) target = $region37
  $region36: #{trainer_net_forward.1} parent=0 // pred_region
    _
  $region37: #{trainer_net_forward.1} parent=0 // pred_fallthru
    _
  // Predicated region
  $region38: #{trainer_net_forward.1} parent=0 // pred_check
    _
  $region39: #{trainer_net_forward.1} parent=0 // pred_check_branch
    %37 = sbr.rel (0) target = $region41
  $region40: #{trainer_net_forward.1} parent=0 // pred_region
    _
  $region41: #{trainer_net_forward.1} parent=0 // pred_fallthru
    _
  // Predicated region
  $region42: #{trainer_net_forward.1} parent=0 // pred_check
    _
  $region43: #{trainer_net_forward.1} parent=0 // pred_check_branch
    %39 = sbr.rel (0) target = $region45
  $region44: #{trainer_net_forward.1} parent=0 // pred_region
    _
  $region45: #{trainer_net_forward.1} parent=0 // pred_fallthru
    _
  // Predicated region
  $region46: #{trainer_net_forward.1} parent=0 // pred_check
    _
  $region47: #{trainer_net_forward.1} parent=0 // pred_check_branch
    %41 = sbr.rel (0) target = $region49
  $region48: #{trainer_net_forward.1} parent=0 // pred_region
    _
  $region49: #{trainer_net_forward.1} parent=0 // pred_fallthru
    _
  // Predicated region
  $region50: #{trainer_net_forward.1} parent=0 // pred_check
    _
  $region51: #{trainer_net_forward.1} parent=0 // pred_check_branch
    %43 = sbr.rel (0) target = $region53
  $region52: #{trainer_net_forward.1} parent=0 // pred_region
    _
  $region53: #{trainer_net_forward.1} parent=0 // pred_fallthru
    _
  %v44 = vld [vmem:[%s0] sm:$0xff]
  %v45 = vld [vmem:[%s0 + $0x8] sm:$0xff]
  %v46 = vld [vmem:[%s0 + $0x10] sm:$0xff]
  %v47 = vld [vmem:[%s0 + $0x18] sm:$0xff]
  %v48 = vld [vmem:[%s0 + $0x20] sm:$0xff]
  %v49 = vld [vmem:[%s0 + $0x28] sm:$0xff]
  %v50 = vld [vmem:[%s0 + $0x30] sm:$0xff]
  %v51 = vld [vmem:[%s0 + $0x38] sm:$0xff]
  %v52 = vld [vmem:[%s0 + $0x40] sm:$0xff]
  %v53 = vld [vmem:[%s0 + $0x48] sm:$0xff]
  %v54 = vld [vmem:[%s0 + $0x50] sm:$0xff]
  %v55 = vld [vmem:[%s0 + $0x58] sm:$0xff]
  %v56 = vld [vmem:[%s0 + $0x60] sm:$0xff]
  %v57 = vld [vmem:[%s0 + $0x68] sm:$0xff]
  %v58 = vld [vmem:[%s0 + $0x70] sm:$0xff]
  %v59 = vld [vmem:[%s0 + $0x78] sm:$0xff]
  %v60 = vld [vmem:[%s0 + $0x80] sm:$0xff]
  %v61 = vld [vmem:[%s0 + $0x88] sm:$0xff]
  %v62 = vld [vmem:[%s0 + $0x90] sm:$0xff]
  %v63 = vld [vmem:[%s0 + $0x98] sm:$0xff]
  %v64 = vld [vmem:[%s0 + $0xa0] sm:$0xff]
  %v65 = vld [vmem:[%s0 + $0xa8] sm:$0xff]
  %v66 = vld [vmem:[%s0 + $0xb0] sm:$0xff]
  %v67 = vld [vmem:[%s0 + $0xb8] sm:$0xff]
  %v68 = vld [vmem:[%s0 + $0xc0] sm:$0xff]
  %v69 = vld [vmem:[%s0 + $0xc8] sm:$0xff]
  %v70 = vld [vmem:[%s0 + $0xd0] sm:$0xff]
  %v71 = vld [vmem:[%s0 + $0xd8] sm:$0xff]
  %v72 = vld [vmem:[%s1] sm:$0xff]
  %v73 = vld [vmem:[%s1 + $0x8] sm:$0xff]
  %v74 = vld [vmem:[%s1 + $0x10] sm:$0xff]
  %v75 = vld [vmem:[%s1 + $0x18] sm:$0xf]
  %v76 = vld [vmem:[%s2] sm:$0xff]
  %v77 = vld [vmem:[%s2 + $0x8] sm:$0xff]
  %v78 = vld [vmem:[%s2 + $0x10] sm:$0xff]
  %v79 = vld [vmem:[%s2 + $0x18] sm:$0xf]
  %s80 = scalar_lea.vmem %s1, 32
  %v81 = vld [vmem:[%s80] sm:$0xff]
  %v82 = vld [vmem:[%s80 + $0x8] sm:$0xff]
  %v83 = vld [vmem:[%s80 + $0x10] sm:$0xff]
  %v84 = vld [vmem:[%s80 + $0x18] sm:$0xf]
  %vm85 = vcmask 228352
  %v87 = vsel %vm85, %v45, 0
  %v90 = vsel %vm85, %v46, 0
  %v93 = vsel %vm85, %v47, 0
  %v96 = vsel %vm85, %v48, 0
  %v99 = vsel %vm85, %v49, 0
  %v102 = vsel %vm85, %v50, 0
  %v105 = vsel %vm85, %v51, 0
  %v108 = vsel %vm85, %v52, 0
  %v111 = vsel %vm85, %v53, 0
  %v114 = vsel %vm85, %v54, 0
  %v117 = vsel %vm85, %v55, 0
  %v120 = vsel %vm85, %v56, 0
  %v123 = vsel %vm85, %v57, 0
  %v126 = vsel %vm85, %v58, 0
  %v129 = vsel %vm85, %v59, 0
  %v132 = vsel %vm85, %v60, 0
  %v135 = vsel %vm85, %v61, 0
  %v138 = vsel %vm85, %v62, 0
  %v141 = vsel %vm85, %v63, 0
  %v144 = vsel %vm85, %v64, 0
  %v147 = vsel %vm85, %v65, 0
  %v150 = vsel %vm85, %v66, 0
  %v153 = vsel %vm85, %v67, 0
  %v156 = vsel %vm85, %v68, 0
  %v159 = vsel %vm85, %v69, 0
  %v162 = vsel %vm85, %v70, 0
  %vm164 = vcmask 1043456
  %v166 = vsel %vm164, %v84, 0
  %168 = vmatprep.subr.mxu0 0.0
  %169 = vmatpush1.msra.mxu0 %v81
  %170 = vmatprep.subr.mxu0 0.0
  %171 = vmatpush1.msra.mxu0 %v82
  %172 = vmatprep.subr.mxu0 0.0
  %173 = vmatpush1.msra.mxu0 %v83
  %174 = vmatprep.subr.mxu0 0.0
  %175 = vmatpush1.msra.mxu0 %v166
  %176 = vmatprep.subr.mxu0 0.0
  %177 = vmatpush1.msra.mxu0 0.0
  %178 = vmatprep.subr.mxu0 0.0
  %179 = vmatpush1.msra.mxu0 0.0
  %180 = vmatprep.subr.mxu0 0.0
  %181 = vmatpush1.msra.mxu0 0.0
  %182 = vmatprep.subr.mxu0 0.0
  %183 = vmatpush1.msra.mxu0 0.0
  %184 = vmatprep.subr.mxu0 0.0
  %185 = vmatpush1.msra.mxu0 0.0
  %186 = vmatprep.subr.mxu0 0.0
  %187 = vmatpush1.msra.mxu0 0.0
  %188 = vmatprep.subr.mxu0 0.0
  %189 = vmatpush1.msra.mxu0 0.0
  %190 = vmatprep.subr.mxu0 0.0
  %191 = vmatpush1.msra.mxu0 0.0
  %192 = vmatprep.subr.mxu0 0.0
  %193 = vmatpush1.msra.mxu0 0.0
  %194 = vmatprep.subr.mxu0 0.0
  %195 = vmatpush1.msra.mxu0 0.0
  %196 = vmatprep.subr.mxu0 0.0
  %197 = vmatpush1.msra.mxu0 0.0
  %198 = vmatprep.subr.mxu0 0.0
  %199 = vmatpush1.msra.mxu0 0.0
  %200 = vmatprep.subr.mxu0 0.0
  %201 = vmatpush1.msra.mxu0 0.0
  %202 = vmatprep.subr.mxu0 0.0
  %203 = vmatpush1.msra.mxu0 0.0
  %204 = vmatprep.subr.mxu0 0.0
  %205 = vmatpush1.msra.mxu0 0.0
  %206 = vmatprep.subr.mxu0 0.0
  %207 = vmatpush1.msra.mxu0 0.0
  %208 = vmatprep.subr.mxu0 0.0
  %209 = vmatpush1.msra.mxu0 0.0
  %210 = vmatprep.subr.mxu0 0.0
  %211 = vmatpush1.msra.mxu0 0.0
  %212 = vmatprep.subr.mxu0 0.0
  %213 = vmatpush1.msra.mxu0 0.0
  %214 = vmatprep.subr.mxu0 0.0
  %215 = vmatpush1.msra.mxu0 0.0
  %216 = vmatprep.subr.mxu0 0.0
  %217 = vmatpush1.msra.mxu0 0.0
  %218 = vmatprep.subr.mxu0 0.0
  %219 = vmatpush1.msra.mxu0 0.0
  %220 = vmatprep.subr.mxu0 0.0
  %221 = vmatpush1.msra.mxu0 0.0
  %222 = vmatprep.subr.mxu0 0.0
  %223 = vmatpush1.msra.mxu0 0.0
  %224 = vmatprep.subr.mxu0 0.0
  %225 = vmatpush1.msra.mxu0 0.0
  %226 = vmatprep.subr.mxu0 0.0
  %227 = vmatpush1.msra.mxu0 0.0
  %228 = vmatprep.subr.mxu0 0.0
  %229 = vmatpush1.msra.mxu0 0.0
  %230 = vmatprep.subr.mxu0 0.0
  %231 = vmatpush1.msra.mxu0 0.0
  %232 = vmatprep.mubr.f32.mxu0 0.0
  %233 = vmatmul.mubr.f32.gmra.mrb[0].mxu0 %v87
  %v234 = vpop.f32.mrb[0].mxu0
  %v235 = vadd.f32 0.0, %v234
  %v236 = vpop.f32.mrb[0].mxu0
  %237 = vmatprep.mubr.f32.mxu0 0.0
  %238 = vmatmul.mubr.f32.gmra.mrb[0].mxu0 %v90
  %v239 = vpop.f32.mrb[0].mxu0
  %v240 = vadd.f32 0.0, %v239
  %v241 = vpop.f32.mrb[0].mxu0
  %242 = vmatprep.mubr.f32.mxu0 0.0
  %243 = vmatmul.mubr.f32.gmra.mrb[0].mxu0 %v93
  %v244 = vpop.f32.mrb[0].mxu0
  %v245 = vadd.f32 0.0, %v244
  %v246 = vpop.f32.mrb[0].mxu0
  %247 = vmatprep.mubr.f32.mxu0 0.0
  %248 = vmatmul.mubr.f32.gmra.mrb[0].mxu0 %v96
  %v249 = vpop.f32.mrb[0].mxu0
  %v250 = vadd.f32 0.0, %v249
  %v251 = vpop.f32.mrb[0].mxu0
  %252 = vmatprep.mubr.f32.mxu0 0.0
  %253 = vmatmul.mubr.f32.gmra.mrb[0].mxu0 %v99
  %v254 = vpop.f32.mrb[0].mxu0
  %v255 = vadd.f32 0.0, %v254
  %v256 = vpop.f32.mrb[0].mxu0
  %257 = vmatprep.mubr.f32.mxu0 0.0
  %258 = vmatmul.mubr.f32.gmra.mrb[0].mxu0 %v102
  %v259 = vpop.f32.mrb[0].mxu0
  %v260 = vadd.f32 0.0, %v259
  %v261 = vpop.f32.mrb[0].mxu0
  %262 = vmatprep.mubr.f32.mxu0 0.0
  %263 = vmatmul.mubr.f32.gmra.mrb[0].mxu0 %v105
  %v264 = vpop.f32.mrb[0].mxu0
  %v265 = vadd.f32 0.0, %v264
  %v266 = vpop.f32.mrb[0].mxu0
  %267 = vmatprep.mubr.f32.mxu0 0.0
  %268 = vmatmul.mubr.f32.gmra.mrb[0].mxu0 %v108
  %v269 = vpop.f32.mrb[0].mxu0
  %v270 = vadd.f32 0.0, %v269
  %v271 = vpop.f32.mrb[0].mxu0
  %272 = vmatprep.mubr.f32.mxu0 0.0
  %273 = vmatmul.mubr.f32.gmra.mrb[0].mxu0 %v111
  %v274 = vpop.f32.mrb[0].mxu0
  %v275 = vadd.f32 0.0, %v274
  %v276 = vpop.f32.mrb[0].mxu0
  %277 = vmatprep.mubr.f32.mxu0 0.0
  %278 = vmatmul.mubr.f32.gmra.mrb[0].mxu0 %v114
  %v279 = vpop.f32.mrb[0].mxu0
  %v280 = vadd.f32 0.0, %v279
  %v281 = vpop.f32.mrb[0].mxu0
  %282 = vmatprep.mubr.f32.mxu0 0.0
  %283 = vmatmul.mubr.f32.gmra.mrb[0].mxu0 %v117
  %v284 = vpop.f32.mrb[0].mxu0
  %v285 = vadd.f32 0.0, %v284
  %v286 = vpop.f32.mrb[0].mxu0
  %287 = vmatprep.mubr.f32.mxu0 0.0
  %288 = vmatmul.mubr.f32.gmra.mrb[0].mxu0 %v120
  %v289 = vpop.f32.mrb[0].mxu0
  %v290 = vadd.f32 0.0, %v289
  %v291 = vpop.f32.mrb[0].mxu0
  %292 = vmatprep.mubr.f32.mxu0 0.0
  %293 = vmatmul.mubr.f32.gmra.mrb[0].mxu0 %v123
  %v294 = vpop.f32.mrb[0].mxu0
  %v295 = vadd.f32 0.0, %v294
  %v296 = vpop.f32.mrb[0].mxu0
  %297 = vmatprep.mubr.f32.mxu0 0.0
  %298 = vmatmul.mubr.f32.gmra.mrb[0].mxu0 %v126
  %v299 = vpop.f32.mrb[0].mxu0
  %v300 = vadd.f32 0.0, %v299
  %v301 = vpop.f32.mrb[0].mxu0
  %302 = vmatprep.mubr.f32.mxu0 0.0
  %303 = vmatmul.mubr.f32.gmra.mrb[0].mxu0 %v129
  %v304 = vpop.f32.mrb[0].mxu0
  %v305 = vadd.f32 0.0, %v304
  %v306 = vpop.f32.mrb[0].mxu0
  %307 = vmatprep.mubr.f32.mxu0 0.0
  %308 = vmatmul.mubr.f32.gmra.mrb[0].mxu0 %v132
  %v309 = vpop.f32.mrb[0].mxu0
  %v310 = vadd.f32 0.0, %v309
  %v311 = vpop.f32.mrb[0].mxu0
  %312 = vmatprep.mubr.f32.mxu0 0.0
  %313 = vmatmul.mubr.f32.gmra.mrb[0].mxu0 %v135
  %v314 = vpop.f32.mrb[0].mxu0
  %v315 = vadd.f32 0.0, %v314
  %v316 = vpop.f32.mrb[0].mxu0
  %317 = vmatprep.mubr.f32.mxu0 0.0
  %318 = vmatmul.mubr.f32.gmra.mrb[0].mxu0 %v138
  %v319 = vpop.f32.mrb[0].mxu0
  %v320 = vadd.f32 0.0, %v319
  %v321 = vpop.f32.mrb[0].mxu0
  %322 = vmatprep.mubr.f32.mxu0 0.0
  %323 = vmatmul.mubr.f32.gmra.mrb[0].mxu0 %v141
  %v324 = vpop.f32.mrb[0].mxu0
  %v325 = vadd.f32 0.0, %v324
  %v326 = vpop.f32.mrb[0].mxu0
  %327 = vmatprep.mubr.f32.mxu0 0.0
  %328 = vmatmul.mubr.f32.gmra.mrb[0].mxu0 %v144
  %v329 = vpop.f32.mrb[0].mxu0
  %v330 = vadd.f32 0.0, %v329
  %v331 = vpop.f32.mrb[0].mxu0
  %332 = vmatprep.mubr.f32.mxu0 0.0
  %333 = vmatmul.mubr.f32.gmra.mrb[0].mxu0 %v147
  %v334 = vpop.f32.mrb[0].mxu0
  %v335 = vadd.f32 0.0, %v334
  %v336 = vpop.f32.mrb[0].mxu0
  %337 = vmatprep.mubr.f32.mxu0 0.0
  %338 = vmatmul.mubr.f32.gmra.mrb[0].mxu0 %v150
  %v339 = vpop.f32.mrb[0].mxu0
  %v340 = vadd.f32 0.0, %v339
  %v341 = vpop.f32.mrb[0].mxu0
  %342 = vmatprep.mubr.f32.mxu0 0.0
  %343 = vmatmul.mubr.f32.gmra.mrb[0].mxu0 %v153
  %v344 = vpop.f32.mrb[0].mxu0
  %v345 = vadd.f32 0.0, %v344
  %v346 = vpop.f32.mrb[0].mxu0
  %347 = vmatprep.mubr.f32.mxu0 0.0
  %348 = vmatmul.mubr.f32.gmra.mrb[0].mxu0 %v156
  %v349 = vpop.f32.mrb[0].mxu0
  %v350 = vadd.f32 0.0, %v349
  %v351 = vpop.f32.mrb[0].mxu0
  %352 = vmatprep.mubr.f32.mxu0 0.0
  %353 = vmatmul.mubr.f32.gmra.mrb[0].mxu0 %v159
  %v354 = vpop.f32.mrb[0].mxu0
  %v355 = vadd.f32 0.0, %v354
  %v356 = vpop.f32.mrb[0].mxu0
  %357 = vmatprep.mubr.f32.mxu0 0.0
  %358 = vmatmul.mubr.f32.gmra.mrb[0].mxu0 %v162
  %v359 = vpop.f32.mrb[0].mxu0
  %v360 = vadd.f32 0.0, %v359
  %v361 = vpop.f32.mrb[0].mxu0
  %362 = vdwg.mxu0
  %s363 = scalar_lea.vmem %s2, 32
  %v364 = vld [vmem:[%s363] sm:$0xff]
  %v365 = vld [vmem:[%s363 + $0x8] sm:$0xff]
  %v366 = vld [vmem:[%s363 + $0x10] sm:$0xff]
  %v367 = vld [vmem:[%s363 + $0x18] sm:$0xf]
  %v369 = vsel %vm164, %v367, 0
  %371 = vmatprep.subr.mxu0 0.0
  %372 = vmatpush1.msra.mxu0 %v364
  %373 = vmatprep.subr.mxu0 0.0
  %374 = vmatpush1.msra.mxu0 %v365
  %375 = vmatprep.subr.mxu0 0.0
  %376 = vmatpush1.msra.mxu0 %v366
  %377 = vmatprep.subr.mxu0 0.0
  %378 = vmatpush1.msra.mxu0 %v369
  %379 = vmatprep.subr.mxu0 0.0
  %380 = vmatpush1.msra.mxu0 0.0
  %381 = vmatprep.subr.mxu0 0.0
  %382 = vmatpush1.msra.mxu0 0.0
  %383 = vmatprep.subr.mxu0 0.0
  %384 = vmatpush1.msra.mxu0 0.0
  %385 = vmatprep.subr.mxu0 0.0
  %386 = vmatpush1.msra.mxu0 0.0
  %387 = vmatprep.subr.mxu0 0.0
  %388 = vmatpush1.msra.mxu0 0.0
  %389 = vmatprep.subr.mxu0 0.0
  %390 = vmatpush1.msra.mxu0 0.0
  %391 = vmatprep.subr.mxu0 0.0
  %392 = vmatpush1.msra.mxu0 0.0
  %393 = vmatprep.subr.mxu0 0.0
  %394 = vmatpush1.msra.mxu0 0.0
  %395 = vmatprep.subr.mxu0 0.0
  %396 = vmatpush1.msra.mxu0 0.0
  %397 = vmatprep.subr.mxu0 0.0
  %398 = vmatpush1.msra.mxu0 0.0
  %399 = vmatprep.subr.mxu0 0.0
  %400 = vmatpush1.msra.mxu0 0.0
  %401 = vmatprep.subr.mxu0 0.0
  %402 = vmatpush1.msra.mxu0 0.0
  %403 = vmatprep.subr.mxu0 0.0
  %404 = vmatpush1.msra.mxu0 0.0
  %405 = vmatprep.subr.mxu0 0.0
  %406 = vmatpush1.msra.mxu0 0.0
  %407 = vmatprep.subr.mxu0 0.0
  %408 = vmatpush1.msra.mxu0 0.0
  %409 = vmatprep.subr.mxu0 0.0
  %410 = vmatpush1.msra.mxu0 0.0
  %411 = vmatprep.subr.mxu0 0.0
  %412 = vmatpush1.msra.mxu0 0.0
  %413 = vmatprep.subr.mxu0 0.0
  %414 = vmatpush1.msra.mxu0 0.0
  %415 = vmatprep.subr.mxu0 0.0
  %416 = vmatpush1.msra.mxu0 0.0
  %417 = vmatprep.subr.mxu0 0.0
  %418 = vmatpush1.msra.mxu0 0.0
  %419 = vmatprep.subr.mxu0 0.0
  %420 = vmatpush1.msra.mxu0 0.0
  %421 = vmatprep.subr.mxu0 0.0
  %422 = vmatpush1.msra.mxu0 0.0
  %423 = vmatprep.subr.mxu0 0.0
  %424 = vmatpush1.msra.mxu0 0.0
  %425 = vmatprep.subr.mxu0 0.0
  %426 = vmatpush1.msra.mxu0 0.0
  %427 = vmatprep.subr.mxu0 0.0
  %428 = vmatpush1.msra.mxu0 0.0
  %429 = vmatprep.subr.mxu0 0.0
  %430 = vmatpush1.msra.mxu0 0.0
  %431 = vmatprep.subr.mxu0 0.0
  %432 = vmatpush1.msra.mxu0 0.0
  %433 = vmatprep.subr.mxu0 0.0
  %434 = vmatpush1.msra.mxu0 0.0
  %435 = vmatprep.mubr.f32.mxu0 0.0
  %436 = vmatmul.mubr.f32.gmra.mrb[0].mxu0 %v87
  %v437 = vpop.f32.mrb[0].mxu0
  %v438 = vadd.f32 0.0, %v437
  %v439 = vpop.f32.mrb[0].mxu0
  %440 = vmatprep.mubr.f32.mxu0 0.0
  %441 = vmatmul.mubr.f32.gmra.mrb[0].mxu0 %v90
  %v442 = vpop.f32.mrb[0].mxu0
  %v443 = vadd.f32 0.0, %v442
  %v444 = vpop.f32.mrb[0].mxu0
  %445 = vmatprep.mubr.f32.mxu0 0.0
  %446 = vmatmul.mubr.f32.gmra.mrb[0].mxu0 %v93
  %v447 = vpop.f32.mrb[0].mxu0
  %v448 = vadd.f32 0.0, %v447
  %v449 = vpop.f32.mrb[0].mxu0
  %450 = vmatprep.mubr.f32.mxu0 0.0
  %451 = vmatmul.mubr.f32.gmra.mrb[0].mxu0 %v96
  %v452 = vpop.f32.mrb[0].mxu0
  %v453 = vadd.f32 0.0, %v452
  %v454 = vpop.f32.mrb[0].mxu0
  %455 = vmatprep.mubr.f32.mxu0 0.0
  %456 = vmatmul.mubr.f32.gmra.mrb[0].mxu0 %v99
  %v457 = vpop.f32.mrb[0].mxu0
  %v458 = vadd.f32 0.0, %v457
  %v459 = vpop.f32.mrb[0].mxu0
  %460 = vmatprep.mubr.f32.mxu0 0.0
  %461 = vmatmul.mubr.f32.gmra.mrb[0].mxu0 %v102
  %v462 = vpop.f32.mrb[0].mxu0
  %v463 = vadd.f32 0.0, %v462
  %v464 = vpop.f32.mrb[0].mxu0
  %465 = vmatprep.mubr.f32.mxu0 0.0
  %466 = vmatmul.mubr.f32.gmra.mrb[0].mxu0 %v105
  %v467 = vpop.f32.mrb[0].mxu0
  %v468 = vadd.f32 0.0, %v467
  %v469 = vpop.f32.mrb[0].mxu0
  %470 = vmatprep.mubr.f32.mxu0 0.0
  %471 = vmatmul.mubr.f32.gmra.mrb[0].mxu0 %v108
  %v472 = vpop.f32.mrb[0].mxu0
  %v473 = vadd.f32 0.0, %v472
  %v474 = vpop.f32.mrb[0].mxu0
  %475 = vmatprep.mubr.f32.mxu0 0.0
  %476 = vmatmul.mubr.f32.gmra.mrb[0].mxu0 %v111
  %v477 = vpop.f32.mrb[0].mxu0
  %v478 = vadd.f32 0.0, %v477
  %v479 = vpop.f32.mrb[0].mxu0
  %480 = vmatprep.mubr.f32.mxu0 0.0
  %481 = vmatmul.mubr.f32.gmra.mrb[0].mxu0 %v114
  %v482 = vpop.f32.mrb[0].mxu0
  %v483 = vadd.f32 0.0, %v482
  %v484 = vpop.f32.mrb[0].mxu0
  %485 = vmatprep.mubr.f32.mxu0 0.0
  %486 = vmatmul.mubr.f32.gmra.mrb[0].mxu0 %v117
  %v487 = vpop.f32.mrb[0].mxu0
  %v488 = vadd.f32 0.0, %v487
  %v489 = vpop.f32.mrb[0].mxu0
  %490 = vmatprep.mubr.f32.mxu0 0.0
  %491 = vmatmul.mubr.f32.gmra.mrb[0].mxu0 %v120
  %v492 = vpop.f32.mrb[0].mxu0
  %v493 = vadd.f32 0.0, %v492
  %v494 = vpop.f32.mrb[0].mxu0
  %495 = vmatprep.mubr.f32.mxu0 0.0
  %496 = vmatmul.mubr.f32.gmra.mrb[0].mxu0 %v123
  %v497 = vpop.f32.mrb[0].mxu0
  %v498 = vadd.f32 0.0, %v497
  %v499 = vpop.f32.mrb[0].mxu0
  %500 = vmatprep.mubr.f32.mxu0 0.0
  %501 = vmatmul.mubr.f32.gmra.mrb[0].mxu0 %v126
  %v502 = vpop.f32.mrb[0].mxu0
  %v503 = vadd.f32 0.0, %v502
  %v504 = vpop.f32.mrb[0].mxu0
  %505 = vmatprep.mubr.f32.mxu0 0.0
  %506 = vmatmul.mubr.f32.gmra.mrb[0].mxu0 %v129
  %v507 = vpop.f32.mrb[0].mxu0
  %v508 = vadd.f32 0.0, %v507
  %v509 = vpop.f32.mrb[0].mxu0
  %510 = vmatprep.mubr.f32.mxu0 0.0
  %511 = vmatmul.mubr.f32.gmra.mrb[0].mxu0 %v132
  %v512 = vpop.f32.mrb[0].mxu0
  %v513 = vadd.f32 0.0, %v512
  %v514 = vpop.f32.mrb[0].mxu0
  %515 = vmatprep.mubr.f32.mxu0 0.0
  %516 = vmatmul.mubr.f32.gmra.mrb[0].mxu0 %v135
  %v517 = vpop.f32.mrb[0].mxu0
  %v518 = vadd.f32 0.0, %v517
  %v519 = vpop.f32.mrb[0].mxu0
  %520 = vmatprep.mubr.f32.mxu0 0.0
  %521 = vmatmul.mubr.f32.gmra.mrb[0].mxu0 %v138
  %v522 = vpop.f32.mrb[0].mxu0
  %v523 = vadd.f32 0.0, %v522
  %v524 = vpop.f32.mrb[0].mxu0
  %525 = vmatprep.mubr.f32.mxu0 0.0
  %526 = vmatmul.mubr.f32.gmra.mrb[0].mxu0 %v141
  %v527 = vpop.f32.mrb[0].mxu0
  %v528 = vadd.f32 0.0, %v527
  %v529 = vpop.f32.mrb[0].mxu0
  %530 = vmatprep.mubr.f32.mxu0 0.0
  %531 = vmatmul.mubr.f32.gmra.mrb[0].mxu0 %v144
  %v532 = vpop.f32.mrb[0].mxu0
  %v533 = vadd.f32 0.0, %v532
  %v534 = vpop.f32.mrb[0].mxu0
  %535 = vmatprep.mubr.f32.mxu0 0.0
  %536 = vmatmul.mubr.f32.gmra.mrb[0].mxu0 %v147
  %v537 = vpop.f32.mrb[0].mxu0
  %v538 = vadd.f32 0.0, %v537
  %v539 = vpop.f32.mrb[0].mxu0
  %540 = vmatprep.mubr.f32.mxu0 0.0
  %541 = vmatmul.mubr.f32.gmra.mrb[0].mxu0 %v150
  %v542 = vpop.f32.mrb[0].mxu0
  %v543 = vadd.f32 0.0, %v542
  %v544 = vpop.f32.mrb[0].mxu0
  %545 = vmatprep.mubr.f32.mxu0 0.0
  %546 = vmatmul.mubr.f32.gmra.mrb[0].mxu0 %v153
  %v547 = vpop.f32.mrb[0].mxu0
  %v548 = vadd.f32 0.0, %v547
  %v549 = vpop.f32.mrb[0].mxu0
  %550 = vmatprep.mubr.f32.mxu0 0.0
  %551 = vmatmul.mubr.f32.gmra.mrb[0].mxu0 %v156
  %v552 = vpop.f32.mrb[0].mxu0
  %v553 = vadd.f32 0.0, %v552
  %v554 = vpop.f32.mrb[0].mxu0
  %555 = vmatprep.mubr.f32.mxu0 0.0
  %556 = vmatmul.mubr.f32.gmra.mrb[0].mxu0 %v159
  %v557 = vpop.f32.mrb[0].mxu0
  %v558 = vadd.f32 0.0, %v557
  %v559 = vpop.f32.mrb[0].mxu0
  %560 = vmatprep.mubr.f32.mxu0 0.0
  %561 = vmatmul.mubr.f32.gmra.mrb[0].mxu0 %v162
  %v562 = vpop.f32.mrb[0].mxu0
  %v563 = vadd.f32 0.0, %v562
  %v564 = vpop.f32.mrb[0].mxu0
  %565 = vdwg.mxu0
  %v567 = vsel %vm85, %v44, 0
  %v570 = vsel %vm164, %v75, 0
  %572 = vmatprep.subr.mxu0 0.0
  %573 = vmatpush1.msra.mxu0 %v72
  %574 = vmatprep.subr.mxu0 0.0
  %575 = vmatpush1.msra.mxu0 %v73
  %576 = vmatprep.subr.mxu0 0.0
  %577 = vmatpush1.msra.mxu0 %v74
  %578 = vmatprep.subr.mxu0 0.0
  %579 = vmatpush1.msra.mxu0 %v570
  %580 = vmatprep.subr.mxu0 0.0
  %581 = vmatpush1.msra.mxu0 0.0
  %582 = vmatprep.subr.mxu0 0.0
  %583 = vmatpush1.msra.mxu0 0.0
  %584 = vmatprep.subr.mxu0 0.0
  %585 = vmatpush1.msra.mxu0 0.0
  %586 = vmatprep.subr.mxu0 0.0
  %587 = vmatpush1.msra.mxu0 0.0
  %588 = vmatprep.subr.mxu0 0.0
  %589 = vmatpush1.msra.mxu0 0.0
  %590 = vmatprep.subr.mxu0 0.0
  %591 = vmatpush1.msra.mxu0 0.0
  %592 = vmatprep.subr.mxu0 0.0
  %593 = vmatpush1.msra.mxu0 0.0
  %594 = vmatprep.subr.mxu0 0.0
  %595 = vmatpush1.msra.mxu0 0.0
  %596 = vmatprep.subr.mxu0 0.0
  %597 = vmatpush1.msra.mxu0 0.0
  %598 = vmatprep.subr.mxu0 0.0
  %599 = vmatpush1.msra.mxu0 0.0
  %600 = vmatprep.subr.mxu0 0.0
  %601 = vmatpush1.msra.mxu0 0.0
  %602 = vmatprep.subr.mxu0 0.0
  %603 = vmatpush1.msra.mxu0 0.0
  %604 = vmatprep.subr.mxu0 0.0
  %605 = vmatpush1.msra.mxu0 0.0
  %606 = vmatprep.subr.mxu0 0.0
  %607 = vmatpush1.msra.mxu0 0.0
  %608 = vmatprep.subr.mxu0 0.0
  %609 = vmatpush1.msra.mxu0 0.0
  %610 = vmatprep.subr.mxu0 0.0
  %611 = vmatpush1.msra.mxu0 0.0
  %612 = vmatprep.subr.mxu0 0.0
  %613 = vmatpush1.msra.mxu0 0.0
  %614 = vmatprep.subr.mxu0 0.0
  %615 = vmatpush1.msra.mxu0 0.0
  %616 = vmatprep.subr.mxu0 0.0
  %617 = vmatpush1.msra.mxu0 0.0
  %618 = vmatprep.subr.mxu0 0.0
  %619 = vmatpush1.msra.mxu0 0.0
  %620 = vmatprep.subr.mxu0 0.0
  %621 = vmatpush1.msra.mxu0 0.0
  %622 = vmatprep.subr.mxu0 0.0
  %623 = vmatpush1.msra.mxu0 0.0
  %624 = vmatprep.subr.mxu0 0.0
  %625 = vmatpush1.msra.mxu0 0.0
  %626 = vmatprep.subr.mxu0 0.0
  %627 = vmatpush1.msra.mxu0 0.0
  %628 = vmatprep.subr.mxu0 0.0
  %629 = vmatpush1.msra.mxu0 0.0
  %630 = vmatprep.subr.mxu0 0.0
  %631 = vmatpush1.msra.mxu0 0.0
  %632 = vmatprep.subr.mxu0 0.0
  %633 = vmatpush1.msra.mxu0 0.0
  %634 = vmatprep.subr.mxu0 0.0
  %635 = vmatpush1.msra.mxu0 0.0
  %636 = vmatprep.mubr.f32.mxu0 0.0
  %637 = vmatmul.mubr.f32.gmra.mrb[0].mxu0 %v567
  %v638 = vpop.f32.mrb[0].mxu0
  %v639 = vadd.f32 %v235, %v638
  %v640 = vpop.f32.mrb[0].mxu0
  %641 = vmatprep.mubr.f32.mxu0 0.0
  %642 = vmatmul.mubr.f32.gmra.mrb[0].mxu0 %v87
  %v643 = vpop.f32.mrb[0].mxu0
  %v644 = vadd.f32 %v240, %v643
  %v645 = vpop.f32.mrb[0].mxu0
  %646 = vmatprep.mubr.f32.mxu0 0.0
  %647 = vmatmul.mubr.f32.gmra.mrb[0].mxu0 %v90
  %v648 = vpop.f32.mrb[0].mxu0
  %v649 = vadd.f32 %v245, %v648
  %v650 = vpop.f32.mrb[0].mxu0
  %651 = vmatprep.mubr.f32.mxu0 0.0
  %652 = vmatmul.mubr.f32.gmra.mrb[0].mxu0 %v93
  %v653 = vpop.f32.mrb[0].mxu0
  %v654 = vadd.f32 %v250, %v653
  %v655 = vpop.f32.mrb[0].mxu0
  %656 = vmatprep.mubr.f32.mxu0 0.0
  %657 = vmatmul.mubr.f32.gmra.mrb[0].mxu0 %v96
  %v658 = vpop.f32.mrb[0].mxu0
  %v659 = vadd.f32 %v255, %v658
  %v660 = vpop.f32.mrb[0].mxu0
  %661 = vmatprep.mubr.f32.mxu0 0.0
  %662 = vmatmul.mubr.f32.gmra.mrb[0].mxu0 %v99
  %v663 = vpop.f32.mrb[0].mxu0
  %v664 = vadd.f32 %v260, %v663
  %v665 = vpop.f32.mrb[0].mxu0
  %666 = vmatprep.mubr.f32.mxu0 0.0
  %667 = vmatmul.mubr.f32.gmra.mrb[0].mxu0 %v102
  %v668 = vpop.f32.mrb[0].mxu0
  %v669 = vadd.f32 %v265, %v668
  %v670 = vpop.f32.mrb[0].mxu0
  %671 = vmatprep.mubr.f32.mxu0 0.0
  %672 = vmatmul.mubr.f32.gmra.mrb[0].mxu0 %v105
  %v673 = vpop.f32.mrb[0].mxu0
  %v674 = vadd.f32 %v270, %v673
  %v675 = vpop.f32.mrb[0].mxu0
  %676 = vmatprep.mubr.f32.mxu0 0.0
  %677 = vmatmul.mubr.f32.gmra.mrb[0].mxu0 %v108
  %v678 = vpop.f32.mrb[0].mxu0
  %v679 = vadd.f32 %v275, %v678
  %v680 = vpop.f32.mrb[0].mxu0
  %681 = vmatprep.mubr.f32.mxu0 0.0
  %682 = vmatmul.mubr.f32.gmra.mrb[0].mxu0 %v111
  %v683 = vpop.f32.mrb[0].mxu0
  %v684 = vadd.f32 %v280, %v683
  %v685 = vpop.f32.mrb[0].mxu0
  %686 = vmatprep.mubr.f32.mxu0 0.0
  %687 = vmatmul.mubr.f32.gmra.mrb[0].mxu0 %v114
  %v688 = vpop.f32.mrb[0].mxu0
  %v689 = vadd.f32 %v285, %v688
  %v690 = vpop.f32.mrb[0].mxu0
  %691 = vmatprep.mubr.f32.mxu0 0.0
  %692 = vmatmul.mubr.f32.gmra.mrb[0].mxu0 %v117
  %v693 = vpop.f32.mrb[0].mxu0
  %v694 = vadd.f32 %v290, %v693
  %v695 = vpop.f32.mrb[0].mxu0
  %696 = vmatprep.mubr.f32.mxu0 0.0
  %697 = vmatmul.mubr.f32.gmra.mrb[0].mxu0 %v120
  %v698 = vpop.f32.mrb[0].mxu0
  %v699 = vadd.f32 %v295, %v698
  %v700 = vpop.f32.mrb[0].mxu0
  %701 = vmatprep.mubr.f32.mxu0 0.0
  %702 = vmatmul.mubr.f32.gmra.mrb[0].mxu0 %v123
  %v703 = vpop.f32.mrb[0].mxu0
  %v704 = vadd.f32 %v300, %v703
  %v705 = vpop.f32.mrb[0].mxu0
  %706 = vmatprep.mubr.f32.mxu0 0.0
  %707 = vmatmul.mubr.f32.gmra.mrb[0].mxu0 %v126
  %v708 = vpop.f32.mrb[0].mxu0
  %v709 = vadd.f32 %v305, %v708
  %v710 = vpop.f32.mrb[0].mxu0
  %711 = vmatprep.mubr.f32.mxu0 0.0
  %712 = vmatmul.mubr.f32.gmra.mrb[0].mxu0 %v129
  %v713 = vpop.f32.mrb[0].mxu0
  %v714 = vadd.f32 %v310, %v713
  %v715 = vpop.f32.mrb[0].mxu0
  %716 = vmatprep.mubr.f32.mxu0 0.0
  %717 = vmatmul.mubr.f32.gmra.mrb[0].mxu0 %v132
  %v718 = vpop.f32.mrb[0].mxu0
  %v719 = vadd.f32 %v315, %v718
  %v720 = vpop.f32.mrb[0].mxu0
  %721 = vmatprep.mubr.f32.mxu0 0.0
  %722 = vmatmul.mubr.f32.gmra.mrb[0].mxu0 %v135
  %v723 = vpop.f32.mrb[0].mxu0
  %v724 = vadd.f32 %v320, %v723
  %v725 = vpop.f32.mrb[0].mxu0
  %726 = vmatprep.mubr.f32.mxu0 0.0
  %727 = vmatmul.mubr.f32.gmra.mrb[0].mxu0 %v138
  %v728 = vpop.f32.mrb[0].mxu0
  %v729 = vadd.f32 %v325, %v728
  %v730 = vpop.f32.mrb[0].mxu0
  %731 = vmatprep.mubr.f32.mxu0 0.0
  %732 = vmatmul.mubr.f32.gmra.mrb[0].mxu0 %v141
  %v733 = vpop.f32.mrb[0].mxu0
  %v734 = vadd.f32 %v330, %v733
  %v735 = vpop.f32.mrb[0].mxu0
  %736 = vmatprep.mubr.f32.mxu0 0.0
  %737 = vmatmul.mubr.f32.gmra.mrb[0].mxu0 %v144
  %v738 = vpop.f32.mrb[0].mxu0
  %v739 = vadd.f32 %v335, %v738
  %v740 = vpop.f32.mrb[0].mxu0
  %741 = vmatprep.mubr.f32.mxu0 0.0
  %742 = vmatmul.mubr.f32.gmra.mrb[0].mxu0 %v147
  %v743 = vpop.f32.mrb[0].mxu0
  %v744 = vadd.f32 %v340, %v743
  %v745 = vpop.f32.mrb[0].mxu0
  %746 = vmatprep.mubr.f32.mxu0 0.0
  %747 = vmatmul.mubr.f32.gmra.mrb[0].mxu0 %v150
  %v748 = vpop.f32.mrb[0].mxu0
  %v749 = vadd.f32 %v345, %v748
  %v750 = vpop.f32.mrb[0].mxu0
  %751 = vmatprep.mubr.f32.mxu0 0.0
  %752 = vmatmul.mubr.f32.gmra.mrb[0].mxu0 %v153
  %v753 = vpop.f32.mrb[0].mxu0
  %v754 = vadd.f32 %v350, %v753
  %v755 = vpop.f32.mrb[0].mxu0
  %756 = vmatprep.mubr.f32.mxu0 0.0
  %757 = vmatmul.mubr.f32.gmra.mrb[0].mxu0 %v156
  %v758 = vpop.f32.mrb[0].mxu0
  %v759 = vadd.f32 %v355, %v758
  %v760 = vpop.f32.mrb[0].mxu0
  %761 = vmatprep.mubr.f32.mxu0 0.0
  %762 = vmatmul.mubr.f32.gmra.mrb[0].mxu0 %v159
  %v763 = vpop.f32.mrb[0].mxu0
  %v764 = vadd.f32 %v360, %v763
  %v765 = vpop.f32.mrb[0].mxu0
  %766 = vdwg.mxu0
  %v768 = vsel %vm164, %v79, 0
  %770 = vmatprep.subr.mxu0 0.0
  %771 = vmatpush1.msra.mxu0 %v76
  %772 = vmatprep.subr.mxu0 0.0
  %773 = vmatpush1.msra.mxu0 %v77
  %774 = vmatprep.subr.mxu0 0.0
  %775 = vmatpush1.msra.mxu0 %v78
  %776 = vmatprep.subr.mxu0 0.0
  %777 = vmatpush1.msra.mxu0 %v768
  %778 = vmatprep.subr.mxu0 0.0
  %779 = vmatpush1.msra.mxu0 0.0
  %780 = vmatprep.subr.mxu0 0.0
  %781 = vmatpush1.msra.mxu0 0.0
  %782 = vmatprep.subr.mxu0 0.0
  %783 = vmatpush1.msra.mxu0 0.0
  %784 = vmatprep.subr.mxu0 0.0
  %785 = vmatpush1.msra.mxu0 0.0
  %786 = vmatprep.subr.mxu0 0.0
  %787 = vmatpush1.msra.mxu0 0.0
  %788 = vmatprep.subr.mxu0 0.0
  %789 = vmatpush1.msra.mxu0 0.0
  %790 = vmatprep.subr.mxu0 0.0
  %791 = vmatpush1.msra.mxu0 0.0
  %792 = vmatprep.subr.mxu0 0.0
  %793 = vmatpush1.msra.mxu0 0.0
  %794 = vmatprep.subr.mxu0 0.0
  %795 = vmatpush1.msra.mxu0 0.0
  %796 = vmatprep.subr.mxu0 0.0
  %797 = vmatpush1.msra.mxu0 0.0
  %798 = vmatprep.subr.mxu0 0.0
  %799 = vmatpush1.msra.mxu0 0.0
  %800 = vmatprep.subr.mxu0 0.0
  %801 = vmatpush1.msra.mxu0 0.0
  %802 = vmatprep.subr.mxu0 0.0
  %803 = vmatpush1.msra.mxu0 0.0
  %804 = vmatprep.subr.mxu0 0.0
  %805 = vmatpush1.msra.mxu0 0.0
  %806 = vmatprep.subr.mxu0 0.0
  %807 = vmatpush1.msra.mxu0 0.0
  %808 = vmatprep.subr.mxu0 0.0
  %809 = vmatpush1.msra.mxu0 0.0
  %810 = vmatprep.subr.mxu0 0.0
  %811 = vmatpush1.msra.mxu0 0.0
  %812 = vmatprep.subr.mxu0 0.0
  %813 = vmatpush1.msra.mxu0 0.0
  %814 = vmatprep.subr.mxu0 0.0
  %815 = vmatpush1.msra.mxu0 0.0
  %816 = vmatprep.subr.mxu0 0.0
  %817 = vmatpush1.msra.mxu0 0.0
  %818 = vmatprep.subr.mxu0 0.0
  %819 = vmatpush1.msra.mxu0 0.0
  %820 = vmatprep.subr.mxu0 0.0
  %821 = vmatpush1.msra.mxu0 0.0
  %822 = vmatprep.subr.mxu0 0.0
  %823 = vmatpush1.msra.mxu0 0.0
  %824 = vmatprep.subr.mxu0 0.0
  %825 = vmatpush1.msra.mxu0 0.0
  %826 = vmatprep.subr.mxu0 0.0
  %827 = vmatpush1.msra.mxu0 0.0
  %828 = vmatprep.subr.mxu0 0.0
  %829 = vmatpush1.msra.mxu0 0.0
  %830 = vmatprep.subr.mxu0 0.0
  %831 = vmatpush1.msra.mxu0 0.0
  %832 = vmatprep.subr.mxu0 0.0
  %833 = vmatpush1.msra.mxu0 0.0
  %834 = vmatprep.mubr.f32.mxu0 0.0
  %835 = vmatmul.mubr.f32.gmra.mrb[0].mxu0 %v567
  %v836 = vpop.f32.mrb[0].mxu0
  %v837 = vadd.f32 %v438, %v836
  %v838 = vpop.f32.mrb[0].mxu0
  %839 = vmatprep.mubr.f32.mxu0 0.0
  %840 = vmatmul.mubr.f32.gmra.mrb[0].mxu0 %v87
  %v841 = vpop.f32.mrb[0].mxu0
  %v842 = vadd.f32 %v443, %v841
  %v843 = vpop.f32.mrb[0].mxu0
  %844 = vmatprep.mubr.f32.mxu0 0.0
  %845 = vmatmul.mubr.f32.gmra.mrb[0].mxu0 %v90
  %v846 = vpop.f32.mrb[0].mxu0
  %v847 = vadd.f32 %v448, %v846
  %v848 = vpop.f32.mrb[0].mxu0
  %849 = vmatprep.mubr.f32.mxu0 0.0
  %850 = vmatmul.mubr.f32.gmra.mrb[0].mxu0 %v93
  %v851 = vpop.f32.mrb[0].mxu0
  %v852 = vadd.f32 %v453, %v851
  %v853 = vpop.f32.mrb[0].mxu0
  %854 = vmatprep.mubr.f32.mxu0 0.0
  %855 = vmatmul.mubr.f32.gmra.mrb[0].mxu0 %v96
  %v856 = vpop.f32.mrb[0].mxu0
  %v857 = vadd.f32 %v458, %v856
  %v858 = vpop.f32.mrb[0].mxu0
  %859 = vmatprep.mubr.f32.mxu0 0.0
  %860 = vmatmul.mubr.f32.gmra.mrb[0].mxu0 %v99
  %v861 = vpop.f32.mrb[0].mxu0
  %v862 = vadd.f32 %v463, %v861
  %v863 = vpop.f32.mrb[0].mxu0
  %864 = vmatprep.mubr.f32.mxu0 0.0
  %865 = vmatmul.mubr.f32.gmra.mrb[0].mxu0 %v102
  %v866 = vpop.f32.mrb[0].mxu0
  %v867 = vadd.f32 %v468, %v866
  %v868 = vpop.f32.mrb[0].mxu0
  %869 = vmatprep.mubr.f32.mxu0 0.0
  %870 = vmatmul.mubr.f32.gmra.mrb[0].mxu0 %v105
  %v871 = vpop.f32.mrb[0].mxu0
  %v872 = vadd.f32 %v473, %v871
  %v873 = vpop.f32.mrb[0].mxu0
  %874 = vmatprep.mubr.f32.mxu0 0.0
  %875 = vmatmul.mubr.f32.gmra.mrb[0].mxu0 %v108
  %v876 = vpop.f32.mrb[0].mxu0
  %v877 = vadd.f32 %v478, %v876
  %v878 = vpop.f32.mrb[0].mxu0
  %879 = vmatprep.mubr.f32.mxu0 0.0
  %880 = vmatmul.mubr.f32.gmra.mrb[0].mxu0 %v111
  %v881 = vpop.f32.mrb[0].mxu0
  %v882 = vadd.f32 %v483, %v881
  %v883 = vpop.f32.mrb[0].mxu0
  %884 = vmatprep.mubr.f32.mxu0 0.0
  %885 = vmatmul.mubr.f32.gmra.mrb[0].mxu0 %v114
  %v886 = vpop.f32.mrb[0].mxu0
  %v887 = vadd.f32 %v488, %v886
  %v888 = vpop.f32.mrb[0].mxu0
  %889 = vmatprep.mubr.f32.mxu0 0.0
  %890 = vmatmul.mubr.f32.gmra.mrb[0].mxu0 %v117
  %v891 = vpop.f32.mrb[0].mxu0
  %v892 = vadd.f32 %v493, %v891
  %v893 = vpop.f32.mrb[0].mxu0
  %894 = vmatprep.mubr.f32.mxu0 0.0
  %895 = vmatmul.mubr.f32.gmra.mrb[0].mxu0 %v120
  %v896 = vpop.f32.mrb[0].mxu0
  %v897 = vadd.f32 %v498, %v896
  %v898 = vpop.f32.mrb[0].mxu0
  %899 = vmatprep.mubr.f32.mxu0 0.0
  %900 = vmatmul.mubr.f32.gmra.mrb[0].mxu0 %v123
  %v901 = vpop.f32.mrb[0].mxu0
  %v902 = vadd.f32 %v503, %v901
  %v903 = vpop.f32.mrb[0].mxu0
  %904 = vmatprep.mubr.f32.mxu0 0.0
  %905 = vmatmul.mubr.f32.gmra.mrb[0].mxu0 %v126
  %v906 = vpop.f32.mrb[0].mxu0
  %v907 = vadd.f32 %v508, %v906
  %v908 = vpop.f32.mrb[0].mxu0
  %909 = vmatprep.mubr.f32.mxu0 0.0
  %910 = vmatmul.mubr.f32.gmra.mrb[0].mxu0 %v129
  %v911 = vpop.f32.mrb[0].mxu0
  %v912 = vadd.f32 %v513, %v911
  %v913 = vpop.f32.mrb[0].mxu0
  %914 = vmatprep.mubr.f32.mxu0 0.0
  %915 = vmatmul.mubr.f32.gmra.mrb[0].mxu0 %v132
  %v916 = vpop.f32.mrb[0].mxu0
  %v917 = vadd.f32 %v518, %v916
  %v918 = vpop.f32.mrb[0].mxu0
  %919 = vmatprep.mubr.f32.mxu0 0.0
  %920 = vmatmul.mubr.f32.gmra.mrb[0].mxu0 %v135
  %v921 = vpop.f32.mrb[0].mxu0
  %v922 = vadd.f32 %v523, %v921
  %v923 = vpop.f32.mrb[0].mxu0
  %924 = vmatprep.mubr.f32.mxu0 0.0
  %925 = vmatmul.mubr.f32.gmra.mrb[0].mxu0 %v138
  %v926 = vpop.f32.mrb[0].mxu0
  %v927 = vadd.f32 %v528, %v926
  %v928 = vpop.f32.mrb[0].mxu0
  %929 = vmatprep.mubr.f32.mxu0 0.0
  %930 = vmatmul.mubr.f32.gmra.mrb[0].mxu0 %v141
  %v931 = vpop.f32.mrb[0].mxu0
  %v932 = vadd.f32 %v533, %v931
  %v933 = vpop.f32.mrb[0].mxu0
  %934 = vmatprep.mubr.f32.mxu0 0.0
  %935 = vmatmul.mubr.f32.gmra.mrb[0].mxu0 %v144
  %v936 = vpop.f32.mrb[0].mxu0
  %v937 = vadd.f32 %v538, %v936
  %v938 = vpop.f32.mrb[0].mxu0
  %939 = vmatprep.mubr.f32.mxu0 0.0
  %940 = vmatmul.mubr.f32.gmra.mrb[0].mxu0 %v147
  %v941 = vpop.f32.mrb[0].mxu0
  %v942 = vadd.f32 %v543, %v941
  %v943 = vpop.f32.mrb[0].mxu0
  %944 = vmatprep.mubr.f32.mxu0 0.0
  %945 = vmatmul.mubr.f32.gmra.mrb[0].mxu0 %v150
  %v946 = vpop.f32.mrb[0].mxu0
  %v947 = vadd.f32 %v548, %v946
  %v948 = vpop.f32.mrb[0].mxu0
  %949 = vmatprep.mubr.f32.mxu0 0.0
  %950 = vmatmul.mubr.f32.gmra.mrb[0].mxu0 %v153
  %v951 = vpop.f32.mrb[0].mxu0
  %v952 = vadd.f32 %v553, %v951
  %v953 = vpop.f32.mrb[0].mxu0
  %954 = vmatprep.mubr.f32.mxu0 0.0
  %955 = vmatmul.mubr.f32.gmra.mrb[0].mxu0 %v156
  %v956 = vpop.f32.mrb[0].mxu0
  %v957 = vadd.f32 %v558, %v956
  %v958 = vpop.f32.mrb[0].mxu0
  %959 = vmatprep.mubr.f32.mxu0 0.0
  %960 = vmatmul.mubr.f32.gmra.mrb[0].mxu0 %v159
  %v961 = vpop.f32.mrb[0].mxu0
  %v962 = vadd.f32 %v563, %v961
  %v963 = vpop.f32.mrb[0].mxu0
  %964 = vdwg.mxu0
  %s965 = scalar_lea.vmem %s1, 64
  %v966 = vld [vmem:[%s965] sm:$0xff]
  %v967 = vld [vmem:[%s965 + $0x8] sm:$0xff]
  %v968 = vld [vmem:[%s965 + $0x10] sm:$0xff]
  %v969 = vld [vmem:[%s965 + $0x18] sm:$0xf]
  %v971 = vsel %vm85, %v71, 0
  %v974 = vsel %vm164, %v969, 0
  %976 = vmatprep.subr.mxu0 0.0
  %977 = vmatpush1.msra.mxu0 %v966
  %978 = vmatprep.subr.mxu0 0.0
  %979 = vmatpush1.msra.mxu0 %v967
  %980 = vmatprep.subr.mxu0 0.0
  %981 = vmatpush1.msra.mxu0 %v968
  %982 = vmatprep.subr.mxu0 0.0
  %983 = vmatpush1.msra.mxu0 %v974
  %984 = vmatprep.subr.mxu0 0.0
  %985 = vmatpush1.msra.mxu0 0.0
  %986 = vmatprep.subr.mxu0 0.0
  %987 = vmatpush1.msra.mxu0 0.0
  %988 = vmatprep.subr.mxu0 0.0
  %989 = vmatpush1.msra.mxu0 0.0
  %990 = vmatprep.subr.mxu0 0.0
  %991 = vmatpush1.msra.mxu0 0.0
  %992 = vmatprep.subr.mxu0 0.0
  %993 = vmatpush1.msra.mxu0 0.0
  %994 = vmatprep.subr.mxu0 0.0
  %995 = vmatpush1.msra.mxu0 0.0
  %996 = vmatprep.subr.mxu0 0.0
  %997 = vmatpush1.msra.mxu0 0.0
  %998 = vmatprep.subr.mxu0 0.0
  %999 = vmatpush1.msra.mxu0 0.0
  %1000 = vmatprep.subr.mxu0 0.0
  %1001 = vmatpush1.msra.mxu0 0.0
  %1002 = vmatprep.subr.mxu0 0.0
  %1003 = vmatpush1.msra.mxu0 0.0
  %1004 = vmatprep.subr.mxu0 0.0
  %1005 = vmatpush1.msra.mxu0 0.0
  %1006 = vmatprep.subr.mxu0 0.0
  %1007 = vmatpush1.msra.mxu0 0.0
  %1008 = vmatprep.subr.mxu0 0.0
  %1009 = vmatpush1.msra.mxu0 0.0
  %1010 = vmatprep.subr.mxu0 0.0
  %1011 = vmatpush1.msra.mxu0 0.0
  %1012 = vmatprep.subr.mxu0 0.0
  %1013 = vmatpush1.msra.mxu0 0.0
  %1014 = vmatprep.subr.mxu0 0.0
  %1015 = vmatpush1.msra.mxu0 0.0
  %1016 = vmatprep.subr.mxu0 0.0
  %1017 = vmatpush1.msra.mxu0 0.0
  %1018 = vmatprep.subr.mxu0 0.0
  %1019 = vmatpush1.msra.mxu0 0.0
  %1020 = vmatprep.subr.mxu0 0.0
  %1021 = vmatpush1.msra.mxu0 0.0
  %1022 = vmatprep.subr.mxu0 0.0
  %1023 = vmatpush1.msra.mxu0 0.0
  %1024 = vmatprep.subr.mxu0 0.0
  %1025 = vmatpush1.msra.mxu0 0.0
  %1026 = vmatprep.subr.mxu0 0.0
  %1027 = vmatpush1.msra.mxu0 0.0
  %1028 = vmatprep.subr.mxu0 0.0
  %1029 = vmatpush1.msra.mxu0 0.0
  %1030 = vmatprep.subr.mxu0 0.0
  %1031 = vmatpush1.msra.mxu0 0.0
  %1032 = vmatprep.subr.mxu0 0.0
  %1033 = vmatpush1.msra.mxu0 0.0
  %1034 = vmatprep.subr.mxu0 0.0
  %1035 = vmatpush1.msra.mxu0 0.0
  %1036 = vmatprep.subr.mxu0 0.0
  %1037 = vmatpush1.msra.mxu0 0.0
  %1038 = vmatprep.subr.mxu0 0.0
  %1039 = vmatpush1.msra.mxu0 0.0
  %1040 = vmatprep.mubr.f32.mxu0 0.0
  %1041 = vmatmul.mubr.f32.gmra.mrb[0].mxu0 %v90
  %v1042 = vpop.f32.mrb[0].mxu0
  %v1043 = vadd.f32 0.0, %v1042
  %v1044 = vpop.f32.mrb[0].mxu0
  %1045 = vmatprep.mubr.f32.mxu0 0.0
  %1046 = vmatmul.mubr.f32.gmra.mrb[0].mxu0 %v93
  %v1047 = vpop.f32.mrb[0].mxu0
  %v1048 = vadd.f32 0.0, %v1047
  %v1049 = vpop.f32.mrb[0].mxu0
  %1050 = vmatprep.mubr.f32.mxu0 0.0
  %1051 = vmatmul.mubr.f32.gmra.mrb[0].mxu0 %v96
  %v1052 = vpop.f32.mrb[0].mxu0
  %v1053 = vadd.f32 0.0, %v1052
  %v1054 = vpop.f32.mrb[0].mxu0
  %1055 = vmatprep.mubr.f32.mxu0 0.0
  %1056 = vmatmul.mubr.f32.gmra.mrb[0].mxu0 %v99
  %v1057 = vpop.f32.mrb[0].mxu0
  %v1058 = vadd.f32 0.0, %v1057
  %v1059 = vpop.f32.mrb[0].mxu0
  %1060 = vmatprep.mubr.f32.mxu0 0.0
  %1061 = vmatmul.mubr.f32.gmra.mrb[0].mxu0 %v102
  %v1062 = vpop.f32.mrb[0].mxu0
  %v1063 = vadd.f32 0.0, %v1062
  %v1064 = vpop.f32.mrb[0].mxu0
  %1065 = vmatprep.mubr.f32.mxu0 0.0
  %1066 = vmatmul.mubr.f32.gmra.mrb[0].mxu0 %v105
  %v1067 = vpop.f32.mrb[0].mxu0
  %v1068 = vadd.f32 0.0, %v1067
  %v1069 = vpop.f32.mrb[0].mxu0
  %1070 = vmatprep.mubr.f32.mxu0 0.0
  %1071 = vmatmul.mubr.f32.gmra.mrb[0].mxu0 %v108
  %v1072 = vpop.f32.mrb[0].mxu0
  %v1073 = vadd.f32 0.0, %v1072
  %v1074 = vpop.f32.mrb[0].mxu0
  %1075 = vmatprep.mubr.f32.mxu0 0.0
  %1076 = vmatmul.mubr.f32.gmra.mrb[0].mxu0 %v111
  %v1077 = vpop.f32.mrb[0].mxu0
  %v1078 = vadd.f32 0.0, %v1077
  %v1079 = vpop.f32.mrb[0].mxu0
  %1080 = vmatprep.mubr.f32.mxu0 0.0
  %1081 = vmatmul.mubr.f32.gmra.mrb[0].mxu0 %v114
  %v1082 = vpop.f32.mrb[0].mxu0
  %v1083 = vadd.f32 0.0, %v1082
  %v1084 = vpop.f32.mrb[0].mxu0
  %1085 = vmatprep.mubr.f32.mxu0 0.0
  %1086 = vmatmul.mubr.f32.gmra.mrb[0].mxu0 %v117
  %v1087 = vpop.f32.mrb[0].mxu0
  %v1088 = vadd.f32 0.0, %v1087
  %v1089 = vpop.f32.mrb[0].mxu0
  %1090 = vmatprep.mubr.f32.mxu0 0.0
  %1091 = vmatmul.mubr.f32.gmra.mrb[0].mxu0 %v120
  %v1092 = vpop.f32.mrb[0].mxu0
  %v1093 = vadd.f32 0.0, %v1092
  %v1094 = vpop.f32.mrb[0].mxu0
  %1095 = vmatprep.mubr.f32.mxu0 0.0
  %1096 = vmatmul.mubr.f32.gmra.mrb[0].mxu0 %v123
  %v1097 = vpop.f32.mrb[0].mxu0
  %v1098 = vadd.f32 0.0, %v1097
  %v1099 = vpop.f32.mrb[0].mxu0
  %1100 = vmatprep.mubr.f32.mxu0 0.0
  %1101 = vmatmul.mubr.f32.gmra.mrb[0].mxu0 %v126
  %v1102 = vpop.f32.mrb[0].mxu0
  %v1103 = vadd.f32 0.0, %v1102
  %v1104 = vpop.f32.mrb[0].mxu0
  %1105 = vmatprep.mubr.f32.mxu0 0.0
  %1106 = vmatmul.mubr.f32.gmra.mrb[0].mxu0 %v129
  %v1107 = vpop.f32.mrb[0].mxu0
  %v1108 = vadd.f32 0.0, %v1107
  %v1109 = vpop.f32.mrb[0].mxu0
  %1110 = vmatprep.mubr.f32.mxu0 0.0
  %1111 = vmatmul.mubr.f32.gmra.mrb[0].mxu0 %v132
  %v1112 = vpop.f32.mrb[0].mxu0
  %v1113 = vadd.f32 0.0, %v1112
  %v1114 = vpop.f32.mrb[0].mxu0
  %1115 = vmatprep.mubr.f32.mxu0 0.0
  %1116 = vmatmul.mubr.f32.gmra.mrb[0].mxu0 %v135
  %v1117 = vpop.f32.mrb[0].mxu0
  %v1118 = vadd.f32 0.0, %v1117
  %v1119 = vpop.f32.mrb[0].mxu0
  %1120 = vmatprep.mubr.f32.mxu0 0.0
  %1121 = vmatmul.mubr.f32.gmra.mrb[0].mxu0 %v138
  %v1122 = vpop.f32.mrb[0].mxu0
  %v1123 = vadd.f32 0.0, %v1122
  %v1124 = vpop.f32.mrb[0].mxu0
  %1125 = vmatprep.mubr.f32.mxu0 0.0
  %1126 = vmatmul.mubr.f32.gmra.mrb[0].mxu0 %v141
  %v1127 = vpop.f32.mrb[0].mxu0
  %v1128 = vadd.f32 0.0, %v1127
  %v1129 = vpop.f32.mrb[0].mxu0
  %1130 = vmatprep.mubr.f32.mxu0 0.0
  %1131 = vmatmul.mubr.f32.gmra.mrb[0].mxu0 %v144
  %v1132 = vpop.f32.mrb[0].mxu0
  %v1133 = vadd.f32 0.0, %v1132
  %v1134 = vpop.f32.mrb[0].mxu0
  %1135 = vmatprep.mubr.f32.mxu0 0.0
  %1136 = vmatmul.mubr.f32.gmra.mrb[0].mxu0 %v147
  %v1137 = vpop.f32.mrb[0].mxu0
  %v1138 = vadd.f32 0.0, %v1137
  %v1139 = vpop.f32.mrb[0].mxu0
  %1140 = vmatprep.mubr.f32.mxu0 0.0
  %1141 = vmatmul.mubr.f32.gmra.mrb[0].mxu0 %v150
  %v1142 = vpop.f32.mrb[0].mxu0
  %v1143 = vadd.f32 0.0, %v1142
  %v1144 = vpop.f32.mrb[0].mxu0
  %1145 = vmatprep.mubr.f32.mxu0 0.0
  %1146 = vmatmul.mubr.f32.gmra.mrb[0].mxu0 %v153
  %v1147 = vpop.f32.mrb[0].mxu0
  %v1148 = vadd.f32 0.0, %v1147
  %v1149 = vpop.f32.mrb[0].mxu0
  %1150 = vmatprep.mubr.f32.mxu0 0.0
  %1151 = vmatmul.mubr.f32.gmra.mrb[0].mxu0 %v156
  %v1152 = vpop.f32.mrb[0].mxu0
  %v1153 = vadd.f32 0.0, %v1152
  %v1154 = vpop.f32.mrb[0].mxu0
  %1155 = vmatprep.mubr.f32.mxu0 0.0
  %1156 = vmatmul.mubr.f32.gmra.mrb[0].mxu0 %v159
  %v1157 = vpop.f32.mrb[0].mxu0
  %v1158 = vadd.f32 0.0, %v1157
  %v1159 = vpop.f32.mrb[0].mxu0
  %1160 = vmatprep.mubr.f32.mxu0 0.0
  %1161 = vmatmul.mubr.f32.gmra.mrb[0].mxu0 %v162
  %v1162 = vpop.f32.mrb[0].mxu0
  %v1163 = vadd.f32 0.0, %v1162
  %v1164 = vpop.f32.mrb[0].mxu0
  %1165 = vmatprep.mubr.f32.mxu0 0.0
  %1166 = vmatmul.mubr.f32.gmra.mrb[0].mxu0 %v971
  %v1167 = vpop.f32.mrb[0].mxu0
  %v1168 = vadd.f32 0.0, %v1167
  %v1169 = vpop.f32.mrb[0].mxu0
  %1170 = vdwg.mxu0
  %s1171 = scalar_lea.vmem %s2, 64
  %v1172 = vld [vmem:[%s1171] sm:$0xff]
  %v1173 = vld [vmem:[%s1171 + $0x8] sm:$0xff]
  %v1174 = vld [vmem:[%s1171 + $0x10] sm:$0xff]
  %v1175 = vld [vmem:[%s1171 + $0x18] sm:$0xf]
  %v1177 = vsel %vm164, %v1175, 0
  %1179 = vmatprep.subr.mxu0 0.0
  %1180 = vmatpush1.msra.mxu0 %v1172
  %1181 = vmatprep.subr.mxu0 0.0
  %1182 = vmatpush1.msra.mxu0 %v1173
  %1183 = vmatprep.subr.mxu0 0.0
  %1184 = vmatpush1.msra.mxu0 %v1174
  %1185 = vmatprep.subr.mxu0 0.0
  %1186 = vmatpush1.msra.mxu0 %v1177
  %1187 = vmatprep.subr.mxu0 0.0
  %1188 = vmatpush1.msra.mxu0 0.0
  %1189 = vmatprep.subr.mxu0 0.0
  %1190 = vmatpush1.msra.mxu0 0.0
  %1191 = vmatprep.subr.mxu0 0.0
  %1192 = vmatpush1.msra.mxu0 0.0
  %1193 = vmatprep.subr.mxu0 0.0
  %1194 = vmatpush1.msra.mxu0 0.0
  %1195 = vmatprep.subr.mxu0 0.0
  %1196 = vmatpush1.msra.mxu0 0.0
  %1197 = vmatprep.subr.mxu0 0.0
  %1198 = vmatpush1.msra.mxu0 0.0
  %1199 = vmatprep.subr.mxu0 0.0
  %1200 = vmatpush1.msra.mxu0 0.0
  %1201 = vmatprep.subr.mxu0 0.0
  %1202 = vmatpush1.msra.mxu0 0.0
  %1203 = vmatprep.subr.mxu0 0.0
  %1204 = vmatpush1.msra.mxu0 0.0
  %1205 = vmatprep.subr.mxu0 0.0
  %1206 = vmatpush1.msra.mxu0 0.0
  %1207 = vmatprep.subr.mxu0 0.0
  %1208 = vmatpush1.msra.mxu0 0.0
  %1209 = vmatprep.subr.mxu0 0.0
  %1210 = vmatpush1.msra.mxu0 0.0
  %1211 = vmatprep.subr.mxu0 0.0
  %1212 = vmatpush1.msra.mxu0 0.0
  %1213 = vmatprep.subr.mxu0 0.0
  %1214 = vmatpush1.msra.mxu0 0.0
  %1215 = vmatprep.subr.mxu0 0.0
  %1216 = vmatpush1.msra.mxu0 0.0
  %1217 = vmatprep.subr.mxu0 0.0
  %1218 = vmatpush1.msra.mxu0 0.0
  %1219 = vmatprep.subr.mxu0 0.0
  %1220 = vmatpush1.msra.mxu0 0.0
  %1221 = vmatprep.subr.mxu0 0.0
  %1222 = vmatpush1.msra.mxu0 0.0
  %1223 = vmatprep.subr.mxu0 0.0
  %1224 = vmatpush1.msra.mxu0 0.0
  %1225 = vmatprep.subr.mxu0 0.0
  %1226 = vmatpush1.msra.mxu0 0.0
  %1227 = vmatprep.subr.mxu0 0.0
  %1228 = vmatpush1.msra.mxu0 0.0
  %1229 = vmatprep.subr.mxu0 0.0
  %1230 = vmatpush1.msra.mxu0 0.0
  %1231 = vmatprep.subr.mxu0 0.0
  %1232 = vmatpush1.msra.mxu0 0.0
  %1233 = vmatprep.subr.mxu0 0.0
  %1234 = vmatpush1.msra.mxu0 0.0
  %1235 = vmatprep.subr.mxu0 0.0
  %1236 = vmatpush1.msra.mxu0 0.0
  %1237 = vmatprep.subr.mxu0 0.0
  %1238 = vmatpush1.msra.mxu0 0.0
  %1239 = vmatprep.subr.mxu0 0.0
  %1240 = vmatpush1.msra.mxu0 0.0
  %1241 = vmatprep.subr.mxu0 0.0
  %1242 = vmatpush1.msra.mxu0 0.0
  %1243 = vmatprep.mubr.f32.mxu0 0.0
  %1244 = vmatmul.mubr.f32.gmra.mrb[0].mxu0 %v90
  %v1245 = vpop.f32.mrb[0].mxu0
  %v1246 = vadd.f32 0.0, %v1245
  %v1247 = vpop.f32.mrb[0].mxu0
  %1248 = vmatprep.mubr.f32.mxu0 0.0
  %1249 = vmatmul.mubr.f32.gmra.mrb[0].mxu0 %v93
  %v1250 = vpop.f32.mrb[0].mxu0
  %v1251 = vadd.f32 0.0, %v1250
  %v1252 = vpop.f32.mrb[0].mxu0
  %1253 = vmatprep.mubr.f32.mxu0 0.0
  %1254 = vmatmul.mubr.f32.gmra.mrb[0].mxu0 %v96
  %v1255 = vpop.f32.mrb[0].mxu0
  %v1256 = vadd.f32 0.0, %v1255
  %v1257 = vpop.f32.mrb[0].mxu0
  %1258 = vmatprep.mubr.f32.mxu0 0.0
  %1259 = vmatmul.mubr.f32.gmra.mrb[0].mxu0 %v99
  %v1260 = vpop.f32.mrb[0].mxu0
  %v1261 = vadd.f32 0.0, %v1260
  %v1262 = vpop.f32.mrb[0].mxu0
  %1263 = vmatprep.mubr.f32.mxu0 0.0
  %1264 = vmatmul.mubr.f32.gmra.mrb[0].mxu0 %v102
  %v1265 = vpop.f32.mrb[0].mxu0
  %v1266 = vadd.f32 0.0, %v1265
  %v1267 = vpop.f32.mrb[0].mxu0
  %1268 = vmatprep.mubr.f32.mxu0 0.0
  %1269 = vmatmul.mubr.f32.gmra.mrb[0].mxu0 %v105
  %v1270 = vpop.f32.mrb[0].mxu0
  %v1271 = vadd.f32 0.0, %v1270
  %v1272 = vpop.f32.mrb[0].mxu0
  %1273 = vmatprep.mubr.f32.mxu0 0.0
  %1274 = vmatmul.mubr.f32.gmra.mrb[0].mxu0 %v108
  %v1275 = vpop.f32.mrb[0].mxu0
  %v1276 = vadd.f32 0.0, %v1275
  %v1277 = vpop.f32.mrb[0].mxu0
  %1278 = vmatprep.mubr.f32.mxu0 0.0
  %1279 = vmatmul.mubr.f32.gmra.mrb[0].mxu0 %v111
  %v1280 = vpop.f32.mrb[0].mxu0
  %v1281 = vadd.f32 0.0, %v1280
  %v1282 = vpop.f32.mrb[0].mxu0
  %1283 = vmatprep.mubr.f32.mxu0 0.0
  %1284 = vmatmul.mubr.f32.gmra.mrb[0].mxu0 %v114
  %v1285 = vpop.f32.mrb[0].mxu0
  %v1286 = vadd.f32 0.0, %v1285
  %v1287 = vpop.f32.mrb[0].mxu0
  %1288 = vmatprep.mubr.f32.mxu0 0.0
  %1289 = vmatmul.mubr.f32.gmra.mrb[0].mxu0 %v117
  %v1290 = vpop.f32.mrb[0].mxu0
  %v1291 = vadd.f32 0.0, %v1290
  %v1292 = vpop.f32.mrb[0].mxu0
  %1293 = vmatprep.mubr.f32.mxu0 0.0
  %1294 = vmatmul.mubr.f32.gmra.mrb[0].mxu0 %v120
  %v1295 = vpop.f32.mrb[0].mxu0
  %v1296 = vadd.f32 0.0, %v1295
  %v1297 = vpop.f32.mrb[0].mxu0
  %1298 = vmatprep.mubr.f32.mxu0 0.0
  %1299 = vmatmul.mubr.f32.gmra.mrb[0].mxu0 %v123
  %v1300 = vpop.f32.mrb[0].mxu0
  %v1301 = vadd.f32 0.0, %v1300
  %v1302 = vpop.f32.mrb[0].mxu0
  %1303 = vmatprep.mubr.f32.mxu0 0.0
  %1304 = vmatmul.mubr.f32.gmra.mrb[0].mxu0 %v126
  %v1305 = vpop.f32.mrb[0].mxu0
  %v1306 = vadd.f32 0.0, %v1305
  %v1307 = vpop.f32.mrb[0].mxu0
  %1308 = vmatprep.mubr.f32.mxu0 0.0
  %1309 = vmatmul.mubr.f32.gmra.mrb[0].mxu0 %v129
  %v1310 = vpop.f32.mrb[0].mxu0
  %v1311 = vadd.f32 0.0, %v1310
  %v1312 = vpop.f32.mrb[0].mxu0
  %1313 = vmatprep.mubr.f32.mxu0 0.0
  %1314 = vmatmul.mubr.f32.gmra.mrb[0].mxu0 %v132
  %v1315 = vpop.f32.mrb[0].mxu0
  %v1316 = vadd.f32 0.0, %v1315
  %v1317 = vpop.f32.mrb[0].mxu0
  %1318 = vmatprep.mubr.f32.mxu0 0.0
  %1319 = vmatmul.mubr.f32.gmra.mrb[0].mxu0 %v135
  %v1320 = vpop.f32.mrb[0].mxu0
  %v1321 = vadd.f32 0.0, %v1320
  %v1322 = vpop.f32.mrb[0].mxu0
  %1323 = vmatprep.mubr.f32.mxu0 0.0
  %1324 = vmatmul.mubr.f32.gmra.mrb[0].mxu0 %v138
  %v1325 = vpop.f32.mrb[0].mxu0
  %v1326 = vadd.f32 0.0, %v1325
  %v1327 = vpop.f32.mrb[0].mxu0
  %1328 = vmatprep.mubr.f32.mxu0 0.0
  %1329 = vmatmul.mubr.f32.gmra.mrb[0].mxu0 %v141
  %v1330 = vpop.f32.mrb[0].mxu0
  %v1331 = vadd.f32 0.0, %v1330
  %v1332 = vpop.f32.mrb[0].mxu0
  %1333 = vmatprep.mubr.f32.mxu0 0.0
  %1334 = vmatmul.mubr.f32.gmra.mrb[0].mxu0 %v144
  %v1335 = vpop.f32.mrb[0].mxu0
  %v1336 = vadd.f32 0.0, %v1335
  %v1337 = vpop.f32.mrb[0].mxu0
  %1338 = vmatprep.mubr.f32.mxu0 0.0
  %1339 = vmatmul.mubr.f32.gmra.mrb[0].mxu0 %v147
  %v1340 = vpop.f32.mrb[0].mxu0
  %v1341 = vadd.f32 0.0, %v1340
  %v1342 = vpop.f32.mrb[0].mxu0
  %1343 = vmatprep.mubr.f32.mxu0 0.0
  %1344 = vmatmul.mubr.f32.gmra.mrb[0].mxu0 %v150
  %v1345 = vpop.f32.mrb[0].mxu0
  %v1346 = vadd.f32 0.0, %v1345
  %v1347 = vpop.f32.mrb[0].mxu0
  %1348 = vmatprep.mubr.f32.mxu0 0.0
  %1349 = vmatmul.mubr.f32.gmra.mrb[0].mxu0 %v153
  %v1350 = vpop.f32.mrb[0].mxu0
  %v1351 = vadd.f32 0.0, %v1350
  %v1352 = vpop.f32.mrb[0].mxu0
  %1353 = vmatprep.mubr.f32.mxu0 0.0
  %1354 = vmatmul.mubr.f32.gmra.mrb[0].mxu0 %v156
  %v1355 = vpop.f32.mrb[0].mxu0
  %v1356 = vadd.f32 0.0, %v1355
  %v1357 = vpop.f32.mrb[0].mxu0
  %1358 = vmatprep.mubr.f32.mxu0 0.0
  %1359 = vmatmul.mubr.f32.gmra.mrb[0].mxu0 %v159
  %v1360 = vpop.f32.mrb[0].mxu0
  %v1361 = vadd.f32 0.0, %v1360
  %v1362 = vpop.f32.mrb[0].mxu0
  %1363 = vmatprep.mubr.f32.mxu0 0.0
  %1364 = vmatmul.mubr.f32.gmra.mrb[0].mxu0 %v162
  %v1365 = vpop.f32.mrb[0].mxu0
  %v1366 = vadd.f32 0.0, %v1365
  %v1367 = vpop.f32.mrb[0].mxu0
  %1368 = vmatprep.mubr.f32.mxu0 0.0
  %1369 = vmatmul.mubr.f32.gmra.mrb[0].mxu0 %v971
  %v1370 = vpop.f32.mrb[0].mxu0
  %v1371 = vadd.f32 0.0, %v1370
  %v1372 = vpop.f32.mrb[0].mxu0
  %1373 = vdwg.mxu0
  %v1374 = vadd.f32 %v639, %v1043
  %v1375 = vadd.f32 %v644, %v1048
  %v1376 = vadd.f32 %v649, %v1053
  %v1377 = vadd.f32 %v654, %v1058
  %v1378 = vadd.f32 %v659, %v1063
  %v1379 = vadd.f32 %v664, %v1068
  %v1380 = vadd.f32 %v669, %v1073
  %v1381 = vadd.f32 %v674, %v1078
  %v1382 = vadd.f32 %v679, %v1083
  %v1383 = vadd.f32 %v684, %v1088
  %v1384 = vadd.f32 %v689, %v1093
  %v1385 = vadd.f32 %v694, %v1098
  %v1386 = vadd.f32 %v699, %v1103
  %v1387 = vadd.f32 %v704, %v1108
  %v1388 = vadd.f32 %v709, %v1113
  %v1389 = vadd.f32 %v714, %v1118
  %v1390 = vadd.f32 %v719, %v1123
  %v1391 = vadd.f32 %v724, %v1128
  %v1392 = vadd.f32 %v729, %v1133
  %v1393 = vadd.f32 %v734, %v1138
  %v1394 = vadd.f32 %v739, %v1143
  %v1395 = vadd.f32 %v744, %v1148
  %v1396 = vadd.f32 %v749, %v1153
  %v1397 = vadd.f32 %v754, %v1158
  %v1398 = vadd.f32 %v759, %v1163
  %v1399 = vadd.f32 %v764, %v1168
  %v1400 = vadd.f32 %v837, %v1246
  %v1401 = vadd.f32 %v842, %v1251
  %v1402 = vadd.f32 %v847, %v1256
  %v1403 = vadd.f32 %v852, %v1261
  %v1404 = vadd.f32 %v857, %v1266
  %v1405 = vadd.f32 %v862, %v1271
  %v1406 = vadd.f32 %v867, %v1276
  %v1407 = vadd.f32 %v872, %v1281
  %v1408 = vadd.f32 %v877, %v1286
  %v1409 = vadd.f32 %v882, %v1291
  %v1410 = vadd.f32 %v887, %v1296
  %v1411 = vadd.f32 %v892, %v1301
  %v1412 = vadd.f32 %v897, %v1306
  %v1413 = vadd.f32 %v902, %v1311
  %v1414 = vadd.f32 %v907, %v1316
  %v1415 = vadd.f32 %v912, %v1321
  %v1416 = vadd.f32 %v917, %v1326
  %v1417 = vadd.f32 %v922, %v1331
  %v1418 = vadd.f32 %v927, %v1336
  %v1419 = vadd.f32 %v932, %v1341
  %v1420 = vadd.f32 %v937, %v1346
  %v1421 = vadd.f32 %v942, %v1351
  %v1422 = vadd.f32 %v947, %v1356
  %v1423 = vadd.f32 %v952, %v1361
  %v1424 = vadd.f32 %v957, %v1366
  %v1425 = vadd.f32 %v962, %v1371
  %v1426 = vmax.f32 %v1374, %v1400
  %v1427 = vmax.f32 %v1375, %v1401
  %v1428 = vmax.f32 %v1376, %v1402
  %v1429 = vmax.f32 %v1377, %v1403
  %v1430 = vmax.f32 %v1378, %v1404
  %v1431 = vmax.f32 %v1379, %v1405
  %v1432 = vmax.f32 %v1380, %v1406
  %v1433 = vmax.f32 %v1381, %v1407
  %v1434 = vmax.f32 %v1382, %v1408
  %v1435 = vmax.f32 %v1383, %v1409
  %v1436 = vmax.f32 %v1384, %v1410
  %v1437 = vmax.f32 %v1385, %v1411
  %v1438 = vmax.f32 %v1386, %v1412
  %v1439 = vmax.f32 %v1387, %v1413
  %v1440 = vmax.f32 %v1388, %v1414
  %v1441 = vmax.f32 %v1389, %v1415
  %v1442 = vmax.f32 %v1390, %v1416
  %v1443 = vmax.f32 %v1391, %v1417
  %v1444 = vmax.f32 %v1392, %v1418
  %v1445 = vmax.f32 %v1393, %v1419
  %v1446 = vmax.f32 %v1394, %v1420
  %v1447 = vmax.f32 %v1395, %v1421
  %v1448 = vmax.f32 %v1396, %v1422
  %v1449 = vmax.f32 %v1397, %v1423
  %v1450 = vmax.f32 %v1398, %v1424
  %v1451 = vmax.f32 %v1399, %v1425
  %vm1452 = vcmask 850944
  %v1453 = vsel %vm1452, %v1426, -inf
  %v1454 = vsel %vm1452, %v1427, -inf
  %v1455 = vmax.f32 %v1453, %v1454
  %v1456 = vsel %vm1452, %v1428, -inf
  %v1457 = vsel %vm1452, %v1429, -inf
  %v1458 = vmax.f32 %v1456, %v1457
  %v1459 = vsel %vm1452, %v1430, -inf
  %v1460 = vsel %vm1452, %v1431, -inf
  %v1461 = vmax.f32 %v1459, %v1460
  %v1462 = vsel %vm1452, %v1432, -inf
  %v1463 = vsel %vm1452, %v1433, -inf
  %v1464 = vmax.f32 %v1462, %v1463
  %v1465 = vsel %vm1452, %v1434, -inf
  %v1466 = vsel %vm1452, %v1435, -inf
  %v1467 = vmax.f32 %v1465, %v1466
  %v1468 = vsel %vm1452, %v1436, -inf
  %v1469 = vsel %vm1452, %v1437, -inf
  %v1470 = vmax.f32 %v1468, %v1469
  %v1471 = vsel %vm1452, %v1438, -inf
  %v1472 = vsel %vm1452, %v1439, -inf
  %v1473 = vmax.f32 %v1471, %v1472
  %v1474 = vsel %vm1452, %v1440, -inf
  %v1475 = vsel %vm1452, %v1441, -inf
  %v1476 = vmax.f32 %v1474, %v1475
  %v1477 = vsel %vm1452, %v1442, -inf
  %v1478 = vsel %vm1452, %v1443, -inf
  %v1479 = vmax.f32 %v1477, %v1478
  %v1480 = vsel %vm1452, %v1444, -inf
  %v1481 = vsel %vm1452, %v1445, -inf
  %v1482 = vmax.f32 %v1480, %v1481
  %v1483 = vsel %vm1452, %v1446, -inf
  %v1484 = vsel %vm1452, %v1447, -inf
  %v1485 = vmax.f32 %v1483, %v1484
  %v1486 = vsel %vm1452, %v1448, -inf
  %v1487 = vsel %vm1452, %v1449, -inf
  %v1488 = vmax.f32 %v1486, %v1487
  %v1489 = vsel %vm1452, %v1450, -inf
  %v1490 = vsel %vm1452, %v1451, -inf
  %v1491 = vmax.f32 %v1489, %v1490
  %v1492 = vld [vmem:[%s3] sm:$0x1]
  %v1494 = vlaneseq
  %v1495 = vshrl.u32 %v1494, 7
  %v1496 = vsub.s32 0, %v1495
  %v1497 = vrot.slane %v1492, %v1496
  %v1499 = vadd.f32 %v1455, %v1497
  %v1500 = vadd.f32 %v1458, %v1497
  %v1501 = vadd.f32 %v1461, %v1497
  %v1502 = vadd.f32 %v1464, %v1497
  %v1503 = vadd.f32 %v1467, %v1497
  %v1504 = vadd.f32 %v1470, %v1497
  %v1505 = vadd.f32 %v1473, %v1497
  %v1506 = vadd.f32 %v1476, %v1497
  %v1507 = vadd.f32 %v1479, %v1497
  %v1508 = vadd.f32 %v1482, %v1497
  %v1509 = vadd.f32 %v1485, %v1497
  %v1510 = vadd.f32 %v1488, %v1497
  %v1511 = vadd.f32 %v1491, %v1497
  %v1512 = vmax.f32 %v1499, 0.0
  %v1513 = vmax.f32 %v1500, 0.0
  %v1514 = vmax.f32 %v1501, 0.0
  %v1515 = vmax.f32 %v1502, 0.0
  %v1516 = vmax.f32 %v1503, 0.0
  %v1517 = vmax.f32 %v1504, 0.0
  %v1518 = vmax.f32 %v1505, 0.0
  %v1519 = vmax.f32 %v1506, 0.0
  %v1520 = vmax.f32 %v1507, 0.0
  %v1521 = vmax.f32 %v1508, 0.0
  %v1522 = vmax.f32 %v1509, 0.0
  %v1523 = vmax.f32 %v1510, 0.0
  %v1524 = vmax.f32 %v1511, 0.0
  %v1525 = vld [vmem:[%s4] sm:$0xff]
  %v1526 = vld [vmem:[%s4 + $0x8] sm:$0xff]
  %v1527 = vld [vmem:[%s4 + $0x10] sm:$0xff]
  %v1528 = vld [vmem:[%s4 + $0x18] sm:$0xff]
  %v1529 = vld [vmem:[%s4 + $0x20] sm:$0xff]
  %v1530 = vld [vmem:[%s4 + $0x28] sm:$0xff]
  %v1531 = vld [vmem:[%s4 + $0x30] sm:$0xff]
  %v1532 = vld [vmem:[%s4 + $0x38] sm:$0xff]
  %v1533 = vld [vmem:[%s4 + $0x40] sm:$0xff]
  %v1534 = vld [vmem:[%s4 + $0x48] sm:$0xff]
  %v1535 = vld [vmem:[%s4 + $0x50] sm:$0xff]
  %v1536 = vld [vmem:[%s4 + $0x58] sm:$0xff]
  %v1537 = vld [vmem:[%s4 + $0x60] sm:$0xff]
  %v1538 = vld [vmem:[%s5] sm:$0xff]
  %v1539 = vld [vmem:[%s5 + $0x8] sm:$0xff]
  %v1540 = vld [vmem:[%s5 + $0x10] sm:$0xff]
  %v1541 = vld [vmem:[%s5 + $0x18] sm:$0xff]
  %v1542 = vld [vmem:[%s5 + $0x20] sm:$0xff]
  %v1543 = vld [vmem:[%s5 + $0x28] sm:$0xff]
  %v1544 = vld [vmem:[%s5 + $0x30] sm:$0xff]
  %v1545 = vld [vmem:[%s5 + $0x38] sm:$0xff]
  %v1546 = vld [vmem:[%s5 + $0x40] sm:$0xff]
  %v1547 = vld [vmem:[%s5 + $0x48] sm:$0xff]
  %v1548 = vld [vmem:[%s5 + $0x50] sm:$0xff]
  %v1549 = vld [vmem:[%s5 + $0x58] sm:$0xff]
  %v1550 = vld [vmem:[%s5 + $0x60] sm:$0xff]
  %s1551 = scalar_lea.vmem %s4, 104
  %v1552 = vld [vmem:[%s1551] sm:$0xff]
  %v1553 = vld [vmem:[%s1551 + $0x8] sm:$0xff]
  %v1554 = vld [vmem:[%s1551 + $0x10] sm:$0xff]
  %v1555 = vld [vmem:[%s1551 + $0x18] sm:$0xff]
  %v1556 = vld [vmem:[%s1551 + $0x20] sm:$0xff]
  %v1557 = vld [vmem:[%s1551 + $0x28] sm:$0xff]
  %v1558 = vld [vmem:[%s1551 + $0x30] sm:$0xff]
  %v1559 = vld [vmem:[%s1551 + $0x38] sm:$0xff]
  %v1560 = vld [vmem:[%s1551 + $0x40] sm:$0xff]
  %v1561 = vld [vmem:[%s1551 + $0x48] sm:$0xff]
  %v1562 = vld [vmem:[%s1551 + $0x50] sm:$0xff]
  %v1563 = vld [vmem:[%s1551 + $0x58] sm:$0xff]
  %v1564 = vld [vmem:[%s1551 + $0x60] sm:$0xff]
  %v1566 = vsel %vm1452, %v1513, 0
  %v1569 = vsel %vm1452, %v1514, 0
  %v1572 = vsel %vm1452, %v1515, 0
  %v1575 = vsel %vm1452, %v1516, 0
  %v1578 = vsel %vm1452, %v1517, 0
  %v1581 = vsel %vm1452, %v1518, 0
  %v1584 = vsel %vm1452, %v1519, 0
  %v1587 = vsel %vm1452, %v1520, 0
  %v1590 = vsel %vm1452, %v1521, 0
  %v1593 = vsel %vm1452, %v1522, 0
  %v1596 = vsel %vm1452, %v1523, 0
  %1598 = vmatprep.subr.mxu0 0.0
  %1599 = vmatpush1.msra.mxu0 %v1552
  %1600 = vmatprep.subr.mxu0 0.0
  %1601 = vmatpush1.msra.mxu0 %v1553
  %1602 = vmatprep.subr.mxu0 0.0
  %1603 = vmatpush1.msra.mxu0 %v1554
  %1604 = vmatprep.subr.mxu0 0.0
  %1605 = vmatpush1.msra.mxu0 %v1555
  %1606 = vmatprep.subr.mxu0 0.0
  %1607 = vmatpush1.msra.mxu0 %v1556
  %1608 = vmatprep.subr.mxu0 0.0
  %1609 = vmatpush1.msra.mxu0 %v1557
  %1610 = vmatprep.subr.mxu0 0.0
  %1611 = vmatpush1.msra.mxu0 %v1558
  %1612 = vmatprep.subr.mxu0 0.0
  %1613 = vmatpush1.msra.mxu0 %v1559
  %1614 = vmatprep.subr.mxu0 0.0
  %1615 = vmatpush1.msra.mxu0 %v1560
  %1616 = vmatprep.subr.mxu0 0.0
  %1617 = vmatpush1.msra.mxu0 %v1561
  %1618 = vmatprep.subr.mxu0 0.0
  %1619 = vmatpush1.msra.mxu0 %v1562
  %1620 = vmatprep.subr.mxu0 0.0
  %1621 = vmatpush1.msra.mxu0 %v1563
  %1622 = vmatprep.subr.mxu0 0.0
  %1623 = vmatpush1.msra.mxu0 %v1564
  %1624 = vmatprep.subr.mxu0 0.0
  %1625 = vmatpush1.msra.mxu0 0.0
  %1626 = vmatprep.subr.mxu0 0.0
  %1627 = vmatpush1.msra.mxu0 0.0
  %1628 = vmatprep.subr.mxu0 0.0
  %1629 = vmatpush1.msra.mxu0 0.0
  %1630 = vmatprep.subr.mxu0 0.0
  %1631 = vmatpush1.msra.mxu0 0.0
  %1632 = vmatprep.subr.mxu0 0.0
  %1633 = vmatpush1.msra.mxu0 0.0
  %1634 = vmatprep.subr.mxu0 0.0
  %1635 = vmatpush1.msra.mxu0 0.0
  %1636 = vmatprep.subr.mxu0 0.0
  %1637 = vmatpush1.msra.mxu0 0.0
  %1638 = vmatprep.subr.mxu0 0.0
  %1639 = vmatpush1.msra.mxu0 0.0
  %1640 = vmatprep.subr.mxu0 0.0
  %1641 = vmatpush1.msra.mxu0 0.0
  %1642 = vmatprep.subr.mxu0 0.0
  %1643 = vmatpush1.msra.mxu0 0.0
  %1644 = vmatprep.subr.mxu0 0.0
  %1645 = vmatpush1.msra.mxu0 0.0
  %1646 = vmatprep.subr.mxu0 0.0
  %1647 = vmatpush1.msra.mxu0 0.0
  %1648 = vmatprep.subr.mxu0 0.0
  %1649 = vmatpush1.msra.mxu0 0.0
  %1650 = vmatprep.subr.mxu0 0.0
  %1651 = vmatpush1.msra.mxu0 0.0
  %1652 = vmatprep.subr.mxu0 0.0
  %1653 = vmatpush1.msra.mxu0 0.0
  %1654 = vmatprep.subr.mxu0 0.0
  %1655 = vmatpush1.msra.mxu0 0.0
  %1656 = vmatprep.subr.mxu0 0.0
  %1657 = vmatpush1.msra.mxu0 0.0
  %1658 = vmatprep.subr.mxu0 0.0
  %1659 = vmatpush1.msra.mxu0 0.0
  %1660 = vmatprep.subr.mxu0 0.0
  %1661 = vmatpush1.msra.mxu0 0.0
  %1662 = vmatprep.mubr.f32.mxu0 0.0
  %1663 = vmatmul.mubr.f32.gmra.mrb[0].mxu0 %v1566
  %v1664 = vpop.f32.mrb[0].mxu0
  %v1665 = vadd.f32 0.0, %v1664
  %v1666 = vpop.f32.mrb[0].mxu0
  %1667 = vmatprep.mubr.f32.mxu0 0.0
  %1668 = vmatmul.mubr.f32.gmra.mrb[0].mxu0 %v1569
  %v1669 = vpop.f32.mrb[0].mxu0
  %v1670 = vadd.f32 0.0, %v1669
  %v1671 = vpop.f32.mrb[0].mxu0
  %1672 = vmatprep.mubr.f32.mxu0 0.0
  %1673 = vmatmul.mubr.f32.gmra.mrb[0].mxu0 %v1572
  %v1674 = vpop.f32.mrb[0].mxu0
  %v1675 = vadd.f32 0.0, %v1674
  %v1676 = vpop.f32.mrb[0].mxu0
  %1677 = vmatprep.mubr.f32.mxu0 0.0
  %1678 = vmatmul.mubr.f32.gmra.mrb[0].mxu0 %v1575
  %v1679 = vpop.f32.mrb[0].mxu0
  %v1680 = vadd.f32 0.0, %v1679
  %v1681 = vpop.f32.mrb[0].mxu0
  %1682 = vmatprep.mubr.f32.mxu0 0.0
  %1683 = vmatmul.mubr.f32.gmra.mrb[0].mxu0 %v1578
  %v1684 = vpop.f32.mrb[0].mxu0
  %v1685 = vadd.f32 0.0, %v1684
  %v1686 = vpop.f32.mrb[0].mxu0
  %1687 = vmatprep.mubr.f32.mxu0 0.0
  %1688 = vmatmul.mubr.f32.gmra.mrb[0].mxu0 %v1581
  %v1689 = vpop.f32.mrb[0].mxu0
  %v1690 = vadd.f32 0.0, %v1689
  %v1691 = vpop.f32.mrb[0].mxu0
  %1692 = vmatprep.mubr.f32.mxu0 0.0
  %1693 = vmatmul.mubr.f32.gmra.mrb[0].mxu0 %v1584
  %v1694 = vpop.f32.mrb[0].mxu0
  %v1695 = vadd.f32 0.0, %v1694
  %v1696 = vpop.f32.mrb[0].mxu0
  %1697 = vmatprep.mubr.f32.mxu0 0.0
  %1698 = vmatmul.mubr.f32.gmra.mrb[0].mxu0 %v1587
  %v1699 = vpop.f32.mrb[0].mxu0
  %v1700 = vadd.f32 0.0, %v1699
  %v1701 = vpop.f32.mrb[0].mxu0
  %1702 = vmatprep.mubr.f32.mxu0 0.0
  %1703 = vmatmul.mubr.f32.gmra.mrb[0].mxu0 %v1590
  %v1704 = vpop.f32.mrb[0].mxu0
  %v1705 = vadd.f32 0.0, %v1704
  %v1706 = vpop.f32.mrb[0].mxu0
  %1707 = vmatprep.mubr.f32.mxu0 0.0
  %1708 = vmatmul.mubr.f32.gmra.mrb[0].mxu0 %v1593
  %v1709 = vpop.f32.mrb[0].mxu0
  %v1710 = vadd.f32 0.0, %v1709
  %v1711 = vpop.f32.mrb[0].mxu0
  %1712 = vmatprep.mubr.f32.mxu0 0.0
  %1713 = vmatmul.mubr.f32.gmra.mrb[0].mxu0 %v1596
  %v1714 = vpop.f32.mrb[0].mxu0
  %v1715 = vpop.f32.mrb[0].mxu0
  %1716 = vdwg.mxu0
  %s1717 = scalar_lea.vmem %s5, 104
  %v1718 = vld [vmem:[%s1717] sm:$0xff]
  %v1719 = vld [vmem:[%s1717 + $0x8] sm:$0xff]
  %v1720 = vld [vmem:[%s1717 + $0x10] sm:$0xff]
  %v1721 = vld [vmem:[%s1717 + $0x18] sm:$0xff]
  %v1722 = vld [vmem:[%s1717 + $0x20] sm:$0xff]
  %v1723 = vld [vmem:[%s1717 + $0x28] sm:$0xff]
  %v1724 = vld [vmem:[%s1717 + $0x30] sm:$0xff]
  %v1725 = vld [vmem:[%s1717 + $0x38] sm:$0xff]
  %v1726 = vld [vmem:[%s1717 + $0x40] sm:$0xff]
  %v1727 = vld [vmem:[%s1717 + $0x48] sm:$0xff]
  %v1728 = vld [vmem:[%s1717 + $0x50] sm:$0xff]
  %v1729 = vld [vmem:[%s1717 + $0x58] sm:$0xff]
  %v1730 = vld [vmem:[%s1717 + $0x60] sm:$0xff]
  %1731 = vmatprep.subr.mxu0 0.0
  %1732 = vmatpush1.msra.mxu0 %v1718
  %1733 = vmatprep.subr.mxu0 0.0
  %1734 = vmatpush1.msra.mxu0 %v1719
  %1735 = vmatprep.subr.mxu0 0.0
  %1736 = vmatpush1.msra.mxu0 %v1720
  %1737 = vmatprep.subr.mxu0 0.0
  %1738 = vmatpush1.msra.mxu0 %v1721
  %1739 = vmatprep.subr.mxu0 0.0
  %1740 = vmatpush1.msra.mxu0 %v1722
  %1741 = vmatprep.subr.mxu0 0.0
  %1742 = vmatpush1.msra.mxu0 %v1723
  %1743 = vmatprep.subr.mxu0 0.0
  %1744 = vmatpush1.msra.mxu0 %v1724
  %1745 = vmatprep.subr.mxu0 0.0
  %1746 = vmatpush1.msra.mxu0 %v1725
  %1747 = vmatprep.subr.mxu0 0.0
  %1748 = vmatpush1.msra.mxu0 %v1726
  %1749 = vmatprep.subr.mxu0 0.0
  %1750 = vmatpush1.msra.mxu0 %v1727
  %1751 = vmatprep.subr.mxu0 0.0
  %1752 = vmatpush1.msra.mxu0 %v1728
  %1753 = vmatprep.subr.mxu0 0.0
  %1754 = vmatpush1.msra.mxu0 %v1729
  %1755 = vmatprep.subr.mxu0 0.0
  %1756 = vmatpush1.msra.mxu0 %v1730
  %1757 = vmatprep.subr.mxu0 0.0
  %1758 = vmatpush1.msra.mxu0 0.0
  %1759 = vmatprep.subr.mxu0 0.0
  %1760 = vmatpush1.msra.mxu0 0.0
  %1761 = vmatprep.subr.mxu0 0.0
  %1762 = vmatpush1.msra.mxu0 0.0
  %1763 = vmatprep.subr.mxu0 0.0
  %1764 = vmatpush1.msra.mxu0 0.0
  %1765 = vmatprep.subr.mxu0 0.0
  %1766 = vmatpush1.msra.mxu0 0.0
  %1767 = vmatprep.subr.mxu0 0.0
  %1768 = vmatpush1.msra.mxu0 0.0
  %1769 = vmatprep.subr.mxu0 0.0
  %1770 = vmatpush1.msra.mxu0 0.0
  %1771 = vmatprep.subr.mxu0 0.0
  %1772 = vmatpush1.msra.mxu0 0.0
  %1773 = vmatprep.subr.mxu0 0.0
  %1774 = vmatpush1.msra.mxu0 0.0
  %1775 = vmatprep.subr.mxu0 0.0
  %1776 = vmatpush1.msra.mxu0 0.0
  %1777 = vmatprep.subr.mxu0 0.0
  %1778 = vmatpush1.msra.mxu0 0.0
  %1779 = vmatprep.subr.mxu0 0.0
  %1780 = vmatpush1.msra.mxu0 0.0
  %1781 = vmatprep.subr.mxu0 0.0
  %1782 = vmatpush1.msra.mxu0 0.0
  %1783 = vmatprep.subr.mxu0 0.0
  %1784 = vmatpush1.msra.mxu0 0.0
  %1785 = vmatprep.subr.mxu0 0.0
  %1786 = vmatpush1.msra.mxu0 0.0
  %1787 = vmatprep.subr.mxu0 0.0
  %1788 = vmatpush1.msra.mxu0 0.0
  %1789 = vmatprep.subr.mxu0 0.0
  %1790 = vmatpush1.msra.mxu0 0.0
  %1791 = vmatprep.subr.mxu0 0.0
  %1792 = vmatpush1.msra.mxu0 0.0
  %1793 = vmatprep.subr.mxu0 0.0
  %1794 = vmatpush1.msra.mxu0 0.0
  %1795 = vmatprep.mubr.f32.mxu0 0.0
  %1796 = vmatmul.mubr.f32.gmra.mrb[0].mxu0 %v1566
  %v1797 = vpop.f32.mrb[0].mxu0
  %v1798 = vadd.f32 0.0, %v1797
  %v1799 = vpop.f32.mrb[0].mxu0
  %1800 = vmatprep.mubr.f32.mxu0 0.0
  %1801 = vmatmul.mubr.f32.gmra.mrb[0].mxu0 %v1569
  %v1802 = vpop.f32.mrb[0].mxu0
  %v1803 = vadd.f32 0.0, %v1802
  %v1804 = vpop.f32.mrb[0].mxu0
  %1805 = vmatprep.mubr.f32.mxu0 0.0
  %1806 = vmatmul.mubr.f32.gmra.mrb[0].mxu0 %v1572
  %v1807 = vpop.f32.mrb[0].mxu0
  %v1808 = vadd.f32 0.0, %v1807
  %v1809 = vpop.f32.mrb[0].mxu0
  %1810 = vmatprep.mubr.f32.mxu0 0.0
  %1811 = vmatmul.mubr.f32.gmra.mrb[0].mxu0 %v1575
  %v1812 = vpop.f32.mrb[0].mxu0
  %v1813 = vadd.f32 0.0, %v1812
  %v1814 = vpop.f32.mrb[0].mxu0
  %1815 = vmatprep.mubr.f32.mxu0 0.0
  %1816 = vmatmul.mubr.f32.gmra.mrb[0].mxu0 %v1578
  %v1817 = vpop.f32.mrb[0].mxu0
  %v1818 = vadd.f32 0.0, %v1817
  %v1819 = vpop.f32.mrb[0].mxu0
  %1820 = vmatprep.mubr.f32.mxu0 0.0
  %1821 = vmatmul.mubr.f32.gmra.mrb[0].mxu0 %v1581
  %v1822 = vpop.f32.mrb[0].mxu0
  %v1823 = vadd.f32 0.0, %v1822
  %v1824 = vpop.f32.mrb[0].mxu0
  %1825 = vmatprep.mubr.f32.mxu0 0.0
  %1826 = vmatmul.mubr.f32.gmra.mrb[0].mxu0 %v1584
  %v1827 = vpop.f32.mrb[0].mxu0
  %v1828 = vadd.f32 0.0, %v1827
  %v1829 = vpop.f32.mrb[0].mxu0
  %1830 = vmatprep.mubr.f32.mxu0 0.0
  %1831 = vmatmul.mubr.f32.gmra.mrb[0].mxu0 %v1587
  %v1832 = vpop.f32.mrb[0].mxu0
  %v1833 = vadd.f32 0.0, %v1832
  %v1834 = vpop.f32.mrb[0].mxu0
  %1835 = vmatprep.mubr.f32.mxu0 0.0
  %1836 = vmatmul.mubr.f32.gmra.mrb[0].mxu0 %v1590
  %v1837 = vpop.f32.mrb[0].mxu0
  %v1838 = vadd.f32 0.0, %v1837
  %v1839 = vpop.f32.mrb[0].mxu0
  %1840 = vmatprep.mubr.f32.mxu0 0.0
  %1841 = vmatmul.mubr.f32.gmra.mrb[0].mxu0 %v1593
  %v1842 = vpop.f32.mrb[0].mxu0
  %v1843 = vadd.f32 0.0, %v1842
  %v1844 = vpop.f32.mrb[0].mxu0
  %1845 = vmatprep.mubr.f32.mxu0 0.0
  %1846 = vmatmul.mubr.f32.gmra.mrb[0].mxu0 %v1596
  %v1847 = vpop.f32.mrb[0].mxu0
  %v1848 = vpop.f32.mrb[0].mxu0
  %1849 = vdwg.mxu0
  %v1851 = vsel %vm1452, %v1512, 0
  %1853 = vmatprep.subr.mxu0 0.0
  %1854 = vmatpush1.msra.mxu0 %v1525
  %1855 = vmatprep.subr.mxu0 0.0
  %1856 = vmatpush1.msra.mxu0 %v1526
  %1857 = vmatprep.subr.mxu0 0.0
  %1858 = vmatpush1.msra.mxu0 %v1527
  %1859 = vmatprep.subr.mxu0 0.0
  %1860 = vmatpush1.msra.mxu0 %v1528
  %1861 = vmatprep.subr.mxu0 0.0
  %1862 = vmatpush1.msra.mxu0 %v1529
  %1863 = vmatprep.subr.mxu0 0.0
  %1864 = vmatpush1.msra.mxu0 %v1530
  %1865 = vmatprep.subr.mxu0 0.0
  %1866 = vmatpush1.msra.mxu0 %v1531
  %1867 = vmatprep.subr.mxu0 0.0
  %1868 = vmatpush1.msra.mxu0 %v1532
  %1869 = vmatprep.subr.mxu0 0.0
  %1870 = vmatpush1.msra.mxu0 %v1533
  %1871 = vmatprep.subr.mxu0 0.0
  %1872 = vmatpush1.msra.mxu0 %v1534
  %1873 = vmatprep.subr.mxu0 0.0
  %1874 = vmatpush1.msra.mxu0 %v1535
  %1875 = vmatprep.subr.mxu0 0.0
  %1876 = vmatpush1.msra.mxu0 %v1536
  %1877 = vmatprep.subr.mxu0 0.0
  %1878 = vmatpush1.msra.mxu0 %v1537
  %1879 = vmatprep.subr.mxu0 0.0
  %1880 = vmatpush1.msra.mxu0 0.0
  %1881 = vmatprep.subr.mxu0 0.0
  %1882 = vmatpush1.msra.mxu0 0.0
  %1883 = vmatprep.subr.mxu0 0.0
  %1884 = vmatpush1.msra.mxu0 0.0
  %1885 = vmatprep.subr.mxu0 0.0
  %1886 = vmatpush1.msra.mxu0 0.0
  %1887 = vmatprep.subr.mxu0 0.0
  %1888 = vmatpush1.msra.mxu0 0.0
  %1889 = vmatprep.subr.mxu0 0.0
  %1890 = vmatpush1.msra.mxu0 0.0
  %1891 = vmatprep.subr.mxu0 0.0
  %1892 = vmatpush1.msra.mxu0 0.0
  %1893 = vmatprep.subr.mxu0 0.0
  %1894 = vmatpush1.msra.mxu0 0.0
  %1895 = vmatprep.subr.mxu0 0.0
  %1896 = vmatpush1.msra.mxu0 0.0
  %1897 = vmatprep.subr.mxu0 0.0
  %1898 = vmatpush1.msra.mxu0 0.0
  %1899 = vmatprep.subr.mxu0 0.0
  %1900 = vmatpush1.msra.mxu0 0.0
  %1901 = vmatprep.subr.mxu0 0.0
  %1902 = vmatpush1.msra.mxu0 0.0
  %1903 = vmatprep.subr.mxu0 0.0
  %1904 = vmatpush1.msra.mxu0 0.0
  %1905 = vmatprep.subr.mxu0 0.0
  %1906 = vmatpush1.msra.mxu0 0.0
  %1907 = vmatprep.subr.mxu0 0.0
  %1908 = vmatpush1.msra.mxu0 0.0
  %1909 = vmatprep.subr.mxu0 0.0
  %1910 = vmatpush1.msra.mxu0 0.0
  %1911 = vmatprep.subr.mxu0 0.0
  %1912 = vmatpush1.msra.mxu0 0.0
  %1913 = vmatprep.subr.mxu0 0.0
  %1914 = vmatpush1.msra.mxu0 0.0
  %1915 = vmatprep.subr.mxu0 0.0
  %1916 = vmatpush1.msra.mxu0 0.0
  %1917 = vmatprep.mubr.f32.mxu0 0.0
  %1918 = vmatmul.mubr.f32.gmra.mrb[0].mxu0 %v1851
  %v1919 = vpop.f32.mrb[0].mxu0
  %v1920 = vadd.f32 %v1665, %v1919
  %v1921 = vpop.f32.mrb[0].mxu0
  %1922 = vmatprep.mubr.f32.mxu0 0.0
  %1923 = vmatmul.mubr.f32.gmra.mrb[0].mxu0 %v1566
  %v1924 = vpop.f32.mrb[0].mxu0
  %v1925 = vadd.f32 %v1670, %v1924
  %v1926 = vpop.f32.mrb[0].mxu0
  %1927 = vmatprep.mubr.f32.mxu0 0.0
  %1928 = vmatmul.mubr.f32.gmra.mrb[0].mxu0 %v1569
  %v1929 = vpop.f32.mrb[0].mxu0
  %v1930 = vadd.f32 %v1675, %v1929
  %v1931 = vpop.f32.mrb[0].mxu0
  %1932 = vmatprep.mubr.f32.mxu0 0.0
  %1933 = vmatmul.mubr.f32.gmra.mrb[0].mxu0 %v1572
  %v1934 = vpop.f32.mrb[0].mxu0
  %v1935 = vadd.f32 %v1680, %v1934
  %v1936 = vpop.f32.mrb[0].mxu0
  %1937 = vmatprep.mubr.f32.mxu0 0.0
  %1938 = vmatmul.mubr.f32.gmra.mrb[0].mxu0 %v1575
  %v1939 = vpop.f32.mrb[0].mxu0
  %v1940 = vadd.f32 %v1685, %v1939
  %v1941 = vpop.f32.mrb[0].mxu0
  %1942 = vmatprep.mubr.f32.mxu0 0.0
  %1943 = vmatmul.mubr.f32.gmra.mrb[0].mxu0 %v1578
  %v1944 = vpop.f32.mrb[0].mxu0
  %v1945 = vadd.f32 %v1690, %v1944
  %v1946 = vpop.f32.mrb[0].mxu0
  %1947 = vmatprep.mubr.f32.mxu0 0.0
  %1948 = vmatmul.mubr.f32.gmra.mrb[0].mxu0 %v1581
  %v1949 = vpop.f32.mrb[0].mxu0
  %v1950 = vadd.f32 %v1695, %v1949
  %v1951 = vpop.f32.mrb[0].mxu0
  %1952 = vmatprep.mubr.f32.mxu0 0.0
  %1953 = vmatmul.mubr.f32.gmra.mrb[0].mxu0 %v1584
  %v1954 = vpop.f32.mrb[0].mxu0
  %v1955 = vadd.f32 %v1700, %v1954
  %v1956 = vpop.f32.mrb[0].mxu0
  %1957 = vmatprep.mubr.f32.mxu0 0.0
  %1958 = vmatmul.mubr.f32.gmra.mrb[0].mxu0 %v1587
  %v1959 = vpop.f32.mrb[0].mxu0
  %v1960 = vadd.f32 %v1705, %v1959
  %v1961 = vpop.f32.mrb[0].mxu0
  %1962 = vmatprep.mubr.f32.mxu0 0.0
  %1963 = vmatmul.mubr.f32.gmra.mrb[0].mxu0 %v1590
  %v1964 = vpop.f32.mrb[0].mxu0
  %v1965 = vadd.f32 %v1710, %v1964
  %v1966 = vpop.f32.mrb[0].mxu0
  %1967 = vmatprep.mubr.f32.mxu0 0.0
  %1968 = vmatmul.mubr.f32.gmra.mrb[0].mxu0 %v1593
  %v1969 = vpop.f32.mrb[0].mxu0
  %v1970 = vpop.f32.mrb[0].mxu0
  %1971 = vdwg.mxu0
  %1972 = vmatprep.subr.mxu0 0.0
  %1973 = vmatpush1.msra.mxu0 %v1538
  %1974 = vmatprep.subr.mxu0 0.0
  %1975 = vmatpush1.msra.mxu0 %v1539
  %1976 = vmatprep.subr.mxu0 0.0
  %1977 = vmatpush1.msra.mxu0 %v1540
  %1978 = vmatprep.subr.mxu0 0.0
  %1979 = vmatpush1.msra.mxu0 %v1541
  %1980 = vmatprep.subr.mxu0 0.0
  %1981 = vmatpush1.msra.mxu0 %v1542
  %1982 = vmatprep.subr.mxu0 0.0
  %1983 = vmatpush1.msra.mxu0 %v1543
  %1984 = vmatprep.subr.mxu0 0.0
  %1985 = vmatpush1.msra.mxu0 %v1544
  %1986 = vmatprep.subr.mxu0 0.0
  %1987 = vmatpush1.msra.mxu0 %v1545
  %1988 = vmatprep.subr.mxu0 0.0
  %1989 = vmatpush1.msra.mxu0 %v1546
  %1990 = vmatprep.subr.mxu0 0.0
  %1991 = vmatpush1.msra.mxu0 %v1547
  %1992 = vmatprep.subr.mxu0 0.0
  %1993 = vmatpush1.msra.mxu0 %v1548
  %1994 = vmatprep.subr.mxu0 0.0
  %1995 = vmatpush1.msra.mxu0 %v1549
  %1996 = vmatprep.subr.mxu0 0.0
  %1997 = vmatpush1.msra.mxu0 %v1550
  %1998 = vmatprep.subr.mxu0 0.0
  %1999 = vmatpush1.msra.mxu0 0.0
  %2000 = vmatprep.subr.mxu0 0.0
  %2001 = vmatpush1.msra.mxu0 0.0
  %2002 = vmatprep.subr.mxu0 0.0
  %2003 = vmatpush1.msra.mxu0 0.0
  %2004 = vmatprep.subr.mxu0 0.0
  %2005 = vmatpush1.msra.mxu0 0.0
  %2006 = vmatprep.subr.mxu0 0.0
  %2007 = vmatpush1.msra.mxu0 0.0
  %2008 = vmatprep.subr.mxu0 0.0
  %2009 = vmatpush1.msra.mxu0 0.0
  %2010 = vmatprep.subr.mxu0 0.0
  %2011 = vmatpush1.msra.mxu0 0.0
  %2012 = vmatprep.subr.mxu0 0.0
  %2013 = vmatpush1.msra.mxu0 0.0
  %2014 = vmatprep.subr.mxu0 0.0
  %2015 = vmatpush1.msra.mxu0 0.0
  %2016 = vmatprep.subr.mxu0 0.0
  %2017 = vmatpush1.msra.mxu0 0.0
  %2018 = vmatprep.subr.mxu0 0.0
  %2019 = vmatpush1.msra.mxu0 0.0
  %2020 = vmatprep.subr.mxu0 0.0
  %2021 = vmatpush1.msra.mxu0 0.0
  %2022 = vmatprep.subr.mxu0 0.0
  %2023 = vmatpush1.msra.mxu0 0.0
  %2024 = vmatprep.subr.mxu0 0.0
  %2025 = vmatpush1.msra.mxu0 0.0
  %2026 = vmatprep.subr.mxu0 0.0
  %2027 = vmatpush1.msra.mxu0 0.0
  %2028 = vmatprep.subr.mxu0 0.0
  %2029 = vmatpush1.msra.mxu0 0.0
  %2030 = vmatprep.subr.mxu0 0.0
  %2031 = vmatpush1.msra.mxu0 0.0
  %2032 = vmatprep.subr.mxu0 0.0
  %2033 = vmatpush1.msra.mxu0 0.0
  %2034 = vmatprep.subr.mxu0 0.0
  %2035 = vmatpush1.msra.mxu0 0.0
  %2036 = vmatprep.mubr.f32.mxu0 0.0
  %2037 = vmatmul.mubr.f32.gmra.mrb[0].mxu0 %v1851
  %v2038 = vpop.f32.mrb[0].mxu0
  %v2039 = vadd.f32 %v1798, %v2038
  %v2040 = vpop.f32.mrb[0].mxu0
  %2041 = vmatprep.mubr.f32.mxu0 0.0
  %2042 = vmatmul.mubr.f32.gmra.mrb[0].mxu0 %v1566
  %v2043 = vpop.f32.mrb[0].mxu0
  %v2044 = vadd.f32 %v1803, %v2043
  %v2045 = vpop.f32.mrb[0].mxu0
  %2046 = vmatprep.mubr.f32.mxu0 0.0
  %2047 = vmatmul.mubr.f32.gmra.mrb[0].mxu0 %v1569
  %v2048 = vpop.f32.mrb[0].mxu0
  %v2049 = vadd.f32 %v1808, %v2048
  %v2050 = vpop.f32.mrb[0].mxu0
  %2051 = vmatprep.mubr.f32.mxu0 0.0
  %2052 = vmatmul.mubr.f32.gmra.mrb[0].mxu0 %v1572
  %v2053 = vpop.f32.mrb[0].mxu0
  %v2054 = vadd.f32 %v1813, %v2053
  %v2055 = vpop.f32.mrb[0].mxu0
  %2056 = vmatprep.mubr.f32.mxu0 0.0
  %2057 = vmatmul.mubr.f32.gmra.mrb[0].mxu0 %v1575
  %v2058 = vpop.f32.mrb[0].mxu0
  %v2059 = vadd.f32 %v1818, %v2058
  %v2060 = vpop.f32.mrb[0].mxu0
  %2061 = vmatprep.mubr.f32.mxu0 0.0
  %2062 = vmatmul.mubr.f32.gmra.mrb[0].mxu0 %v1578
  %v2063 = vpop.f32.mrb[0].mxu0
  %v2064 = vadd.f32 %v1823, %v2063
  %v2065 = vpop.f32.mrb[0].mxu0
  %2066 = vmatprep.mubr.f32.mxu0 0.0
  %2067 = vmatmul.mubr.f32.gmra.mrb[0].mxu0 %v1581
  %v2068 = vpop.f32.mrb[0].mxu0
  %v2069 = vadd.f32 %v1828, %v2068
  %v2070 = vpop.f32.mrb[0].mxu0
  %2071 = vmatprep.mubr.f32.mxu0 0.0
  %2072 = vmatmul.mubr.f32.gmra.mrb[0].mxu0 %v1584
  %v2073 = vpop.f32.mrb[0].mxu0
  %v2074 = vadd.f32 %v1833, %v2073
  %v2075 = vpop.f32.mrb[0].mxu0
  %2076 = vmatprep.mubr.f32.mxu0 0.0
  %2077 = vmatmul.mubr.f32.gmra.mrb[0].mxu0 %v1587
  %v2078 = vpop.f32.mrb[0].mxu0
  %v2079 = vadd.f32 %v1838, %v2078
  %v2080 = vpop.f32.mrb[0].mxu0
  %2081 = vmatprep.mubr.f32.mxu0 0.0
  %2082 = vmatmul.mubr.f32.gmra.mrb[0].mxu0 %v1590
  %v2083 = vpop.f32.mrb[0].mxu0
  %v2084 = vadd.f32 %v1843, %v2083
  %v2085 = vpop.f32.mrb[0].mxu0
  %2086 = vmatprep.mubr.f32.mxu0 0.0
  %2087 = vmatmul.mubr.f32.gmra.mrb[0].mxu0 %v1593
  %v2088 = vpop.f32.mrb[0].mxu0
  %v2089 = vpop.f32.mrb[0].mxu0
  %2090 = vdwg.mxu0
  %s2091 = scalar_lea.vmem %s4, 208
  %v2092 = vld [vmem:[%s2091] sm:$0xff]
  %v2093 = vld [vmem:[%s2091 + $0x8] sm:$0xff]
  %v2094 = vld [vmem:[%s2091 + $0x10] sm:$0xff]
  %v2095 = vld [vmem:[%s2091 + $0x18] sm:$0xff]
  %v2096 = vld [vmem:[%s2091 + $0x20] sm:$0xff]
  %v2097 = vld [vmem:[%s2091 + $0x28] sm:$0xff]
  %v2098 = vld [vmem:[%s2091 + $0x30] sm:$0xff]
  %v2099 = vld [vmem:[%s2091 + $0x38] sm:$0xff]
  %v2100 = vld [vmem:[%s2091 + $0x40] sm:$0xff]
  %v2101 = vld [vmem:[%s2091 + $0x48] sm:$0xff]
  %v2102 = vld [vmem:[%s2091 + $0x50] sm:$0xff]
  %v2103 = vld [vmem:[%s2091 + $0x58] sm:$0xff]
  %v2104 = vld [vmem:[%s2091 + $0x60] sm:$0xff]
  %v2106 = vsel %vm1452, %v1524, 0
  %2108 = vmatprep.subr.mxu0 0.0
  %2109 = vmatpush1.msra.mxu0 %v2092
  %2110 = vmatprep.subr.mxu0 0.0
  %2111 = vmatpush1.msra.mxu0 %v2093
  %2112 = vmatprep.subr.mxu0 0.0
  %2113 = vmatpush1.msra.mxu0 %v2094
  %2114 = vmatprep.subr.mxu0 0.0
  %2115 = vmatpush1.msra.mxu0 %v2095
  %2116 = vmatprep.subr.mxu0 0.0
  %2117 = vmatpush1.msra.mxu0 %v2096
  %2118 = vmatprep.subr.mxu0 0.0
  %2119 = vmatpush1.msra.mxu0 %v2097
  %2120 = vmatprep.subr.mxu0 0.0
  %2121 = vmatpush1.msra.mxu0 %v2098
  %2122 = vmatprep.subr.mxu0 0.0
  %2123 = vmatpush1.msra.mxu0 %v2099
  %2124 = vmatprep.subr.mxu0 0.0
  %2125 = vmatpush1.msra.mxu0 %v2100
  %2126 = vmatprep.subr.mxu0 0.0
  %2127 = vmatpush1.msra.mxu0 %v2101
  %2128 = vmatprep.subr.mxu0 0.0
  %2129 = vmatpush1.msra.mxu0 %v2102
  %2130 = vmatprep.subr.mxu0 0.0
  %2131 = vmatpush1.msra.mxu0 %v2103
  %2132 = vmatprep.subr.mxu0 0.0
  %2133 = vmatpush1.msra.mxu0 %v2104
  %2134 = vmatprep.subr.mxu0 0.0
  %2135 = vmatpush1.msra.mxu0 0.0
  %2136 = vmatprep.subr.mxu0 0.0
  %2137 = vmatpush1.msra.mxu0 0.0
  %2138 = vmatprep.subr.mxu0 0.0
  %2139 = vmatpush1.msra.mxu0 0.0
  %2140 = vmatprep.subr.mxu0 0.0
  %2141 = vmatpush1.msra.mxu0 0.0
  %2142 = vmatprep.subr.mxu0 0.0
  %2143 = vmatpush1.msra.mxu0 0.0
  %2144 = vmatprep.subr.mxu0 0.0
  %2145 = vmatpush1.msra.mxu0 0.0
  %2146 = vmatprep.subr.mxu0 0.0
  %2147 = vmatpush1.msra.mxu0 0.0
  %2148 = vmatprep.subr.mxu0 0.0
  %2149 = vmatpush1.msra.mxu0 0.0
  %2150 = vmatprep.subr.mxu0 0.0
  %2151 = vmatpush1.msra.mxu0 0.0
  %2152 = vmatprep.subr.mxu0 0.0
  %2153 = vmatpush1.msra.mxu0 0.0
  %2154 = vmatprep.subr.mxu0 0.0
  %2155 = vmatpush1.msra.mxu0 0.0
  %2156 = vmatprep.subr.mxu0 0.0
  %2157 = vmatpush1.msra.mxu0 0.0
  %2158 = vmatprep.subr.mxu0 0.0
  %2159 = vmatpush1.msra.mxu0 0.0
  %2160 = vmatprep.subr.mxu0 0.0
  %2161 = vmatpush1.msra.mxu0 0.0
  %2162 = vmatprep.subr.mxu0 0.0
  %2163 = vmatpush1.msra.mxu0 0.0
  %2164 = vmatprep.subr.mxu0 0.0
  %2165 = vmatpush1.msra.mxu0 0.0
  %2166 = vmatprep.subr.mxu0 0.0
  %2167 = vmatpush1.msra.mxu0 0.0
  %2168 = vmatprep.subr.mxu0 0.0
  %2169 = vmatpush1.msra.mxu0 0.0
  %2170 = vmatprep.subr.mxu0 0.0
  %2171 = vmatpush1.msra.mxu0 0.0
  %2172 = vmatprep.mubr.f32.mxu0 0.0
  %2173 = vmatmul.mubr.f32.gmra.mrb[0].mxu0 %v1569
  %v2174 = vpop.f32.mrb[0].mxu0
  %v2175 = vadd.f32 0.0, %v2174
  %v2176 = vpop.f32.mrb[0].mxu0
  %2177 = vmatprep.mubr.f32.mxu0 0.0
  %2178 = vmatmul.mubr.f32.gmra.mrb[0].mxu0 %v1572
  %v2179 = vpop.f32.mrb[0].mxu0
  %v2180 = vadd.f32 0.0, %v2179
  %v2181 = vpop.f32.mrb[0].mxu0
  %2182 = vmatprep.mubr.f32.mxu0 0.0
  %2183 = vmatmul.mubr.f32.gmra.mrb[0].mxu0 %v1575
  %v2184 = vpop.f32.mrb[0].mxu0
  %v2185 = vadd.f32 0.0, %v2184
  %v2186 = vpop.f32.mrb[0].mxu0
  %2187 = vmatprep.mubr.f32.mxu0 0.0
  %2188 = vmatmul.mubr.f32.gmra.mrb[0].mxu0 %v1578
  %v2189 = vpop.f32.mrb[0].mxu0
  %v2190 = vadd.f32 0.0, %v2189
  %v2191 = vpop.f32.mrb[0].mxu0
  %2192 = vmatprep.mubr.f32.mxu0 0.0
  %2193 = vmatmul.mubr.f32.gmra.mrb[0].mxu0 %v1581
  %v2194 = vpop.f32.mrb[0].mxu0
  %v2195 = vadd.f32 0.0, %v2194
  %v2196 = vpop.f32.mrb[0].mxu0
  %2197 = vmatprep.mubr.f32.mxu0 0.0
  %2198 = vmatmul.mubr.f32.gmra.mrb[0].mxu0 %v1584
  %v2199 = vpop.f32.mrb[0].mxu0
  %v2200 = vadd.f32 0.0, %v2199
  %v2201 = vpop.f32.mrb[0].mxu0
  %2202 = vmatprep.mubr.f32.mxu0 0.0
  %2203 = vmatmul.mubr.f32.gmra.mrb[0].mxu0 %v1587
  %v2204 = vpop.f32.mrb[0].mxu0
  %v2205 = vadd.f32 0.0, %v2204
  %v2206 = vpop.f32.mrb[0].mxu0
  %2207 = vmatprep.mubr.f32.mxu0 0.0
  %2208 = vmatmul.mubr.f32.gmra.mrb[0].mxu0 %v1590
  %v2209 = vpop.f32.mrb[0].mxu0
  %v2210 = vadd.f32 0.0, %v2209
  %v2211 = vpop.f32.mrb[0].mxu0
  %2212 = vmatprep.mubr.f32.mxu0 0.0
  %2213 = vmatmul.mubr.f32.gmra.mrb[0].mxu0 %v1593
  %v2214 = vpop.f32.mrb[0].mxu0
  %v2215 = vadd.f32 0.0, %v2214
  %v2216 = vpop.f32.mrb[0].mxu0
  %2217 = vmatprep.mubr.f32.mxu0 0.0
  %2218 = vmatmul.mubr.f32.gmra.mrb[0].mxu0 %v1596
  %v2219 = vpop.f32.mrb[0].mxu0
  %v2220 = vadd.f32 0.0, %v2219
  %v2221 = vpop.f32.mrb[0].mxu0
  %2222 = vmatprep.mubr.f32.mxu0 0.0
  %2223 = vmatmul.mubr.f32.gmra.mrb[0].mxu0 %v2106
  %v2224 = vpop.f32.mrb[0].mxu0
  %v2225 = vpop.f32.mrb[0].mxu0
  %2226 = vdwg.mxu0
  %s2227 = scalar_lea.vmem %s5, 208
  %v2228 = vld [vmem:[%s2227] sm:$0xff]
  %v2229 = vld [vmem:[%s2227 + $0x8] sm:$0xff]
  %v2230 = vld [vmem:[%s2227 + $0x10] sm:$0xff]
  %v2231 = vld [vmem:[%s2227 + $0x18] sm:$0xff]
  %v2232 = vld [vmem:[%s2227 + $0x20] sm:$0xff]
  %v2233 = vld [vmem:[%s2227 + $0x28] sm:$0xff]
  %v2234 = vld [vmem:[%s2227 + $0x30] sm:$0xff]
  %v2235 = vld [vmem:[%s2227 + $0x38] sm:$0xff]
  %v2236 = vld [vmem:[%s2227 + $0x40] sm:$0xff]
  %v2237 = vld [vmem:[%s2227 + $0x48] sm:$0xff]
  %v2238 = vld [vmem:[%s2227 + $0x50] sm:$0xff]
  %v2239 = vld [vmem:[%s2227 + $0x58] sm:$0xff]
  %v2240 = vld [vmem:[%s2227 + $0x60] sm:$0xff]
  %2241 = vmatprep.subr.mxu0 0.0
  %2242 = vmatpush1.msra.mxu0 %v2228
  %2243 = vmatprep.subr.mxu0 0.0
  %2244 = vmatpush1.msra.mxu0 %v2229
  %2245 = vmatprep.subr.mxu0 0.0
  %2246 = vmatpush1.msra.mxu0 %v2230
  %2247 = vmatprep.subr.mxu0 0.0
  %2248 = vmatpush1.msra.mxu0 %v2231
  %2249 = vmatprep.subr.mxu0 0.0
  %2250 = vmatpush1.msra.mxu0 %v2232
  %2251 = vmatprep.subr.mxu0 0.0
  %2252 = vmatpush1.msra.mxu0 %v2233
  %2253 = vmatprep.subr.mxu0 0.0
  %2254 = vmatpush1.msra.mxu0 %v2234
  %2255 = vmatprep.subr.mxu0 0.0
  %2256 = vmatpush1.msra.mxu0 %v2235
  %2257 = vmatprep.subr.mxu0 0.0
  %2258 = vmatpush1.msra.mxu0 %v2236
  %2259 = vmatprep.subr.mxu0 0.0
  %2260 = vmatpush1.msra.mxu0 %v2237
  %2261 = vmatprep.subr.mxu0 0.0
  %2262 = vmatpush1.msra.mxu0 %v2238
  %2263 = vmatprep.subr.mxu0 0.0
  %2264 = vmatpush1.msra.mxu0 %v2239
  %2265 = vmatprep.subr.mxu0 0.0
  %2266 = vmatpush1.msra.mxu0 %v2240
  %2267 = vmatprep.subr.mxu0 0.0
  %2268 = vmatpush1.msra.mxu0 0.0
  %2269 = vmatprep.subr.mxu0 0.0
  %2270 = vmatpush1.msra.mxu0 0.0
  %2271 = vmatprep.subr.mxu0 0.0
  %2272 = vmatpush1.msra.mxu0 0.0
  %2273 = vmatprep.subr.mxu0 0.0
  %2274 = vmatpush1.msra.mxu0 0.0
  %2275 = vmatprep.subr.mxu0 0.0
  %2276 = vmatpush1.msra.mxu0 0.0
  %2277 = vmatprep.subr.mxu0 0.0
  %2278 = vmatpush1.msra.mxu0 0.0
  %2279 = vmatprep.subr.mxu0 0.0
  %2280 = vmatpush1.msra.mxu0 0.0
  %2281 = vmatprep.subr.mxu0 0.0
  %2282 = vmatpush1.msra.mxu0 0.0
  %2283 = vmatprep.subr.mxu0 0.0
  %2284 = vmatpush1.msra.mxu0 0.0
  %2285 = vmatprep.subr.mxu0 0.0
  %2286 = vmatpush1.msra.mxu0 0.0
  %2287 = vmatprep.subr.mxu0 0.0
  %2288 = vmatpush1.msra.mxu0 0.0
  %2289 = vmatprep.subr.mxu0 0.0
  %2290 = vmatpush1.msra.mxu0 0.0
  %2291 = vmatprep.subr.mxu0 0.0
  %2292 = vmatpush1.msra.mxu0 0.0
  %2293 = vmatprep.subr.mxu0 0.0
  %2294 = vmatpush1.msra.mxu0 0.0
  %2295 = vmatprep.subr.mxu0 0.0
  %2296 = vmatpush1.msra.mxu0 0.0
  %2297 = vmatprep.subr.mxu0 0.0
  %2298 = vmatpush1.msra.mxu0 0.0
  %2299 = vmatprep.subr.mxu0 0.0
  %2300 = vmatpush1.msra.mxu0 0.0
  %2301 = vmatprep.subr.mxu0 0.0
  %2302 = vmatpush1.msra.mxu0 0.0
  %2303 = vmatprep.subr.mxu0 0.0
  %2304 = vmatpush1.msra.mxu0 0.0
  %2305 = vmatprep.mubr.f32.mxu0 0.0
  %2306 = vmatmul.mubr.f32.gmra.mrb[0].mxu0 %v1569
  %v2307 = vpop.f32.mrb[0].mxu0
  %v2308 = vadd.f32 0.0, %v2307
  %v2309 = vpop.f32.mrb[0].mxu0
  %2310 = vmatprep.mubr.f32.mxu0 0.0
  %2311 = vmatmul.mubr.f32.gmra.mrb[0].mxu0 %v1572
  %v2312 = vpop.f32.mrb[0].mxu0
  %v2313 = vadd.f32 0.0, %v2312
  %v2314 = vpop.f32.mrb[0].mxu0
  %2315 = vmatprep.mubr.f32.mxu0 0.0
  %2316 = vmatmul.mubr.f32.gmra.mrb[0].mxu0 %v1575
  %v2317 = vpop.f32.mrb[0].mxu0
  %v2318 = vadd.f32 0.0, %v2317
  %v2319 = vpop.f32.mrb[0].mxu0
  %2320 = vmatprep.mubr.f32.mxu0 0.0
  %2321 = vmatmul.mubr.f32.gmra.mrb[0].mxu0 %v1578
  %v2322 = vpop.f32.mrb[0].mxu0
  %v2323 = vadd.f32 0.0, %v2322
  %v2324 = vpop.f32.mrb[0].mxu0
  %2325 = vmatprep.mubr.f32.mxu0 0.0
  %2326 = vmatmul.mubr.f32.gmra.mrb[0].mxu0 %v1581
  %v2327 = vpop.f32.mrb[0].mxu0
  %v2328 = vadd.f32 0.0, %v2327
  %v2329 = vpop.f32.mrb[0].mxu0
  %2330 = vmatprep.mubr.f32.mxu0 0.0
  %2331 = vmatmul.mubr.f32.gmra.mrb[0].mxu0 %v1584
  %v2332 = vpop.f32.mrb[0].mxu0
  %v2333 = vadd.f32 0.0, %v2332
  %v2334 = vpop.f32.mrb[0].mxu0
  %2335 = vmatprep.mubr.f32.mxu0 0.0
  %2336 = vmatmul.mubr.f32.gmra.mrb[0].mxu0 %v1587
  %v2337 = vpop.f32.mrb[0].mxu0
  %v2338 = vadd.f32 0.0, %v2337
  %v2339 = vpop.f32.mrb[0].mxu0
  %2340 = vmatprep.mubr.f32.mxu0 0.0
  %2341 = vmatmul.mubr.f32.gmra.mrb[0].mxu0 %v1590
  %v2342 = vpop.f32.mrb[0].mxu0
  %v2343 = vadd.f32 0.0, %v2342
  %v2344 = vpop.f32.mrb[0].mxu0
  %2345 = vmatprep.mubr.f32.mxu0 0.0
  %2346 = vmatmul.mubr.f32.gmra.mrb[0].mxu0 %v1593
  %v2347 = vpop.f32.mrb[0].mxu0
  %v2348 = vadd.f32 0.0, %v2347
  %v2349 = vpop.f32.mrb[0].mxu0
  %2350 = vmatprep.mubr.f32.mxu0 0.0
  %2351 = vmatmul.mubr.f32.gmra.mrb[0].mxu0 %v1596
  %v2352 = vpop.f32.mrb[0].mxu0
  %v2353 = vadd.f32 0.0, %v2352
  %v2354 = vpop.f32.mrb[0].mxu0
  %2355 = vmatprep.mubr.f32.mxu0 0.0
  %2356 = vmatmul.mubr.f32.gmra.mrb[0].mxu0 %v2106
  %v2357 = vpop.f32.mrb[0].mxu0
  %v2358 = vpop.f32.mrb[0].mxu0
  %2359 = vdwg.mxu0
  %v2360 = vadd.f32 %v1920, %v2175
  %v2361 = vadd.f32 %v1925, %v2180
  %v2362 = vadd.f32 %v1930, %v2185
  %v2363 = vadd.f32 %v1935, %v2190
  %v2364 = vadd.f32 %v1940, %v2195
  %v2365 = vadd.f32 %v1945, %v2200
  %v2366 = vadd.f32 %v1950, %v2205
  %v2367 = vadd.f32 %v1955, %v2210
  %v2368 = vadd.f32 %v1960, %v2215
  %v2369 = vadd.f32 %v1965, %v2220
  %v2370 = vadd.f32 %v2039, %v2308
  %v2371 = vadd.f32 %v2044, %v2313
  %v2372 = vadd.f32 %v2049, %v2318
  %v2373 = vadd.f32 %v2054, %v2323
  %v2374 = vadd.f32 %v2059, %v2328
  %v2375 = vadd.f32 %v2064, %v2333
  %v2376 = vadd.f32 %v2069, %v2338
  %v2377 = vadd.f32 %v2074, %v2343
  %v2378 = vadd.f32 %v2079, %v2348
  %v2379 = vadd.f32 %v2084, %v2353
  %v2380 = vmax.f32 %v2360, %v2370
  %v2381 = vmax.f32 %v2361, %v2371
  %v2382 = vmax.f32 %v2362, %v2372
  %v2383 = vmax.f32 %v2363, %v2373
  %v2384 = vmax.f32 %v2364, %v2374
  %v2385 = vmax.f32 %v2365, %v2375
  %v2386 = vmax.f32 %v2366, %v2376
  %v2387 = vmax.f32 %v2367, %v2377
  %v2388 = vmax.f32 %v2368, %v2378
  %v2389 = vmax.f32 %v2369, %v2379
  %vm2390 = vcmask 654336
  %v2391 = vsel %vm2390, %v2380, -inf
  %v2392 = vsel %vm2390, %v2381, -inf
  %v2393 = vmax.f32 %v2391, %v2392
  %v2394 = vsel %vm2390, %v2382, -inf
  %v2395 = vsel %vm2390, %v2383, -inf
  %v2396 = vmax.f32 %v2394, %v2395
  %v2397 = vsel %vm2390, %v2384, -inf
  %v2398 = vsel %vm2390, %v2385, -inf
  %v2399 = vmax.f32 %v2397, %v2398
  %v2400 = vsel %vm2390, %v2386, -inf
  %v2401 = vsel %vm2390, %v2387, -inf
  %v2402 = vmax.f32 %v2400, %v2401
  %v2403 = vsel %vm2390, %v2388, -inf
  %v2404 = vsel %vm2390, %v2389, -inf
  %v2405 = vmax.f32 %v2403, %v2404
  %v2406 = vld [vmem:[%s6] sm:$0x1]
  %v2408 = vlaneseq
  %v2409 = vshrl.u32 %v2408, 7
  %v2410 = vsub.s32 0, %v2409
  %v2411 = vrot.slane %v2406, %v2410
  %v2413 = vadd.f32 %v2393, %v2411
  %v2414 = vadd.f32 %v2396, %v2411
  %v2415 = vadd.f32 %v2399, %v2411
  %v2416 = vadd.f32 %v2402, %v2411
  %v2417 = vadd.f32 %v2405, %v2411
  %v2418 = vmax.f32 %v2413, 0.0
  %v2419 = vmax.f32 %v2414, 0.0
  %v2420 = vmax.f32 %v2415, 0.0
  %v2421 = vmax.f32 %v2416, 0.0
  %v2422 = vmax.f32 %v2417, 0.0
  %v2423 = vld [vmem:[%s7] sm:$0xff]
  %v2424 = vld [vmem:[%s7 + $0x8] sm:$0xff]
  %v2425 = vld [vmem:[%s7 + $0x10] sm:$0xff]
  %v2426 = vld [vmem:[%s7 + $0x18] sm:$0xff]
  %v2427 = vld [vmem:[%s7 + $0x20] sm:$0xff]
  %v2428 = vld [vmem:[%s7 + $0x28] sm:$0xff]
  %v2429 = vld [vmem:[%s7 + $0x30] sm:$0xff]
  %v2430 = vld [vmem:[%s7 + $0x38] sm:$0xff]
  %v2431 = vld [vmem:[%s7 + $0x40] sm:$0xff]
  %v2432 = vld [vmem:[%s7 + $0x48] sm:$0xff]
  %v2433 = vld [vmem:[%s7 + $0x50] sm:$0xff]
  %v2434 = vld [vmem:[%s7 + $0x58] sm:$0xff]
  %v2435 = vld [vmem:[%s7 + $0x60] sm:$0xff]
  %v2436 = vld [vmem:[%s7 + $0x68] sm:$0xff]
  %v2437 = vld [vmem:[%s7 + $0x70] sm:$0xff]
  %v2438 = vld [vmem:[%s7 + $0x78] sm:$0xff]
  %v2439 = vld [vmem:[%s7 + $0x80] sm:$0xff]
  %v2440 = vld [vmem:[%s7 + $0x88] sm:$0xff]
  %v2441 = vld [vmem:[%s7 + $0x90] sm:$0xff]
  %v2442 = vld [vmem:[%s7 + $0x98] sm:$0xff]
  %s2443 = scalar_lea.vmem %s7, 160
  %v2444 = vld [vmem:[%s2443] sm:$0xff]
  %v2445 = vld [vmem:[%s2443 + $0x8] sm:$0xff]
  %v2446 = vld [vmem:[%s2443 + $0x10] sm:$0xff]
  %v2447 = vld [vmem:[%s2443 + $0x18] sm:$0xff]
  %v2448 = vld [vmem:[%s2443 + $0x20] sm:$0xff]
  %v2449 = vld [vmem:[%s2443 + $0x28] sm:$0xff]
  %v2450 = vld [vmem:[%s2443 + $0x30] sm:$0xff]
  %v2451 = vld [vmem:[%s2443 + $0x38] sm:$0xff]
  %v2452 = vld [vmem:[%s2443 + $0x40] sm:$0xff]
  %v2453 = vld [vmem:[%s2443 + $0x48] sm:$0xff]
  %v2454 = vld [vmem:[%s2443 + $0x50] sm:$0xff]
  %v2455 = vld [vmem:[%s2443 + $0x58] sm:$0xff]
  %v2456 = vld [vmem:[%s2443 + $0x60] sm:$0xff]
  %v2457 = vld [vmem:[%s2443 + $0x68] sm:$0xff]
  %v2458 = vld [vmem:[%s2443 + $0x70] sm:$0xff]
  %v2459 = vld [vmem:[%s2443 + $0x78] sm:$0xff]
  %v2460 = vld [vmem:[%s2443 + $0x80] sm:$0xff]
  %v2461 = vld [vmem:[%s2443 + $0x88] sm:$0xff]
  %v2462 = vld [vmem:[%s2443 + $0x90] sm:$0xff]
  %v2463 = vld [vmem:[%s2443 + $0x98] sm:$0xff]
  %v2465 = vsel %vm2390, %v2419, 0
  %v2468 = vsel %vm2390, %v2420, 0
  %v2471 = vsel %vm2390, %v2421, 0
  %2473 = vmatprep.subr.mxu0 %v2445
  %2474 = vmatpush1.msra.mxu0 %v2444
  %2475 = vmatprep.subr.mxu0 %v2447
  %2476 = vmatpush1.msra.mxu0 %v2446
  %2477 = vmatprep.subr.mxu0 %v2449
  %2478 = vmatpush1.msra.mxu0 %v2448
  %2479 = vmatprep.subr.mxu0 %v2451
  %2480 = vmatpush1.msra.mxu0 %v2450
  %2481 = vmatprep.subr.mxu0 %v2453
  %2482 = vmatpush1.msra.mxu0 %v2452
  %2483 = vmatprep.subr.mxu0 %v2455
  %2484 = vmatpush1.msra.mxu0 %v2454
  %2485 = vmatprep.subr.mxu0 %v2457
  %2486 = vmatpush1.msra.mxu0 %v2456
  %2487 = vmatprep.subr.mxu0 %v2459
  %2488 = vmatpush1.msra.mxu0 %v2458
  %2489 = vmatprep.subr.mxu0 %v2461
  %2490 = vmatpush1.msra.mxu0 %v2460
  %2491 = vmatprep.subr.mxu0 %v2463
  %2492 = vmatpush1.msra.mxu0 %v2462
  %2493 = vmatprep.subr.mxu0 0.0
  %2494 = vmatpush1.msra.mxu0 0.0
  %2495 = vmatprep.subr.mxu0 0.0
  %2496 = vmatpush1.msra.mxu0 0.0
  %2497 = vmatprep.subr.mxu0 0.0
  %2498 = vmatpush1.msra.mxu0 0.0
  %2499 = vmatprep.subr.mxu0 0.0
  %2500 = vmatpush1.msra.mxu0 0.0
  %2501 = vmatprep.subr.mxu0 0.0
  %2502 = vmatpush1.msra.mxu0 0.0
  %2503 = vmatprep.subr.mxu0 0.0
  %2504 = vmatpush1.msra.mxu0 0.0
  %2505 = vmatprep.subr.mxu0 0.0
  %2506 = vmatpush1.msra.mxu0 0.0
  %2507 = vmatprep.subr.mxu0 0.0
  %2508 = vmatpush1.msra.mxu0 0.0
  %2509 = vmatprep.subr.mxu0 0.0
  %2510 = vmatpush1.msra.mxu0 0.0
  %2511 = vmatprep.subr.mxu0 0.0
  %2512 = vmatpush1.msra.mxu0 0.0
  %2513 = vmatprep.subr.mxu0 0.0
  %2514 = vmatpush1.msra.mxu0 0.0
  %2515 = vmatprep.subr.mxu0 0.0
  %2516 = vmatpush1.msra.mxu0 0.0
  %2517 = vmatprep.subr.mxu0 0.0
  %2518 = vmatpush1.msra.mxu0 0.0
  %2519 = vmatprep.subr.mxu0 0.0
  %2520 = vmatpush1.msra.mxu0 0.0
  %2521 = vmatprep.subr.mxu0 0.0
  %2522 = vmatpush1.msra.mxu0 0.0
  %2523 = vmatprep.subr.mxu0 0.0
  %2524 = vmatpush1.msra.mxu0 0.0
  %2525 = vmatprep.subr.mxu0 0.0
  %2526 = vmatpush1.msra.mxu0 0.0
  %2527 = vmatprep.subr.mxu0 0.0
  %2528 = vmatpush1.msra.mxu0 0.0
  %2529 = vmatprep.subr.mxu0 0.0
  %2530 = vmatpush1.msra.mxu0 0.0
  %2531 = vmatprep.subr.mxu0 0.0
  %2532 = vmatpush1.msra.mxu0 0.0
  %2533 = vmatprep.subr.mxu0 0.0
  %2534 = vmatpush1.msra.mxu0 0.0
  %2535 = vmatprep.subr.mxu0 0.0
  %2536 = vmatpush1.msra.mxu0 0.0
  %2537 = vmatprep.mubr.f32.mxu0 0.0
  %2538 = vmatmul.mubr.f32.gmra.mrb[0].mxu0 %v2465
  %v2539 = vpop.f32.mrb[0].mxu0
  %v2540 = vadd.f32 0.0, %v2539
  %v2541 = vpop.f32.mrb[0].mxu0
  %v2542 = vadd.f32 0.0, %v2541
  %2543 = vmatprep.mubr.f32.mxu0 0.0
  %2544 = vmatmul.mubr.f32.gmra.mrb[0].mxu0 %v2468
  %v2545 = vpop.f32.mrb[0].mxu0
  %v2546 = vadd.f32 0.0, %v2545
  %v2547 = vpop.f32.mrb[0].mxu0
  %v2548 = vadd.f32 0.0, %v2547
  %2549 = vmatprep.mubr.f32.mxu0 0.0
  %2550 = vmatmul.mubr.f32.gmra.mrb[0].mxu0 %v2471
  %v2551 = vpop.f32.mrb[0].mxu0
  %v2552 = vadd.f32 0.0, %v2551
  %v2553 = vpop.f32.mrb[0].mxu0
  %v2554 = vadd.f32 0.0, %v2553
  %2555 = vdwg.mxu0
  %v2557 = vsel %vm2390, %v2418, 0
  %2559 = vmatprep.subr.mxu0 %v2424
  %2560 = vmatpush1.msra.mxu0 %v2423
  %2561 = vmatprep.subr.mxu0 %v2426
  %2562 = vmatpush1.msra.mxu0 %v2425
  %2563 = vmatprep.subr.mxu0 %v2428
  %2564 = vmatpush1.msra.mxu0 %v2427
  %2565 = vmatprep.subr.mxu0 %v2430
  %2566 = vmatpush1.msra.mxu0 %v2429
  %2567 = vmatprep.subr.mxu0 %v2432
  %2568 = vmatpush1.msra.mxu0 %v2431
  %2569 = vmatprep.subr.mxu0 %v2434
  %2570 = vmatpush1.msra.mxu0 %v2433
  %2571 = vmatprep.subr.mxu0 %v2436
  %2572 = vmatpush1.msra.mxu0 %v2435
  %2573 = vmatprep.subr.mxu0 %v2438
  %2574 = vmatpush1.msra.mxu0 %v2437
  %2575 = vmatprep.subr.mxu0 %v2440
  %2576 = vmatpush1.msra.mxu0 %v2439
  %2577 = vmatprep.subr.mxu0 %v2442
  %2578 = vmatpush1.msra.mxu0 %v2441
  %2579 = vmatprep.subr.mxu0 0.0
  %2580 = vmatpush1.msra.mxu0 0.0
  %2581 = vmatprep.subr.mxu0 0.0
  %2582 = vmatpush1.msra.mxu0 0.0
  %2583 = vmatprep.subr.mxu0 0.0
  %2584 = vmatpush1.msra.mxu0 0.0
  %2585 = vmatprep.subr.mxu0 0.0
  %2586 = vmatpush1.msra.mxu0 0.0
  %2587 = vmatprep.subr.mxu0 0.0
  %2588 = vmatpush1.msra.mxu0 0.0
  %2589 = vmatprep.subr.mxu0 0.0
  %2590 = vmatpush1.msra.mxu0 0.0
  %2591 = vmatprep.subr.mxu0 0.0
  %2592 = vmatpush1.msra.mxu0 0.0
  %2593 = vmatprep.subr.mxu0 0.0
  %2594 = vmatpush1.msra.mxu0 0.0
  %2595 = vmatprep.subr.mxu0 0.0
  %2596 = vmatpush1.msra.mxu0 0.0
  %2597 = vmatprep.subr.mxu0 0.0
  %2598 = vmatpush1.msra.mxu0 0.0
  %2599 = vmatprep.subr.mxu0 0.0
  %2600 = vmatpush1.msra.mxu0 0.0
  %2601 = vmatprep.subr.mxu0 0.0
  %2602 = vmatpush1.msra.mxu0 0.0
  %2603 = vmatprep.subr.mxu0 0.0
  %2604 = vmatpush1.msra.mxu0 0.0
  %2605 = vmatprep.subr.mxu0 0.0
  %2606 = vmatpush1.msra.mxu0 0.0
  %2607 = vmatprep.subr.mxu0 0.0
  %2608 = vmatpush1.msra.mxu0 0.0
  %2609 = vmatprep.subr.mxu0 0.0
  %2610 = vmatpush1.msra.mxu0 0.0
  %2611 = vmatprep.subr.mxu0 0.0
  %2612 = vmatpush1.msra.mxu0 0.0
  %2613 = vmatprep.subr.mxu0 0.0
  %2614 = vmatpush1.msra.mxu0 0.0
  %2615 = vmatprep.subr.mxu0 0.0
  %2616 = vmatpush1.msra.mxu0 0.0
  %2617 = vmatprep.subr.mxu0 0.0
  %2618 = vmatpush1.msra.mxu0 0.0
  %2619 = vmatprep.subr.mxu0 0.0
  %2620 = vmatpush1.msra.mxu0 0.0
  %2621 = vmatprep.subr.mxu0 0.0
  %2622 = vmatpush1.msra.mxu0 0.0
  %2623 = vmatprep.mubr.f32.mxu0 0.0
  %2624 = vmatmul.mubr.f32.gmra.mrb[0].mxu0 %v2557
  %v2625 = vpop.f32.mrb[0].mxu0
  %v2626 = vadd.f32 %v2540, %v2625
  %v2627 = vpop.f32.mrb[0].mxu0
  %v2628 = vadd.f32 %v2542, %v2627
  %2629 = vmatprep.mubr.f32.mxu0 0.0
  %2630 = vmatmul.mubr.f32.gmra.mrb[0].mxu0 %v2465
  %v2631 = vpop.f32.mrb[0].mxu0
  %v2632 = vadd.f32 %v2546, %v2631
  %v2633 = vpop.f32.mrb[0].mxu0
  %v2634 = vadd.f32 %v2548, %v2633
  %2635 = vmatprep.mubr.f32.mxu0 0.0
  %2636 = vmatmul.mubr.f32.gmra.mrb[0].mxu0 %v2468
  %v2637 = vpop.f32.mrb[0].mxu0
  %v2638 = vadd.f32 %v2552, %v2637
  %v2639 = vpop.f32.mrb[0].mxu0
  %v2640 = vadd.f32 %v2554, %v2639
  %2641 = vdwg.mxu0
  %s2642 = scalar_lea.vmem %s7, 320
  %v2643 = vld [vmem:[%s2642] sm:$0xff]
  %v2644 = vld [vmem:[%s2642 + $0x8] sm:$0xff]
  %v2645 = vld [vmem:[%s2642 + $0x10] sm:$0xff]
  %v2646 = vld [vmem:[%s2642 + $0x18] sm:$0xff]
  %v2647 = vld [vmem:[%s2642 + $0x20] sm:$0xff]
  %v2648 = vld [vmem:[%s2642 + $0x28] sm:$0xff]
  %v2649 = vld [vmem:[%s2642 + $0x30] sm:$0xff]
  %v2650 = vld [vmem:[%s2642 + $0x38] sm:$0xff]
  %v2651 = vld [vmem:[%s2642 + $0x40] sm:$0xff]
  %v2652 = vld [vmem:[%s2642 + $0x48] sm:$0xff]
  %v2653 = vld [vmem:[%s2642 + $0x50] sm:$0xff]
  %v2654 = vld [vmem:[%s2642 + $0x58] sm:$0xff]
  %v2655 = vld [vmem:[%s2642 + $0x60] sm:$0xff]
  %v2656 = vld [vmem:[%s2642 + $0x68] sm:$0xff]
  %v2657 = vld [vmem:[%s2642 + $0x70] sm:$0xff]
  %v2658 = vld [vmem:[%s2642 + $0x78] sm:$0xff]
  %v2659 = vld [vmem:[%s2642 + $0x80] sm:$0xff]
  %v2660 = vld [vmem:[%s2642 + $0x88] sm:$0xff]
  %v2661 = vld [vmem:[%s2642 + $0x90] sm:$0xff]
  %v2662 = vld [vmem:[%s2642 + $0x98] sm:$0xff]
  %v2664 = vsel %vm2390, %v2422, 0
  %2666 = vmatprep.subr.mxu0 %v2644
  %2667 = vmatpush1.msra.mxu0 %v2643
  %2668 = vmatprep.subr.mxu0 %v2646
  %2669 = vmatpush1.msra.mxu0 %v2645
  %2670 = vmatprep.subr.mxu0 %v2648
  %2671 = vmatpush1.msra.mxu0 %v2647
  %2672 = vmatprep.subr.mxu0 %v2650
  %2673 = vmatpush1.msra.mxu0 %v2649
  %2674 = vmatprep.subr.mxu0 %v2652
  %2675 = vmatpush1.msra.mxu0 %v2651
  %2676 = vmatprep.subr.mxu0 %v2654
  %2677 = vmatpush1.msra.mxu0 %v2653
  %2678 = vmatprep.subr.mxu0 %v2656
  %2679 = vmatpush1.msra.mxu0 %v2655
  %2680 = vmatprep.subr.mxu0 %v2658
  %2681 = vmatpush1.msra.mxu0 %v2657
  %2682 = vmatprep.subr.mxu0 %v2660
  %2683 = vmatpush1.msra.mxu0 %v2659
  %2684 = vmatprep.subr.mxu0 %v2662
  %2685 = vmatpush1.msra.mxu0 %v2661
  %2686 = vmatprep.subr.mxu0 0.0
  %2687 = vmatpush1.msra.mxu0 0.0
  %2688 = vmatprep.subr.mxu0 0.0
  %2689 = vmatpush1.msra.mxu0 0.0
  %2690 = vmatprep.subr.mxu0 0.0
  %2691 = vmatpush1.msra.mxu0 0.0
  %2692 = vmatprep.subr.mxu0 0.0
  %2693 = vmatpush1.msra.mxu0 0.0
  %2694 = vmatprep.subr.mxu0 0.0
  %2695 = vmatpush1.msra.mxu0 0.0
  %2696 = vmatprep.subr.mxu0 0.0
  %2697 = vmatpush1.msra.mxu0 0.0
  %2698 = vmatprep.subr.mxu0 0.0
  %2699 = vmatpush1.msra.mxu0 0.0
  %2700 = vmatprep.subr.mxu0 0.0
  %2701 = vmatpush1.msra.mxu0 0.0
  %2702 = vmatprep.subr.mxu0 0.0
  %2703 = vmatpush1.msra.mxu0 0.0
  %2704 = vmatprep.subr.mxu0 0.0
  %2705 = vmatpush1.msra.mxu0 0.0
  %2706 = vmatprep.subr.mxu0 0.0
  %2707 = vmatpush1.msra.mxu0 0.0
  %2708 = vmatprep.subr.mxu0 0.0
  %2709 = vmatpush1.msra.mxu0 0.0
  %2710 = vmatprep.subr.mxu0 0.0
  %2711 = vmatpush1.msra.mxu0 0.0
  %2712 = vmatprep.subr.mxu0 0.0
  %2713 = vmatpush1.msra.mxu0 0.0
  %2714 = vmatprep.subr.mxu0 0.0
  %2715 = vmatpush1.msra.mxu0 0.0
  %2716 = vmatprep.subr.mxu0 0.0
  %2717 = vmatpush1.msra.mxu0 0.0
  %2718 = vmatprep.subr.mxu0 0.0
  %2719 = vmatpush1.msra.mxu0 0.0
  %2720 = vmatprep.subr.mxu0 0.0
  %2721 = vmatpush1.msra.mxu0 0.0
  %2722 = vmatprep.subr.mxu0 0.0
  %2723 = vmatpush1.msra.mxu0 0.0
  %2724 = vmatprep.subr.mxu0 0.0
  %2725 = vmatpush1.msra.mxu0 0.0
  %2726 = vmatprep.subr.mxu0 0.0
  %2727 = vmatpush1.msra.mxu0 0.0
  %2728 = vmatprep.subr.mxu0 0.0
  %2729 = vmatpush1.msra.mxu0 0.0
  %2730 = vmatprep.mubr.f32.mxu0 0.0
  %2731 = vmatmul.mubr.f32.gmra.mrb[0].mxu0 %v2468
  %v2732 = vpop.f32.mrb[0].mxu0
  %v2733 = vadd.f32 0.0, %v2732
  %v2734 = vpop.f32.mrb[0].mxu0
  %v2735 = vadd.f32 0.0, %v2734
  %2736 = vmatprep.mubr.f32.mxu0 0.0
  %2737 = vmatmul.mubr.f32.gmra.mrb[0].mxu0 %v2471
  %v2738 = vpop.f32.mrb[0].mxu0
  %v2739 = vadd.f32 0.0, %v2738
  %v2740 = vpop.f32.mrb[0].mxu0
  %v2741 = vadd.f32 0.0, %v2740
  %2742 = vmatprep.mubr.f32.mxu0 0.0
  %2743 = vmatmul.mubr.f32.gmra.mrb[0].mxu0 %v2664
  %v2744 = vpop.f32.mrb[0].mxu0
  %v2745 = vadd.f32 0.0, %v2744
  %v2746 = vpop.f32.mrb[0].mxu0
  %v2747 = vadd.f32 0.0, %v2746
  %2748 = vdwg.mxu0
  %v2749 = vadd.f32 %v2626, %v2733
  %v2750 = vadd.f32 %v2628, %v2735
  %v2751 = vadd.f32 %v2632, %v2739
  %v2752 = vadd.f32 %v2634, %v2741
  %v2753 = vadd.f32 %v2638, %v2745
  %v2754 = vadd.f32 %v2640, %v2747
  %v2755 = vld [vmem:[%s8] sm:$0x3]
  %v2757 = vlaneseq
  %v2758 = vshrl.u32 %v2757, 7
  %v2759 = vsub.s32 0, %v2758
  %v2760 = vrot.slane %v2755, %v2759
  %v2761 = vlaneseq
  %v2762 = vshrl.u32 %v2761, 7
  %v2763 = vsub.s32 1, %v2762
  %v2764 = vrot.slane %v2755, %v2763
  %v2767 = vadd.f32 %v2749, %v2760
  %v2768 = vadd.f32 %v2750, %v2764
  %v2769 = vadd.f32 %v2751, %v2760
  %v2770 = vadd.f32 %v2752, %v2764
  %v2771 = vadd.f32 %v2753, %v2760
  %v2772 = vadd.f32 %v2754, %v2764
  %v2773 = vmax.f32 %v2767, 0.0
  %v2774 = vmax.f32 %v2768, 0.0
  %v2775 = vmax.f32 %v2769, 0.0
  %v2776 = vmax.f32 %v2770, 0.0
  %v2777 = vmax.f32 %v2771, 0.0
  %v2778 = vmax.f32 %v2772, 0.0
  %v2779 = vld [vmem:[%s9] sm:$0xff]
  %v2780 = vld [vmem:[%s9 + $0x8] sm:$0xff]
  %v2781 = vld [vmem:[%s9 + $0x10] sm:$0xff]
  %v2782 = vld [vmem:[%s9 + $0x18] sm:$0xff]
  %v2783 = vld [vmem:[%s9 + $0x20] sm:$0xff]
  %v2784 = vld [vmem:[%s9 + $0x28] sm:$0xff]
  %v2785 = vld [vmem:[%s9 + $0x30] sm:$0xff]
  %v2786 = vld [vmem:[%s9 + $0x38] sm:$0xff]
  %v2787 = vld [vmem:[%s9 + $0x40] sm:$0xff]
  %v2788 = vld [vmem:[%s9 + $0x48] sm:$0xff]
  %v2789 = vld [vmem:[%s9 + $0x50] sm:$0xff]
  %v2790 = vld [vmem:[%s9 + $0x58] sm:$0xff]
  %v2791 = vld [vmem:[%s9 + $0x60] sm:$0xff]
  %v2792 = vld [vmem:[%s9 + $0x68] sm:$0xff]
  %v2793 = vld [vmem:[%s9 + $0x70] sm:$0xff]
  %v2794 = vld [vmem:[%s9 + $0x78] sm:$0xff]
  %v2795 = vld [vmem:[%s9 + $0x80] sm:$0xff]
  %v2796 = vld [vmem:[%s9 + $0x88] sm:$0xff]
  %v2797 = vld [vmem:[%s9 + $0x90] sm:$0xff]
  %v2798 = vld [vmem:[%s9 + $0x98] sm:$0xff]
  %v2799 = vld [vmem:[%s9 + $0xa0] sm:$0xff]
  %v2800 = vld [vmem:[%s9 + $0xa8] sm:$0xff]
  %v2801 = vld [vmem:[%s9 + $0xb0] sm:$0xff]
  %v2802 = vld [vmem:[%s9 + $0xb8] sm:$0xff]
  %s2803 = scalar_lea.vmem %s9, 192
  %v2804 = vld [vmem:[%s2803] sm:$0xff]
  %v2805 = vld [vmem:[%s2803 + $0x8] sm:$0xff]
  %v2806 = vld [vmem:[%s2803 + $0x10] sm:$0xff]
  %v2807 = vld [vmem:[%s2803 + $0x18] sm:$0xff]
  %v2808 = vld [vmem:[%s2803 + $0x20] sm:$0xff]
  %v2809 = vld [vmem:[%s2803 + $0x28] sm:$0xff]
  %v2810 = vld [vmem:[%s2803 + $0x30] sm:$0xff]
  %v2811 = vld [vmem:[%s2803 + $0x38] sm:$0xff]
  %v2812 = vld [vmem:[%s2803 + $0x40] sm:$0xff]
  %v2813 = vld [vmem:[%s2803 + $0x48] sm:$0xff]
  %v2814 = vld [vmem:[%s2803 + $0x50] sm:$0xff]
  %v2815 = vld [vmem:[%s2803 + $0x58] sm:$0xff]
  %v2816 = vld [vmem:[%s2803 + $0x60] sm:$0xff]
  %v2817 = vld [vmem:[%s2803 + $0x68] sm:$0xff]
  %v2818 = vld [vmem:[%s2803 + $0x70] sm:$0xff]
  %v2819 = vld [vmem:[%s2803 + $0x78] sm:$0xff]
  %v2820 = vld [vmem:[%s2803 + $0x80] sm:$0xff]
  %v2821 = vld [vmem:[%s2803 + $0x88] sm:$0xff]
  %v2822 = vld [vmem:[%s2803 + $0x90] sm:$0xff]
  %v2823 = vld [vmem:[%s2803 + $0x98] sm:$0xff]
  %v2824 = vld [vmem:[%s2803 + $0xa0] sm:$0xff]
  %v2825 = vld [vmem:[%s2803 + $0xa8] sm:$0xff]
  %v2826 = vld [vmem:[%s2803 + $0xb0] sm:$0xff]
  %v2827 = vld [vmem:[%s2803 + $0xb8] sm:$0xff]
  %vm2828 = vcmask 523264
  %v2830 = vsel %vm2828, %v2776, 0
  %2832 = vmatprep.subr.mxu0 0.0
  %2833 = vmatpush1.msra.mxu0 %v2804
  %2834 = vmatprep.subr.mxu0 0.0
  %2835 = vmatpush1.msra.mxu0 %v2805
  %2836 = vmatprep.subr.mxu0 0.0
  %2837 = vmatpush1.msra.mxu0 %v2806
  %2838 = vmatprep.subr.mxu0 0.0
  %2839 = vmatpush1.msra.mxu0 %v2807
  %2840 = vmatprep.subr.mxu0 0.0
  %2841 = vmatpush1.msra.mxu0 %v2808
  %2842 = vmatprep.subr.mxu0 0.0
  %2843 = vmatpush1.msra.mxu0 %v2809
  %2844 = vmatprep.subr.mxu0 0.0
  %2845 = vmatpush1.msra.mxu0 %v2810
  %2846 = vmatprep.subr.mxu0 0.0
  %2847 = vmatpush1.msra.mxu0 %v2811
  %2848 = vmatprep.subr.mxu0 0.0
  %2849 = vmatpush1.msra.mxu0 %v2812
  %2850 = vmatprep.subr.mxu0 0.0
  %2851 = vmatpush1.msra.mxu0 %v2813
  %2852 = vmatprep.subr.mxu0 0.0
  %2853 = vmatpush1.msra.mxu0 %v2814
  %2854 = vmatprep.subr.mxu0 0.0
  %2855 = vmatpush1.msra.mxu0 %v2815
  %2856 = vmatprep.subr.mxu0 0.0
  %2857 = vmatpush1.msra.mxu0 %v2816
  %2858 = vmatprep.subr.mxu0 0.0
  %2859 = vmatpush1.msra.mxu0 %v2817
  %2860 = vmatprep.subr.mxu0 0.0
  %2861 = vmatpush1.msra.mxu0 %v2818
  %2862 = vmatprep.subr.mxu0 0.0
  %2863 = vmatpush1.msra.mxu0 %v2819
  %2864 = vmatprep.subr.mxu0 0.0
  %2865 = vmatpush1.msra.mxu0 %v2820
  %2866 = vmatprep.subr.mxu0 0.0
  %2867 = vmatpush1.msra.mxu0 %v2821
  %2868 = vmatprep.subr.mxu0 0.0
  %2869 = vmatpush1.msra.mxu0 %v2822
  %2870 = vmatprep.subr.mxu0 0.0
  %2871 = vmatpush1.msra.mxu0 %v2823
  %2872 = vmatprep.subr.mxu0 0.0
  %2873 = vmatpush1.msra.mxu0 %v2824
  %2874 = vmatprep.subr.mxu0 0.0
  %2875 = vmatpush1.msra.mxu0 %v2825
  %2876 = vmatprep.subr.mxu0 0.0
  %2877 = vmatpush1.msra.mxu0 %v2826
  %2878 = vmatprep.subr.mxu0 0.0
  %2879 = vmatpush1.msra.mxu0 %v2827
  %2880 = vmatprep.subr.mxu0 0.0
  %2881 = vmatpush1.msra.mxu0 0.0
  %2882 = vmatprep.subr.mxu0 0.0
  %2883 = vmatpush1.msra.mxu0 0.0
  %2884 = vmatprep.subr.mxu0 0.0
  %2885 = vmatpush1.msra.mxu0 0.0
  %2886 = vmatprep.subr.mxu0 0.0
  %2887 = vmatpush1.msra.mxu0 0.0
  %2888 = vmatprep.subr.mxu0 0.0
  %2889 = vmatpush1.msra.mxu0 0.0
  %2890 = vmatprep.subr.mxu0 0.0
  %2891 = vmatpush1.msra.mxu0 0.0
  %2892 = vmatprep.subr.mxu0 0.0
  %2893 = vmatpush1.msra.mxu0 0.0
  %2894 = vmatprep.subr.mxu0 0.0
  %2895 = vmatpush1.msra.mxu0 0.0
  %2896 = vmatprep.mubr.f32.mxu0 %v2830
  %2897 = vmatmul.mubr.f32.gmra.mrb[0].mxu0 %v2775
  %v2898 = vpop.f32.mrb[0].mxu0
  %v2899 = vadd.f32 0.0, %v2898
  %v2900 = vpop.f32.mrb[0].mxu0
  %2901 = vdwg.mxu0
  %v2903 = vsel %vm2828, %v2774, 0
  %2905 = vmatprep.subr.mxu0 0.0
  %2906 = vmatpush1.msra.mxu0 %v2779
  %2907 = vmatprep.subr.mxu0 0.0
  %2908 = vmatpush1.msra.mxu0 %v2780
  %2909 = vmatprep.subr.mxu0 0.0
  %2910 = vmatpush1.msra.mxu0 %v2781
  %2911 = vmatprep.subr.mxu0 0.0
  %2912 = vmatpush1.msra.mxu0 %v2782
  %2913 = vmatprep.subr.mxu0 0.0
  %2914 = vmatpush1.msra.mxu0 %v2783
  %2915 = vmatprep.subr.mxu0 0.0
  %2916 = vmatpush1.msra.mxu0 %v2784
  %2917 = vmatprep.subr.mxu0 0.0
  %2918 = vmatpush1.msra.mxu0 %v2785
  %2919 = vmatprep.subr.mxu0 0.0
  %2920 = vmatpush1.msra.mxu0 %v2786
  %2921 = vmatprep.subr.mxu0 0.0
  %2922 = vmatpush1.msra.mxu0 %v2787
  %2923 = vmatprep.subr.mxu0 0.0
  %2924 = vmatpush1.msra.mxu0 %v2788
  %2925 = vmatprep.subr.mxu0 0.0
  %2926 = vmatpush1.msra.mxu0 %v2789
  %2927 = vmatprep.subr.mxu0 0.0
  %2928 = vmatpush1.msra.mxu0 %v2790
  %2929 = vmatprep.subr.mxu0 0.0
  %2930 = vmatpush1.msra.mxu0 %v2791
  %2931 = vmatprep.subr.mxu0 0.0
  %2932 = vmatpush1.msra.mxu0 %v2792
  %2933 = vmatprep.subr.mxu0 0.0
  %2934 = vmatpush1.msra.mxu0 %v2793
  %2935 = vmatprep.subr.mxu0 0.0
  %2936 = vmatpush1.msra.mxu0 %v2794
  %2937 = vmatprep.subr.mxu0 0.0
  %2938 = vmatpush1.msra.mxu0 %v2795
  %2939 = vmatprep.subr.mxu0 0.0
  %2940 = vmatpush1.msra.mxu0 %v2796
  %2941 = vmatprep.subr.mxu0 0.0
  %2942 = vmatpush1.msra.mxu0 %v2797
  %2943 = vmatprep.subr.mxu0 0.0
  %2944 = vmatpush1.msra.mxu0 %v2798
  %2945 = vmatprep.subr.mxu0 0.0
  %2946 = vmatpush1.msra.mxu0 %v2799
  %2947 = vmatprep.subr.mxu0 0.0
  %2948 = vmatpush1.msra.mxu0 %v2800
  %2949 = vmatprep.subr.mxu0 0.0
  %2950 = vmatpush1.msra.mxu0 %v2801
  %2951 = vmatprep.subr.mxu0 0.0
  %2952 = vmatpush1.msra.mxu0 %v2802
  %2953 = vmatprep.subr.mxu0 0.0
  %2954 = vmatpush1.msra.mxu0 0.0
  %2955 = vmatprep.subr.mxu0 0.0
  %2956 = vmatpush1.msra.mxu0 0.0
  %2957 = vmatprep.subr.mxu0 0.0
  %2958 = vmatpush1.msra.mxu0 0.0
  %2959 = vmatprep.subr.mxu0 0.0
  %2960 = vmatpush1.msra.mxu0 0.0
  %2961 = vmatprep.subr.mxu0 0.0
  %2962 = vmatpush1.msra.mxu0 0.0
  %2963 = vmatprep.subr.mxu0 0.0
  %2964 = vmatpush1.msra.mxu0 0.0
  %2965 = vmatprep.subr.mxu0 0.0
  %2966 = vmatpush1.msra.mxu0 0.0
  %2967 = vmatprep.subr.mxu0 0.0
  %2968 = vmatpush1.msra.mxu0 0.0
  %2969 = vmatprep.mubr.f32.mxu0 %v2903
  %2970 = vmatmul.mubr.f32.gmra.mrb[0].mxu0 %v2773
  %v2971 = vpop.f32.mrb[0].mxu0
  %v2972 = vadd.f32 %v2899, %v2971
  %v2973 = vpop.f32.mrb[0].mxu0
  %2974 = vdwg.mxu0
  %s2975 = scalar_lea.vmem %s9, 384
  %v2976 = vld [vmem:[%s2975] sm:$0xff]
  %v2977 = vld [vmem:[%s2975 + $0x8] sm:$0xff]
  %v2978 = vld [vmem:[%s2975 + $0x10] sm:$0xff]
  %v2979 = vld [vmem:[%s2975 + $0x18] sm:$0xff]
  %v2980 = vld [vmem:[%s2975 + $0x20] sm:$0xff]
  %v2981 = vld [vmem:[%s2975 + $0x28] sm:$0xff]
  %v2982 = vld [vmem:[%s2975 + $0x30] sm:$0xff]
  %v2983 = vld [vmem:[%s2975 + $0x38] sm:$0xff]
  %v2984 = vld [vmem:[%s2975 + $0x40] sm:$0xff]
  %v2985 = vld [vmem:[%s2975 + $0x48] sm:$0xff]
  %v2986 = vld [vmem:[%s2975 + $0x50] sm:$0xff]
  %v2987 = vld [vmem:[%s2975 + $0x58] sm:$0xff]
  %v2988 = vld [vmem:[%s2975 + $0x60] sm:$0xff]
  %v2989 = vld [vmem:[%s2975 + $0x68] sm:$0xff]
  %v2990 = vld [vmem:[%s2975 + $0x70] sm:$0xff]
  %v2991 = vld [vmem:[%s2975 + $0x78] sm:$0xff]
  %v2992 = vld [vmem:[%s2975 + $0x80] sm:$0xff]
  %v2993 = vld [vmem:[%s2975 + $0x88] sm:$0xff]
  %v2994 = vld [vmem:[%s2975 + $0x90] sm:$0xff]
  %v2995 = vld [vmem:[%s2975 + $0x98] sm:$0xff]
  %v2996 = vld [vmem:[%s2975 + $0xa0] sm:$0xff]
  %v2997 = vld [vmem:[%s2975 + $0xa8] sm:$0xff]
  %v2998 = vld [vmem:[%s2975 + $0xb0] sm:$0xff]
  %v2999 = vld [vmem:[%s2975 + $0xb8] sm:$0xff]
  %v3001 = vsel %vm2828, %v2778, 0
  %3003 = vmatprep.subr.mxu0 0.0
  %3004 = vmatpush1.msra.mxu0 %v2976
  %3005 = vmatprep.subr.mxu0 0.0
  %3006 = vmatpush1.msra.mxu0 %v2977
  %3007 = vmatprep.subr.mxu0 0.0
  %3008 = vmatpush1.msra.mxu0 %v2978
  %3009 = vmatprep.subr.mxu0 0.0
  %3010 = vmatpush1.msra.mxu0 %v2979
  %3011 = vmatprep.subr.mxu0 0.0
  %3012 = vmatpush1.msra.mxu0 %v2980
  %3013 = vmatprep.subr.mxu0 0.0
  %3014 = vmatpush1.msra.mxu0 %v2981
  %3015 = vmatprep.subr.mxu0 0.0
  %3016 = vmatpush1.msra.mxu0 %v2982
  %3017 = vmatprep.subr.mxu0 0.0
  %3018 = vmatpush1.msra.mxu0 %v2983
  %3019 = vmatprep.subr.mxu0 0.0
  %3020 = vmatpush1.msra.mxu0 %v2984
  %3021 = vmatprep.subr.mxu0 0.0
  %3022 = vmatpush1.msra.mxu0 %v2985
  %3023 = vmatprep.subr.mxu0 0.0
  %3024 = vmatpush1.msra.mxu0 %v2986
  %3025 = vmatprep.subr.mxu0 0.0
  %3026 = vmatpush1.msra.mxu0 %v2987
  %3027 = vmatprep.subr.mxu0 0.0
  %3028 = vmatpush1.msra.mxu0 %v2988
  %3029 = vmatprep.subr.mxu0 0.0
  %3030 = vmatpush1.msra.mxu0 %v2989
  %3031 = vmatprep.subr.mxu0 0.0
  %3032 = vmatpush1.msra.mxu0 %v2990
  %3033 = vmatprep.subr.mxu0 0.0
  %3034 = vmatpush1.msra.mxu0 %v2991
  %3035 = vmatprep.subr.mxu0 0.0
  %3036 = vmatpush1.msra.mxu0 %v2992
  %3037 = vmatprep.subr.mxu0 0.0
  %3038 = vmatpush1.msra.mxu0 %v2993
  %3039 = vmatprep.subr.mxu0 0.0
  %3040 = vmatpush1.msra.mxu0 %v2994
  %3041 = vmatprep.subr.mxu0 0.0
  %3042 = vmatpush1.msra.mxu0 %v2995
  %3043 = vmatprep.subr.mxu0 0.0
  %3044 = vmatpush1.msra.mxu0 %v2996
  %3045 = vmatprep.subr.mxu0 0.0
  %3046 = vmatpush1.msra.mxu0 %v2997
  %3047 = vmatprep.subr.mxu0 0.0
  %3048 = vmatpush1.msra.mxu0 %v2998
  %3049 = vmatprep.subr.mxu0 0.0
  %3050 = vmatpush1.msra.mxu0 %v2999
  %3051 = vmatprep.subr.mxu0 0.0
  %3052 = vmatpush1.msra.mxu0 0.0
  %3053 = vmatprep.subr.mxu0 0.0
  %3054 = vmatpush1.msra.mxu0 0.0
  %3055 = vmatprep.subr.mxu0 0.0
  %3056 = vmatpush1.msra.mxu0 0.0
  %3057 = vmatprep.subr.mxu0 0.0
  %3058 = vmatpush1.msra.mxu0 0.0
  %3059 = vmatprep.subr.mxu0 0.0
  %3060 = vmatpush1.msra.mxu0 0.0
  %3061 = vmatprep.subr.mxu0 0.0
  %3062 = vmatpush1.msra.mxu0 0.0
  %3063 = vmatprep.subr.mxu0 0.0
  %3064 = vmatpush1.msra.mxu0 0.0
  %3065 = vmatprep.subr.mxu0 0.0
  %3066 = vmatpush1.msra.mxu0 0.0
  %3067 = vmatprep.mubr.f32.mxu0 %v3001
  %3068 = vmatmul.mubr.f32.gmra.mrb[0].mxu0 %v2777
  %v3069 = vpop.f32.mrb[0].mxu0
  %v3070 = vadd.f32 0.0, %v3069
  %v3071 = vpop.f32.mrb[0].mxu0
  %3072 = vdwg.mxu0
  %v3073 = vadd.f32 %v2972, %v3070
  %v3074 = vld [vmem:[%s10] sm:$0x1]
  %v3076 = vlaneseq
  %v3077 = vshrl.u32 %v3076, 7
  %v3078 = vsub.s32 0, %v3077
  %v3079 = vrot.slane %v3074, %v3078
  %v3081 = vadd.f32 %v3073, %v3079
  %v3082 = vmax.f32 %v3081, 0.0
  %v3083 = vld [vmem:[%s11] sm:$0xff]
  %v3084 = vld [vmem:[%s11 + $0x8] sm:$0xff]
  %v3085 = vld [vmem:[%s11 + $0x10] sm:$0xff]
  %v3086 = vld [vmem:[%s11 + $0x18] sm:$0xff]
  %v3087 = vld [vmem:[%s12] sm:$0x1]
  %v3089 = vlaneseq
  %v3090 = vshrl.u32 %v3089, 7
  %v3091 = vsub.s32 0, %v3090
  %v3092 = vrot.slane %v3087, %v3091
  %vm3094 = vcmask 261120
  %v3096 = vsel %vm3094, %v3082, 0
  %3098 = vmatprep.subr.mxu0 0.0
  %3099 = vmatpush1.msra.mxu0 %v3083
  %3100 = vmatprep.subr.mxu0 0.0
  %3101 = vmatpush1.msra.mxu0 %v3084
  %3102 = vmatprep.subr.mxu0 0.0
  %3103 = vmatpush1.msra.mxu0 %v3085
  %3104 = vmatprep.subr.mxu0 0.0
  %3105 = vmatpush1.msra.mxu0 %v3086
  %3106 = vmatprep.subr.mxu0 0.0
  %3107 = vmatpush1.msra.mxu0 0.0
  %3108 = vmatprep.subr.mxu0 0.0
  %3109 = vmatpush1.msra.mxu0 0.0
  %3110 = vmatprep.subr.mxu0 0.0
  %3111 = vmatpush1.msra.mxu0 0.0
  %3112 = vmatprep.subr.mxu0 0.0
  %3113 = vmatpush1.msra.mxu0 0.0
  %3114 = vmatprep.subr.mxu0 0.0
  %3115 = vmatpush1.msra.mxu0 0.0
  %3116 = vmatprep.subr.mxu0 0.0
  %3117 = vmatpush1.msra.mxu0 0.0
  %3118 = vmatprep.subr.mxu0 0.0
  %3119 = vmatpush1.msra.mxu0 0.0
  %3120 = vmatprep.subr.mxu0 0.0
  %3121 = vmatpush1.msra.mxu0 0.0
  %3122 = vmatprep.subr.mxu0 0.0
  %3123 = vmatpush1.msra.mxu0 0.0
  %3124 = vmatprep.subr.mxu0 0.0
  %3125 = vmatpush1.msra.mxu0 0.0
  %3126 = vmatprep.subr.mxu0 0.0
  %3127 = vmatpush1.msra.mxu0 0.0
  %3128 = vmatprep.subr.mxu0 0.0
  %3129 = vmatpush1.msra.mxu0 0.0
  %3130 = vmatprep.subr.mxu0 0.0
  %3131 = vmatpush1.msra.mxu0 0.0
  %3132 = vmatprep.subr.mxu0 0.0
  %3133 = vmatpush1.msra.mxu0 0.0
  %3134 = vmatprep.subr.mxu0 0.0
  %3135 = vmatpush1.msra.mxu0 0.0
  %3136 = vmatprep.subr.mxu0 0.0
  %3137 = vmatpush1.msra.mxu0 0.0
  %3138 = vmatprep.subr.mxu0 0.0
  %3139 = vmatpush1.msra.mxu0 0.0
  %3140 = vmatprep.subr.mxu0 0.0
  %3141 = vmatpush1.msra.mxu0 0.0
  %3142 = vmatprep.subr.mxu0 0.0
  %3143 = vmatpush1.msra.mxu0 0.0
  %3144 = vmatprep.subr.mxu0 0.0
  %3145 = vmatpush1.msra.mxu0 0.0
  %3146 = vmatprep.subr.mxu0 0.0
  %3147 = vmatpush1.msra.mxu0 0.0
  %3148 = vmatprep.subr.mxu0 0.0
  %3149 = vmatpush1.msra.mxu0 0.0
  %3150 = vmatprep.subr.mxu0 0.0
  %3151 = vmatpush1.msra.mxu0 0.0
  %3152 = vmatprep.subr.mxu0 0.0
  %3153 = vmatpush1.msra.mxu0 0.0
  %3154 = vmatprep.subr.mxu0 0.0
  %3155 = vmatpush1.msra.mxu0 0.0
  %3156 = vmatprep.subr.mxu0 0.0
  %3157 = vmatpush1.msra.mxu0 0.0
  %3158 = vmatprep.subr.mxu0 0.0
  %3159 = vmatpush1.msra.mxu0 0.0
  %3160 = vmatprep.subr.mxu0 0.0
  %3161 = vmatpush1.msra.mxu0 0.0
  %3162 = vmatprep.mubr.f32.mxu0 0.0
  %3163 = vmatmul.mubr.f32.gmra.mrb[0].mxu0 %v3096
  %v3164 = vpop.f32.mrb[0].mxu0
  %v3165 = vadd.f32 %v3092, %v3164
  %v3166 = vpop.f32.mrb[0].mxu0
  %3167 = vdwg.mxu0
  %3168 = vmax.xlane.f32.xlu0 %v3165
  %v3169 = vpop.xlane.xlu0 %3168
  %v3170 = vsub.f32 %v3165, %v3169
  %v3171 = vmul.f32 %v3170, 1.442695
  %v3172 = vpow.pop %v3171
  %3173 = vadd.xlane.f32.xlu0 %v3172
  %v3174 = vpop.xlane.xlu0 %3173
  %v3175 = vrcp.pop %v3174
  %v3176 = vmul.f32 %v3172, %v3175
  %3177 = vst [vmem:[%s13] sm:$0xff] %v3176
  // Predicated region
  $region54: #{trainer_net_forward.1} parent=0 // pred_check
    _
  $region55: #{trainer_net_forward.1} parent=0 // pred_check_branch
    %3179 = sbr.rel (0) target = $region57
  $region56: #{trainer_net_forward.1} parent=0 // pred_region
    _
  $region57: #{trainer_net_forward.1} parent=0 // pred_fallthru
    _
  // Predicated region
  $region58: #{trainer_net_forward.1} parent=0 // pred_check
    _
  $region59: #{trainer_net_forward.1} parent=0 // pred_check_branch
    %3181 = sbr.rel (0) target = $region61
  $region60: #{trainer_net_forward.1} parent=0 // pred_region
    _
  $region61: #{trainer_net_forward.1} parent=0 // pred_fallthru
    _

</llo_original>
